<compile_context>
chip_gen: v7x
topology: tpu7x:2x2x1
jax: 0.10.0
libtpu: 0.0.40
codegen_flags: <defaults>
</compile_context>

<pallas_src>
import jax
import jax.numpy as jnp
from jax import lax
from jax.experimental import pallas as pl
from jax.experimental.pallas import tpu as pltpu

NEG_SLOPE = 0.01   # F.leaky_relu default
SIGMA = 0.3        # value_rab sigma
LANE = 128


def _leaky(x):
    return jnp.where(x > 0, x, NEG_SLOPE * x)


def _round_up(x, m):
    return ((x + m - 1) // m) * m


def gatedgcn_sf_kernel(
    # edge-tiled inputs (block = [TILE_E, .])
    e_ref, src_ref, dst_ref, sp_ref, tm_ref,
    # node-resident inputs (full arrays, constant block index)
    h_ref, p_ref, d_ref, dt_ref,
    # fused, spectral-normalized, lane-padded weights
    wh_ref, bh_ref, wp_ref, bp_ref, wd_ref, bd_ref,
    we1_ref, be1_ref, wv_ref, bv_ref, wt_ref, bt_ref,
    # outputs
    h_out_ref, e_out_ref, p_out_ref, d_out_ref,
    # scratch
    ndst_ref, nsrc_ref, acc_ref,
):
    f32 = jnp.float32
    bf16 = jnp.bfloat16
    TE, D = e_ref.shape          # D = lane-padded feature width (mult of 128)
    N = h_ref.shape[0]
    step = pl.program_id(0)
    dot = lambda a, b: jnp.dot(a, b, preferred_element_type=f32)

    # ---- step 0: build the bf16 gather tables; zero the accumulator --------
    @pl.when(step == 0)
    def _init():
        h = h_ref[...]
        d = d_ref[...]
        # Only P1h / P2h are needed for per-edge gathers (V*/D*/P3 are
        # recomputed at finalize).  One fused [N,D]x[D,2D] matmul.
        pv = dot(p_ref[...], wp_ref[:, :2 * D]) + bp_ref[:, :2 * D]
        # Direct slice stores (128-lane aligned offsets) -> no concat copies.
        ndst_ref[:, :D] = pv[:, :D].astype(bf16)            # P1h
        ndst_ref[:, D:2 * D] = h.astype(bf16)               # h
        ndst_ref[:, 2 * D:] = d.astype(bf16)                # d
        nsrc_ref[:, :D] = pv[:, D:2 * D].astype(bf16)       # P2h
        nsrc_ref[:, D:] = h.astype(bf16)                    # h
        acc_ref[...] = jnp.zeros_like(acc_ref)

    # ---- per edge-tile work -------------------------------------------------
    e_t = e_ref[...]          # [TE, D]
    src = src_ref[...]        # [TE, 1] int32
    dst = dst_ref[...]        # [TE, 1] int32
    sp = sp_ref[...]          # [TE, 1] spatial & valid
    tm = tm_ref[...]          # [TE, 1] temporal & valid

    # one-hot rows built in-register from a (1, N) iota; exactly 2 bf16 casts
    iota = lax.broadcasted_iota(jnp.int32, (1, N), 1)
    S_bf = (iota == src).astype(bf16)     # [TE, N]
    D_bf = (iota == dst).astype(bf16)     # [TE, N]

    # fused gathers: dst -> [P1h | h | d], src -> [P2h | h]
    g_dst = dot(D_bf, ndst_ref[...])      # [TE, 3D]
    g_src = dot(S_bf, nsrc_ref[...])      # [TE, 2D]
    P1h_d = g_dst[:, :D]
    h_dst = g_dst[:, D:2 * D]
    hd_dst = g_dst[:, D:]                 # [h_dst | d_dst] contiguous for T
    P2h_s = g_src[:, :D]
    h_src = g_src[:, D:]

    # edge update: e_new = 0.5 * ((P1h[dst] - P2h[src]) + E1(e))
    E1e = dot(e_t, we1_ref[...]) + be1_ref[...]
    e_new = 0.5 * (P1h_d - P2h_s + E1e)

    # temporal edges: tau = relu(T([h_dst, d_dst]))
    tau = jnp.maximum(dot(hd_dst, wt_ref[...]) + bt_ref[...], 0.0) * tm

    # spatial edges: analytic VJP of compute(rab) wrt rab, cotangent = ones
    hj = h_src * h_dst
    Vj = jnp.maximum(dot(hj, wv_ref[...]) + bv_ref[...], 0.0) * sp
    sum_Vj = jnp.sum(Vj, axis=-1, keepdims=True)                   # [TE, 1]

    n = jnp.sqrt(jnp.sum(e_new * e_new, axis=-1, keepdims=True))   # [TE, 1]
    c = jnp.maximum(n, 1e-9)
    b = jnp.exp(-(0.5 * jnp.sqrt(c)) / SIGMA)
    inv_n = jnp.where(
        n > 0.0, pl.reciprocal(jnp.maximum(n, 1e-30), approx=True), 0.0)
    unit = e_new * inv_n                                           # d||rab||/drab
    pass_clamp = (n >= 1e-9).astype(f32)                           # clamp grad gate
    grad_rab = sum_Vj * (-b / SIGMA) * (0.25 * lax.rsqrt(c)) * pass_clamp * unit

    # fused scatter-sum into [sum_tau | fab]: two bf16 MXU passes (hi/lo split)
    tg = jnp.concatenate([tau, grad_rab], axis=-1)                 # [TE, 2D] f32
    tg_hi = tg.astype(bf16)
    tg_lo = (tg - tg_hi.astype(f32)).astype(bf16)
    dn = (((0,), (0,)), ((), ()))
    acc_ref[...] += (
        lax.dot_general(D_bf, tg_hi, dn, preferred_element_type=f32)
        + lax.dot_general(D_bf, tg_lo, dn, preferred_element_type=f32))

    # edge output (residual + leaky_relu), written every tile
    e_out_ref[...] = e_t + _leaky(e_new)

    # ---- last step: recompute node projections and finalize outputs --------
    @pl.when(step == pl.num_programs(0) - 1)
    def _finalize():
        h = h_ref[...]
        p = p_ref[...]
        d = d_ref[...]
        hv = dot(h, wh_ref[...]) + bh_ref[...]                    # [V1h | V2h]
        dv = dot(d, wd_ref[...]) + bd_ref[...]                    # [D1h | D2h]
        P3h = dot(p, wp_ref[:, 2 * D:]) + bp_ref[:, 2 * D:]
        V1h, V2h = hv[:, :D], hv[:, D:]
        D1h, D2h = dv[:, :D], dv[:, D:]
        a = D1h - V1h
        ac = acc_ref[...]
        sum_tau = ac[:, :D]
        fab = ac[:, D:]
        f = a * sum_tau - fab
        dt = dt_ref[...]                      # [N, 1]
        fdt = f * dt
        h_new = V2h + fdt
        p_new = P3h + fdt + 0.5 * fdt * dt
        fnorm = jnp.sqrt(jnp.sum(f * f, axis=-1, keepdims=True)) + 1e-9
        d_new = D2h + f * pl.reciprocal(fnorm, approx=True)
        h_out_ref[...] = h + _leaky(h_new)
        p_out_ref[...] = p + _leaky(p_new)
        d_out_ref[...] = d + _leaky(d_new)


def spectral_normalize(W, n_iter=30):
    # Deterministic power-iteration spectral norm (like nn.utils.spectral_norm).
    v = jnp.ones((W.shape[1],), jnp.float32) / jnp.sqrt(W.shape[1])
    for _ in range(n_iter):
        u = W @ v
        u = u / (jnp.linalg.norm(u) + 1e-12)
        v = W.T @ u
        v = v / (jnp.linalg.norm(v) + 1e-12)
    sigma = u @ (W @ v)
    return W / sigma


def init_params(key, din, dout):
    names = ["V1", "V2", "E1", "P1", "P2", "P3", "D1", "D2", "V", "T"]
    params = {}
    for i, name in enumerate(names):
        kw, kb = jax.random.split(jax.random.fold_in(key, i))
        fan_in = 2 * din if name == "T" else din
        W = jax.random.normal(kw, (dout, fan_in), jnp.float32) / jnp.sqrt(fan_in)
        W = spectral_normalize(W)
        b = 0.1 * jax.random.normal(kb, (dout,), jnp.float32)
        params[name] = (W.T.astype(jnp.float32), b.reshape(1, dout))  # [in, out]
    return params


def gatedgcn_sf_forward(h, e, p, d, dt, src, dst, smask, params, tile_e=256):
    # tile_e: 512 recommended on v5e/v6e (128 MiB VMEM), 256 on v7x (64 MiB).
    f32 = jnp.float32
    N, D = h.shape
    E = e.shape[0]
    Dp = _round_up(D, LANE)            # lane-dense (128-aligned) feature width
    TE = int(tile_e)
    assert TE % 16 == 0, "edge tile must be a multiple of 16 (bf16 sublane pack)"
    n_tiles = pl.cdiv(E, TE)
    E_pad = n_tiles * TE

    def pad_feat(x):                   # zero-pad last dim D -> Dp
        return jnp.pad(x.astype(f32),
                       [(0, 0)] * (x.ndim - 1) + [(0, Dp - D)])

    def pad_edge_rows(x, fill=0):      # zero-pad edge dim E -> E_pad
        pads = [(0, E_pad - E)] + [(0, 0)] * (x.ndim - 1)
        return jnp.pad(x, pads, constant_values=fill)

    h_p = pad_feat(h)
    p_p = pad_feat(p)
    d_p = pad_feat(d)
    e_p = pad_edge_rows(pad_feat(e))
    src_p = pad_edge_rows(src.astype(jnp.int32)).reshape(E_pad, 1)
    dst_p = pad_edge_rows(dst.astype(jnp.int32)).reshape(E_pad, 1)
    smask_p = pad_edge_rows(smask.astype(f32))
    valid = (jnp.arange(E_pad) < E).astype(f32)            # zero out padded edges
    sp_mask = (smask_p * valid).reshape(E_pad, 1)          # spatial & real
    tm_mask = ((1.0 - smask_p) * valid).reshape(E_pad, 1)  # temporal & real
    dt2 = dt.reshape(N, 1).astype(f32)

    # Zero-pad every weight/bias to lane-aligned shapes (padded rows/cols = 0,
    # so padded feature columns stay exactly zero through the whole layer).
    def pad_wb(name, two_in=False):
        W, b = params[name]            # W: [din(*2), dout], b: [1, dout]
        Wpad = jnp.zeros(((2 if two_in else 1) * Dp, Dp), f32)
        if two_in:
            Wpad = Wpad.at[:D, :D].set(W[:D])
            Wpad = Wpad.at[Dp:Dp + D, :D].set(W[D:2 * D])
        else:
            Wpad = Wpad.at[:D, :D].set(W)
        bpad = jnp.zeros((1, Dp), f32).at[:, :D].set(b)
        return Wpad, bpad

    V1W, V1b = pad_wb("V1")
    V2W, V2b = pad_wb("V2")
    P1W, P1b = pad_wb("P1")
    P2W, P2b = pad_wb("P2")
    P3W, P3b = pad_wb("P3")
    D1W, D1b = pad_wb("D1")
    D2W, D2b = pad_wb("D2")
    We1, be1 = pad_wb("E1")
    Wv, bv = pad_wb("V")
    Wt, bt = pad_wb("T", two_in=True)          # [2*Dp, Dp]

    # Fused weights -> wide matmuls with 128-aligned column offsets.
    Wh = jnp.concatenate([V1W, V2W], axis=1)               # [Dp, 2Dp]
    bh = jnp.concatenate([V1b, V2b], axis=1)
    Wp = jnp.concatenate([P1W, P2W, P3W], axis=1)          # [Dp, 3Dp]
    bp = jnp.concatenate([P1b, P2b, P3b], axis=1)
    Wd = jnp.concatenate([D1W, D2W], axis=1)               # [Dp, 2Dp]
    bd = jnp.concatenate([D1b, D2b], axis=1)

    edge_spec = lambda w: pl.BlockSpec((TE, w), lambda i: (i, 0))
    full = lambda shape: pl.BlockSpec(shape, lambda i: tuple(0 for _ in shape))

    in_specs = [
        edge_spec(Dp),                          # e tile
        edge_spec(1), edge_spec(1),             # src, dst ids
        edge_spec(1), edge_spec(1),             # spatial / temporal masks
        full((N, Dp)), full((N, Dp)), full((N, Dp)), full((N, 1)),  # h, p, d, dt
        full(Wh.shape), full(bh.shape),
        full(Wp.shape), full(bp.shape),
        full(Wd.shape), full(bd.shape),
        full(We1.shape), full(be1.shape),
        full(Wv.shape), full(bv.shape),
        full(Wt.shape), full(bt.shape),
    ]
    out_specs = (
        full((N, Dp)),                                 # h (written at last step)
        pl.BlockSpec((TE, Dp), lambda i: (i, 0)),      # e (per tile)
        full((N, Dp)),                                 # p
        full((N, Dp)),                                 # d
    )
    out_shape = (
        jax.ShapeDtypeStruct((N, Dp), f32),
        jax.ShapeDtypeStruct((E_pad, Dp), f32),
        jax.ShapeDtypeStruct((N, Dp), f32),
        jax.ShapeDtypeStruct((N, Dp), f32),
    )
    scratch_shapes = [
        pltpu.VMEM((N, 3 * Dp), jnp.bfloat16),   # [P1h | h | d]  (dst gathers)
        pltpu.VMEM((N, 2 * Dp), jnp.bfloat16),   # [P2h | h]      (src gathers)
        pltpu.VMEM((N, 2 * Dp), jnp.float32),    # [sum_tau | fab] accumulator
    ]

    # VMEM budget: scratch + (default) double-buffered residents/weights +
    # edge-tile double buffers, with headroom; capped to the v7x physical 64MiB.
    est_vmem = (18 * N * Dp                               # scratch
                + 2 * 4 * (3 * N * Dp + N)                # h, p, d, dt (x2 buf)
                + 2 * 4 * (11 * Dp * Dp + 10 * Dp)        # weights + biases
                + 2 * 4 * (3 * N * Dp)                    # resident outputs
                + 2 * 4 * (2 * TE * Dp + 4 * TE))         # edge tiles in/out
    vmem_limit = int(min(max(2 * est_vmem, 32 * 1024 * 1024), 64 * 1024 * 1024))

    flops = (2 * E_pad * N * 5 * Dp          # fused gathers (bf16)
             + 2 * 2 * E_pad * N * 2 * Dp    # hi/lo fused scatter (bf16)
             + 2 * N * Dp * 7 * Dp           # node projections
             + 2 * E_pad * Dp * 4 * Dp)      # per-edge E1 / V / T linears
    bytes_accessed = 4 * (E_pad * (2 * Dp + 4) + 8 * N * Dp + N + 11 * Dp * Dp)

    grid_spec = pltpu.PrefetchScalarGridSpec(
        num_scalar_prefetch=0,
        grid=(n_tiles,),
        in_specs=in_specs,
        out_specs=out_specs,
        scratch_shapes=scratch_shapes,
    )

    h_out, e_out, p_out, d_out = pl.pallas_call(
        gatedgcn_sf_kernel,
        grid_spec=grid_spec,
        out_shape=out_shape,
        compiler_params=pltpu.CompilerParams(
            dimension_semantics=("arbitrary",),
            vmem_limit_bytes=vmem_limit),
        cost_estimate=pl.CostEstimate(
            flops=flops, transcendentals=5 * E_pad + N,
            bytes_accessed=bytes_accessed),
    )(e_p, src_p, dst_p, sp_mask, tm_mask,
      h_p, p_p, d_p, dt2,
      Wh, bh, Wp, bp, Wd, bd, We1, be1, Wv, bv, Wt, bt)

    # strip lane / edge padding
    return (h_out[:, :D], e_out[:E, :D], p_out[:, :D], d_out[:, :D])


def reference(h, e, p, d, dt, src, dst, smask, params):
    # Pure-JAX (f32) replication of the PyTorch/DGL forward semantics.
    N, D = h.shape
    lin = lambda x, name: x @ params[name][0] + params[name][1]
    V1h, V2h = lin(h, "V1"), lin(h, "V2")
    E1e = lin(e, "E1")
    P1h, P2h, P3h = lin(p, "P1"), lin(p, "P2"), lin(p, "P3")
    D1h, D2h = lin(d, "D1"), lin(d, "D2")

    PPh = P1h[dst] - P2h[src]
    e_new = 0.5 * (PPh + E1e)
    a = D1h - V1h

    Wt, bt = params["T"]
    hi = jnp.concatenate([h[dst], d[dst]], axis=-1)
    tau = jax.nn.relu(hi @ Wt + bt) * (1.0 - smask)[:, None]
    sum_tau = jax.ops.segment_sum(tau, dst, num_segments=N)
    f0 = a * sum_tau

    def compute(rab):
        r = 0.5 * jnp.sqrt(jnp.maximum(
            jnp.linalg.norm(rab, axis=-1, keepdims=True), 1e-9))
        b = jnp.exp(-r / SIGMA)
        Vj = jax.nn.relu(lin(h[src] * h[dst], "V")) * smask[:, None]
        return Vj * b

    _, vjp_fn = jax.vjp(compute, e_new)
    grad_rab = vjp_fn(jnp.ones_like(e_new))[0]
    fab = jax.ops.segment_sum(grad_rab, dst, num_segments=N)
    f = f0 - fab

    dtc = dt[:, None]
    h_new = V2h + f * dtc
    p_new = P3h + f * dtc + 0.5 * f * dtc ** 2
    d_new = D2h + f / (jnp.linalg.norm(f, axis=-1, keepdims=True) + 1e-9)

    return (h + _leaky(h_new), e + _leaky(e_new),
            p + _leaky(p_new), d + _leaky(d_new))


if __name__ == "__main__":
    key = jax.random.PRNGKey(0)
    N, E, D = 16, 40, 32
    TILE_E = 16   # small tile so the demo exercises padding + multi-step grid
    ks = jax.random.split(key, 10)
    h = jax.random.normal(ks[0], (N, D), jnp.float32)
    e = jax.random.normal(ks[1], (E, D), jnp.float32)
    p = jax.random.normal(ks[2], (N, D), jnp.float32)
    d = jax.random.normal(ks[3], (N, D), jnp.float32)
    dt = jax.random.uniform(ks[4], (N,), jnp.float32, 0.1, 1.0)
    src = jax.random.randint(ks[5], (E,), 0, N)
    dst = jax.random.randint(ks[6], (E,), 0, N)
    # alternating spatial (1) / temporal (0) edges
    smask = (jnp.arange(E) % 2 == 0).astype(jnp.float32)
    params = init_params(ks[7], D, D)

    outs = gatedgcn_sf_forward(h, e, p, d, dt, src, dst, smask, params,
                               tile_e=TILE_E)
    outs = jax.block_until_ready(outs)

    refs = reference(h, e, p, d, dt, src, dst, smask, params)
    # d normalizes f to a unit direction (f / ||f||), which amplifies the
    # bf16 feature-rounding of the fused gathers by 1/||f||; give it a
    # slightly looser bound than the other outputs.
    tols = {"h": 5e-2, "e": 5e-2, "p": 5e-2, "d": 1e-1}
    for name, o, r in zip(["h", "e", "p", "d"], outs, refs):
        assert o.shape == r.shape, (name, o.shape, r.shape)
        assert bool(jnp.all(jnp.isfinite(o))), name
        err = float(jnp.max(jnp.abs(o - r)))
        assert err < tols[name], (name, err)

    print("KERNEL_OK")
</pallas_src>

<mosaic_0001>
module attributes {stable_mosaic.version = 11 : i64} {
  func.func @gatedgcn_sf_kernel(%arg0: i32, %arg1: memref<16x128xf32, #tpu.memory_space<vmem>>, %arg2: memref<16x1xi32, #tpu.memory_space<vmem>>, %arg3: memref<16x1xi32, #tpu.memory_space<vmem>>, %arg4: memref<16x1xf32, #tpu.memory_space<vmem>>, %arg5: memref<16x1xf32, #tpu.memory_space<vmem>>, %arg6: memref<16x128xf32, #tpu.memory_space<vmem>>, %arg7: memref<16x128xf32, #tpu.memory_space<vmem>>, %arg8: memref<16x128xf32, #tpu.memory_space<vmem>>, %arg9: memref<16x1xf32, #tpu.memory_space<vmem>>, %arg10: memref<128x256xf32, #tpu.memory_space<vmem>>, %arg11: memref<1x256xf32, #tpu.memory_space<vmem>>, %arg12: memref<128x384xf32, #tpu.memory_space<vmem>>, %arg13: memref<1x384xf32, #tpu.memory_space<vmem>>, %arg14: memref<128x256xf32, #tpu.memory_space<vmem>>, %arg15: memref<1x256xf32, #tpu.memory_space<vmem>>, %arg16: memref<128x128xf32, #tpu.memory_space<vmem>>, %arg17: memref<1x128xf32, #tpu.memory_space<vmem>>, %arg18: memref<128x128xf32, #tpu.memory_space<vmem>>, %arg19: memref<1x128xf32, #tpu.memory_space<vmem>>, %arg20: memref<256x128xf32, #tpu.memory_space<vmem>>, %arg21: memref<1x128xf32, #tpu.memory_space<vmem>>, %arg22: memref<16x128xf32, #tpu.memory_space<vmem>>, %arg23: memref<16x128xf32, #tpu.memory_space<vmem>>, %arg24: memref<16x128xf32, #tpu.memory_space<vmem>>, %arg25: memref<16x128xf32, #tpu.memory_space<vmem>>, %arg26: memref<16x384xbf16, #tpu.memory_space<vmem>>, %arg27: memref<16x256xbf16, #tpu.memory_space<vmem>>, %arg28: memref<16x256xf32, #tpu.memory_space<vmem>>) attributes {dimension_semantics = [#tpu.dimension_semantics<arbitrary>], iteration_bounds = array<i64: 3>, scalar_prefetch = 0 : i64, scratch_operands = 3 : i64, tpu.core_type = #tpu.core_type<tc>, window_params = [{transform_indices = @transform_0, window_bounds = array<i64: 16, 128>}, {transform_indices = @transform_1, window_bounds = array<i64: 16, 1>}, {transform_indices = @transform_2, window_bounds = array<i64: 16, 1>}, {transform_indices = @transform_3, window_bounds = array<i64: 16, 1>}, {transform_indices = @transform_4, window_bounds = array<i64: 16, 1>}, {pipeline_mode = #tpu.pipeline_mode<synchronous>, transform_indices = @transform_5, window_bounds = array<i64: 16, 128>}, {pipeline_mode = #tpu.pipeline_mode<synchronous>, transform_indices = @transform_6, window_bounds = array<i64: 16, 128>}, {pipeline_mode = #tpu.pipeline_mode<synchronous>, transform_indices = @transform_7, window_bounds = array<i64: 16, 128>}, {pipeline_mode = #tpu.pipeline_mode<synchronous>, transform_indices = @transform_8, window_bounds = array<i64: 16, 1>}, {pipeline_mode = #tpu.pipeline_mode<synchronous>, transform_indices = @transform_9, window_bounds = array<i64: 128, 256>}, {pipeline_mode = #tpu.pipeline_mode<synchronous>, transform_indices = @transform_10, window_bounds = array<i64: 1, 256>}, {pipeline_mode = #tpu.pipeline_mode<synchronous>, transform_indices = @transform_11, window_bounds = array<i64: 128, 384>}, {pipeline_mode = #tpu.pipeline_mode<synchronous>, transform_indices = @transform_12, window_bounds = array<i64: 1, 384>}, {pipeline_mode = #tpu.pipeline_mode<synchronous>, transform_indices = @transform_13, window_bounds = array<i64: 128, 256>}, {pipeline_mode = #tpu.pipeline_mode<synchronous>, transform_indices = @transform_14, window_bounds = array<i64: 1, 256>}, {pipeline_mode = #tpu.pipeline_mode<synchronous>, transform_indices = @transform_15, window_bounds = array<i64: 128, 128>}, {pipeline_mode = #tpu.pipeline_mode<synchronous>, transform_indices = @transform_16, window_bounds = array<i64: 1, 128>}, {pipeline_mode = #tpu.pipeline_mode<synchronous>, transform_indices = @transform_17, window_bounds = array<i64: 128, 128>}, {pipeline_mode = #tpu.pipeline_mode<synchronous>, transform_indices = @transform_18, window_bounds = array<i64: 1, 128>}, {pipeline_mode = #tpu.pipeline_mode<synchronous>, transform_indices = @transform_19, window_bounds = array<i64: 256, 128>}, {pipeline_mode = #tpu.pipeline_mode<synchronous>, transform_indices = @transform_20, window_bounds = array<i64: 1, 128>}, {pipeline_mode = #tpu.pipeline_mode<synchronous>, transform_indices = @transform_21, window_bounds = array<i64: 16, 128>}, {transform_indices = @transform_22, window_bounds = array<i64: 16, 128>}, {pipeline_mode = #tpu.pipeline_mode<synchronous>, transform_indices = @transform_23, window_bounds = array<i64: 16, 128>}, {pipeline_mode = #tpu.pipeline_mode<synchronous>, transform_indices = @transform_24, window_bounds = array<i64: 16, 128>}]} {
    %c0_i32 = arith.constant 0 : i32
    %0 = arith.cmpi eq, %arg0, %c0_i32 : i32
    %1 = arith.extui %0 : i1 to i32
    %c0_i32_0 = arith.constant 0 : i32
    %2 = arith.cmpi ne, %1, %c0_i32_0 : i32
    scf.if %2 {
      %c0_57 = arith.constant 0 : index
      %c0_58 = arith.constant 0 : index
      %120 = vector.load %arg6[%c0_57, %c0_58] : memref<16x128xf32, #tpu.memory_space<vmem>>, vector<16x128xf32>
      %c0_59 = arith.constant 0 : index
      %c0_60 = arith.constant 0 : index
      %121 = vector.load %arg8[%c0_59, %c0_60] : memref<16x128xf32, #tpu.memory_space<vmem>>, vector<16x128xf32>
      %c0_61 = arith.constant 0 : index
      %c0_62 = arith.constant 0 : index
      %122 = vector.load %arg7[%c0_61, %c0_62] : memref<16x128xf32, #tpu.memory_space<vmem>>, vector<16x128xf32>
      %c0_63 = arith.constant 0 : index
      %c0_64 = arith.constant 0 : index
      %123 = vector.load %arg12[%c0_63, %c0_64] : memref<128x384xf32, #tpu.memory_space<vmem>>, vector<128x256xf32>
      %cst_65 = arith.constant dense<0.000000e+00> : vector<16x256xf32>
      %124 = tpu.matmul %122, %123, %cst_65 {dimension_numbers = #tpu.dot_dimension_numbers<[1], [0], [0], [1], [0, 0, 1, 1], [], []>} : vector<16x128xf32>, vector<128x256xf32>, vector<16x256xf32> -> vector<16x256xf32>
      %c0_66 = arith.constant 0 : index
      %c0_67 = arith.constant 0 : index
      %125 = vector.load %arg13[%c0_66, %c0_67] : memref<1x384xf32, #tpu.memory_space<vmem>>, vector<1x256xf32>
      %126 = vector.broadcast %125 : vector<1x256xf32> to vector<16x256xf32>
      %127 = arith.addf %124, %126 : vector<16x256xf32>
      %128 = vector.extract_strided_slice %127 {offsets = [0, 0], sizes = [16, 128], strides = [1, 1]} : vector<16x256xf32> to vector<16x128xf32>
      %129 = arith.truncf %128 : vector<16x128xf32> to vector<16x128xbf16>
      %c0_68 = arith.constant 0 : index
      %c0_69 = arith.constant 0 : index
      %130 = vector.load %arg26[%c0_68, %c0_69] : memref<16x384xbf16, #tpu.memory_space<vmem>>, vector<16x128xbf16>
      tpu.vector_store %arg26[%c0_68, %c0_69], %129 {strides = array<i32>} : memref<16x384xbf16, #tpu.memory_space<vmem>>, vector<16x128xbf16>,
      %131 = arith.truncf %120 : vector<16x128xf32> to vector<16x128xbf16>
      %c0_70 = arith.constant 0 : index
      %c128 = arith.constant 128 : index
      %132 = vector.load %arg26[%c0_70, %c128] : memref<16x384xbf16, #tpu.memory_space<vmem>>, vector<16x128xbf16>
      tpu.vector_store %arg26[%c0_70, %c128], %131 {strides = array<i32>} : memref<16x384xbf16, #tpu.memory_space<vmem>>, vector<16x128xbf16>,
      %133 = arith.truncf %121 : vector<16x128xf32> to vector<16x128xbf16>
      %c0_71 = arith.constant 0 : index
      %c256 = arith.constant 256 : index
      %134 = vector.load %arg26[%c0_71, %c256] : memref<16x384xbf16, #tpu.memory_space<vmem>>, vector<16x128xbf16>
      tpu.vector_store %arg26[%c0_71, %c256], %133 {strides = array<i32>} : memref<16x384xbf16, #tpu.memory_space<vmem>>, vector<16x128xbf16>,
      %135 = vector.extract_strided_slice %127 {offsets = [0, 128], sizes = [16, 128], strides = [1, 1]} : vector<16x256xf32> to vector<16x128xf32>
      %136 = arith.truncf %135 : vector<16x128xf32> to vector<16x128xbf16>
      %c0_72 = arith.constant 0 : index
      %c0_73 = arith.constant 0 : index
      %137 = vector.load %arg27[%c0_72, %c0_73] : memref<16x256xbf16, #tpu.memory_space<vmem>>, vector<16x128xbf16>
      tpu.vector_store %arg27[%c0_72, %c0_73], %136 {strides = array<i32>} : memref<16x256xbf16, #tpu.memory_space<vmem>>, vector<16x128xbf16>,
      %138 = arith.truncf %120 : vector<16x128xf32> to vector<16x128xbf16>
      %c0_74 = arith.constant 0 : index
      %c128_75 = arith.constant 128 : index
      %139 = vector.load %arg27[%c0_74, %c128_75] : memref<16x256xbf16, #tpu.memory_space<vmem>>, vector<16x128xbf16>
      tpu.vector_store %arg27[%c0_74, %c128_75], %138 {strides = array<i32>} : memref<16x256xbf16, #tpu.memory_space<vmem>>, vector<16x128xbf16>,
      %cst_76 = arith.constant 0.000000e+00 : f32
      %140 = vector.broadcast %cst_76 : f32 to vector<16x256xf32>
      %c0_77 = arith.constant 0 : index
      %c0_78 = arith.constant 0 : index
      %141 = vector.load %arg28[%c0_77, %c0_78] : memref<16x256xf32, #tpu.memory_space<vmem>>, vector<16x256xf32>
      tpu.vector_store %arg28[%c0_77, %c0_78], %140 {strides = array<i32>} : memref<16x256xf32, #tpu.memory_space<vmem>>, vector<16x256xf32>,
    } else {
    }
    %c0 = arith.constant 0 : index
    %c0_1 = arith.constant 0 : index
    %3 = vector.load %arg1[%c0, %c0_1] : memref<16x128xf32, #tpu.memory_space<vmem>>, vector<16x128xf32>
    %c0_2 = arith.constant 0 : index
    %c0_3 = arith.constant 0 : index
    %4 = vector.load %arg2[%c0_2, %c0_3] : memref<16x1xi32, #tpu.memory_space<vmem>>, vector<16x1xi32>
    %c0_4 = arith.constant 0 : index
    %c0_5 = arith.constant 0 : index
    %5 = vector.load %arg3[%c0_4, %c0_5] : memref<16x1xi32, #tpu.memory_space<vmem>>, vector<16x1xi32>
    %c0_6 = arith.constant 0 : index
    %c0_7 = arith.constant 0 : index
    %6 = vector.load %arg4[%c0_6, %c0_7] : memref<16x1xf32, #tpu.memory_space<vmem>>, vector<16x1xf32>
    %c0_8 = arith.constant 0 : index
    %c0_9 = arith.constant 0 : index
    %7 = vector.load %arg5[%c0_8, %c0_9] : memref<16x1xf32, #tpu.memory_space<vmem>>, vector<16x1xf32>
    %8 = tpu.iota {dimensions = array<i32: 1>} : vector<1x16xi32>
    %9 = vector.broadcast %8 : vector<1x16xi32> to vector<16x16xi32>
    %10 = vector.broadcast %4 : vector<16x1xi32> to vector<16x16xi32>
    %11 = arith.cmpi eq, %9, %10 : vector<16x16xi32>
    %12 = arith.extui %11 : vector<16x16xi1> to vector<16x16xi32>
    %13 = arith.sitofp %12 : vector<16x16xi32> to vector<16x16xf32>
    %14 = arith.truncf %13 : vector<16x16xf32> to vector<16x16xbf16>
    %15 = vector.broadcast %8 : vector<1x16xi32> to vector<16x16xi32>
    %16 = vector.broadcast %5 : vector<16x1xi32> to vector<16x16xi32>
    %17 = arith.cmpi eq, %15, %16 : vector<16x16xi32>
    %18 = arith.extui %17 : vector<16x16xi1> to vector<16x16xi32>
    %19 = arith.sitofp %18 : vector<16x16xi32> to vector<16x16xf32>
    %20 = arith.truncf %19 : vector<16x16xf32> to vector<16x16xbf16>
    %c0_10 = arith.constant 0 : index
    %c0_11 = arith.constant 0 : index
    %21 = vector.load %arg26[%c0_10, %c0_11] : memref<16x384xbf16, #tpu.memory_space<vmem>>, vector<16x384xbf16>
    %cst = arith.constant dense<0.000000e+00> : vector<16x384xf32>
    %22 = tpu.matmul %20, %21, %cst {dimension_numbers = #tpu.dot_dimension_numbers<[1], [0], [0], [1], [0, 0, 1, 1], [], []>} : vector<16x16xbf16>, vector<16x384xbf16>, vector<16x384xf32> -> vector<16x384xf32>
    %c0_12 = arith.constant 0 : index
    %c0_13 = arith.constant 0 : index
    %23 = vector.load %arg27[%c0_12, %c0_13] : memref<16x256xbf16, #tpu.memory_space<vmem>>, vector<16x256xbf16>
    %cst_14 = arith.constant dense<0.000000e+00> : vector<16x256xf32>
    %24 = tpu.matmul %14, %23, %cst_14 {dimension_numbers = #tpu.dot_dimension_numbers<[1], [0], [0], [1], [0, 0, 1, 1], [], []>} : vector<16x16xbf16>, vector<16x256xbf16>, vector<16x256xf32> -> vector<16x256xf32>
    %25 = vector.extract_strided_slice %22 {offsets = [0, 0], sizes = [16, 128], strides = [1, 1]} : vector<16x384xf32> to vector<16x128xf32>
    %26 = vector.extract_strided_slice %22 {offsets = [0, 128], sizes = [16, 128], strides = [1, 1]} : vector<16x384xf32> to vector<16x128xf32>
    %27 = vector.extract_strided_slice %22 {offsets = [0, 128], sizes = [16, 256], strides = [1, 1]} : vector<16x384xf32> to vector<16x256xf32>
    %28 = vector.extract_strided_slice %24 {offsets = [0, 0], sizes = [16, 128], strides = [1, 1]} : vector<16x256xf32> to vector<16x128xf32>
    %29 = vector.extract_strided_slice %24 {offsets = [0, 128], sizes = [16, 128], strides = [1, 1]} : vector<16x256xf32> to vector<16x128xf32>
    %c0_15 = arith.constant 0 : index
    %c0_16 = arith.constant 0 : index
    %30 = vector.load %arg16[%c0_15, %c0_16] : memref<128x128xf32, #tpu.memory_space<vmem>>, vector<128x128xf32>
    %cst_17 = arith.constant dense<0.000000e+00> : vector<16x128xf32>
    %31 = tpu.matmul %3, %30, %cst_17 {dimension_numbers = #tpu.dot_dimension_numbers<[1], [0], [0], [1], [0, 0, 1, 1], [], []>} : vector<16x128xf32>, vector<128x128xf32>, vector<16x128xf32> -> vector<16x128xf32>
    %c0_18 = arith.constant 0 : index
    %c0_19 = arith.constant 0 : index
    %32 = vector.load %arg17[%c0_18, %c0_19] : memref<1x128xf32, #tpu.memory_space<vmem>>, vector<1x128xf32>
    %33 = vector.broadcast %32 : vector<1x128xf32> to vector<16x128xf32>
    %34 = arith.addf %31, %33 : vector<16x128xf32>
    %35 = arith.subf %25, %28 : vector<16x128xf32>
    %36 = arith.addf %35, %34 : vector<16x128xf32>
    %cst_20 = arith.constant 5.000000e-01 : f32
    %37 = vector.broadcast %cst_20 : f32 to vector<16x128xf32>
    %38 = arith.mulf %37, %36 : vector<16x128xf32>
    %c0_21 = arith.constant 0 : index
    %c0_22 = arith.constant 0 : index
    %39 = vector.load %arg20[%c0_21, %c0_22] : memref<256x128xf32, #tpu.memory_space<vmem>>, vector<256x128xf32>
    %cst_23 = arith.constant dense<0.000000e+00> : vector<16x128xf32>
    %40 = tpu.matmul %27, %39, %cst_23 {dimension_numbers = #tpu.dot_dimension_numbers<[1], [0], [0], [1], [0, 0, 1, 1], [], []>} : vector<16x256xf32>, vector<256x128xf32>, vector<16x128xf32> -> vector<16x128xf32>
    %c0_24 = arith.constant 0 : index
    %c0_25 = arith.constant 0 : index
    %41 = vector.load %arg21[%c0_24, %c0_25] : memref<1x128xf32, #tpu.memory_space<vmem>>, vector<1x128xf32>
    %42 = vector.broadcast %41 : vector<1x128xf32> to vector<16x128xf32>
    %43 = arith.addf %40, %42 : vector<16x128xf32>
    %cst_26 = arith.constant 0.000000e+00 : f32
    %44 = vector.broadcast %cst_26 : f32 to vector<16x128xf32>
    %45 = arith.maximumf %43, %44 : vector<16x128xf32>
    %46 = vector.broadcast %7 : vector<16x1xf32> to vector<16x128xf32>
    %47 = arith.mulf %45, %46 : vector<16x128xf32>
    %48 = arith.mulf %29, %26 : vector<16x128xf32>
    %c0_27 = arith.constant 0 : index
    %c0_28 = arith.constant 0 : index
    %49 = vector.load %arg18[%c0_27, %c0_28] : memref<128x128xf32, #tpu.memory_space<vmem>>, vector<128x128xf32>
    %cst_29 = arith.constant dense<0.000000e+00> : vector<16x128xf32>
    %50 = tpu.matmul %48, %49, %cst_29 {dimension_numbers = #tpu.dot_dimension_numbers<[1], [0], [0], [1], [0, 0, 1, 1], [], []>} : vector<16x128xf32>, vector<128x128xf32>, vector<16x128xf32> -> vector<16x128xf32>
    %c0_30 = arith.constant 0 : index
    %c0_31 = arith.constant 0 : index
    %51 = vector.load %arg19[%c0_30, %c0_31] : memref<1x128xf32, #tpu.memory_space<vmem>>, vector<1x128xf32>
    %52 = vector.broadcast %51 : vector<1x128xf32> to vector<16x128xf32>
    %53 = arith.addf %50, %52 : vector<16x128xf32>
    %cst_32 = arith.constant 0.000000e+00 : f32
    %54 = vector.broadcast %cst_32 : f32 to vector<16x128xf32>
    %55 = arith.maximumf %53, %54 : vector<16x128xf32>
    %56 = vector.broadcast %6 : vector<16x1xf32> to vector<16x128xf32>
    %57 = arith.mulf %55, %56 : vector<16x128xf32>
    %cst_33 = arith.constant dense<0.000000e+00> : vector<16xf32>
    %58 = vector.multi_reduction <add>, %57, %cst_33 [1] : vector<16x128xf32> to vector<16xf32>
    %59 = vector.shape_cast %58 : vector<16xf32> to vector<16x1xf32>
    %60 = arith.mulf %38, %38 : vector<16x128xf32>
    %cst_34 = arith.constant dense<0.000000e+00> : vector<16xf32>
    %61 = vector.multi_reduction <add>, %60, %cst_34 [1] : vector<16x128xf32> to vector<16xf32>
    %62 = vector.shape_cast %61 : vector<16xf32> to vector<16x1xf32>
    %63 = math.sqrt %62 : vector<16x1xf32>
    %cst_35 = arith.constant 9.99999971E-10 : f32
    %64 = vector.broadcast %cst_35 : f32 to vector<16x1xf32>
    %65 = arith.maximumf %63, %64 : vector<16x1xf32>
    %66 = math.sqrt %65 : vector<16x1xf32>
    %cst_36 = arith.constant 5.000000e-01 : f32
    %67 = vector.broadcast %cst_36 : f32 to vector<16x1xf32>
    %68 = arith.mulf %67, %66 : vector<16x1xf32>
    %cst_37 = arith.constant 0.000000e+00 : f32
    %69 = vector.broadcast %cst_37 : f32 to vector<16x1xf32>
    %70 = arith.subf %69, %68 : vector<16x1xf32>
    %cst_38 = arith.constant 3.000000e-01 : f32
    %71 = vector.broadcast %cst_38 : f32 to vector<16x1xf32>
    %72 = arith.divf %70, %71 : vector<16x1xf32>
    %73 = math.exp %72 : vector<16x1xf32>
    %cst_39 = arith.constant 0.000000e+00 : f32
    %74 = vector.broadcast %cst_39 : f32 to vector<16x1xf32>
    %75 = arith.cmpf ogt, %63, %74 : vector<16x1xf32>
    %cst_40 = arith.constant 1.000000e-30 : f32
    %76 = vector.broadcast %cst_40 : f32 to vector<16x1xf32>
    %77 = arith.maximumf %63, %76 : vector<16x1xf32>
    %78 = tpu.reciprocal %77 {approx = true} : vector<16x1xf32> -> vector<16x1xf32>
    %cst_41 = arith.constant 0.000000e+00 : f32
    %79 = vector.broadcast %cst_41 : f32 to vector<16x1xf32>
    %80 = arith.select %75, %78, %79 : vector<16x1xi1>, vector<16x1xf32>
    %81 = vector.broadcast %80 : vector<16x1xf32> to vector<16x128xf32>
    %82 = arith.mulf %38, %81 : vector<16x128xf32>
    %cst_42 = arith.constant 9.99999971E-10 : f32
    %83 = vector.broadcast %cst_42 : f32 to vector<16x1xf32>
    %84 = arith.cmpf oge, %63, %83 : vector<16x1xf32>
    %85 = arith.extui %84 : vector<16x1xi1> to vector<16x1xi32>
    %86 = arith.sitofp %85 : vector<16x1xi32> to vector<16x1xf32>
    %cst_43 = arith.constant 0.000000e+00 : f32
    %87 = vector.broadcast %cst_43 : f32 to vector<16x1xf32>
    %88 = arith.subf %87, %73 : vector<16x1xf32>
    %cst_44 = arith.constant 3.000000e-01 : f32
    %89 = vector.broadcast %cst_44 : f32 to vector<16x1xf32>
    %90 = arith.divf %88, %89 : vector<16x1xf32>
    %91 = arith.mulf %59, %90 : vector<16x1xf32>
    %92 = math.rsqrt %65 : vector<16x1xf32>
    %cst_45 = arith.constant 2.500000e-01 : f32
    %93 = vector.broadcast %cst_45 : f32 to vector<16x1xf32>
    %94 = arith.mulf %93, %92 : vector<16x1xf32>
    %95 = arith.mulf %91, %94 : vector<16x1xf32>
    %96 = arith.mulf %95, %86 : vector<16x1xf32>
    %97 = vector.broadcast %96 : vector<16x1xf32> to vector<16x128xf32>
    %98 = arith.mulf %97, %82 : vector<16x128xf32>
    %99 = tpu.concatenate %47, %98 in 1 : vector<16x128xf32>, vector<16x128xf32> -> vector<16x256xf32>
    %100 = arith.truncf %99 : vector<16x256xf32> to vector<16x256xbf16>
    %101 = arith.extf %100 : vector<16x256xbf16> to vector<16x256xf32>
    %102 = arith.subf %99, %101 : vector<16x256xf32>
    %103 = arith.truncf %102 : vector<16x256xf32> to vector<16x256xbf16>
    %c0_46 = arith.constant 0 : index
    %c0_47 = arith.constant 0 : index
    %104 = vector.load %arg28[%c0_46, %c0_47] : memref<16x256xf32, #tpu.memory_space<vmem>>, vector<16x256xf32>
    %cst_48 = arith.constant dense<0.000000e+00> : vector<16x256xf32>
    %105 = tpu.matmul %20, %100, %cst_48 {dimension_numbers = #tpu.dot_dimension_numbers<[0], [0], [1], [1], [0, 1, 1, 1], [], []>} : vector<16x16xbf16>, vector<16x256xbf16>, vector<16x256xf32> -> vector<16x256xf32>
    %cst_49 = arith.constant dense<0.000000e+00> : vector<16x256xf32>
    %106 = tpu.matmul %20, %103, %cst_49 {dimension_numbers = #tpu.dot_dimension_numbers<[0], [0], [1], [1], [0, 1, 1, 1], [], []>} : vector<16x16xbf16>, vector<16x256xbf16>, vector<16x256xf32> -> vector<16x256xf32>
    %107 = arith.addf %105, %106 : vector<16x256xf32>
    %108 = arith.addf %104, %107 : vector<16x256xf32>
    %c0_50 = arith.constant 0 : index
    %c0_51 = arith.constant 0 : index
    %109 = vector.load %arg28[%c0_50, %c0_51] : memref<16x256xf32, #tpu.memory_space<vmem>>, vector<16x256xf32>
    tpu.vector_store %arg28[%c0_50, %c0_51], %108 {strides = array<i32>} : memref<16x256xf32, #tpu.memory_space<vmem>>, vector<16x256xf32>,
    %cst_52 = arith.constant 0.000000e+00 : f32
    %110 = vector.broadcast %cst_52 : f32 to vector<16x128xf32>
    %111 = arith.cmpf ogt, %38, %110 : vector<16x128xf32>
    %cst_53 = arith.constant 0.00999999977 : f32
    %112 = vector.broadcast %cst_53 : f32 to vector<16x128xf32>
    %113 = arith.mulf %112, %38 : vector<16x128xf32>
    %114 = arith.select %111, %38, %113 : vector<16x128xi1>, vector<16x128xf32>
    %115 = arith.addf %3, %114 : vector<16x128xf32>
    %c0_54 = arith.constant 0 : index
    %c0_55 = arith.constant 0 : index
    %116 = vector.load %arg23[%c0_54, %c0_55] : memref<16x128xf32, #tpu.memory_space<vmem>>, vector<16x128xf32>
    tpu.vector_store %arg23[%c0_54, %c0_55], %115 {strides = array<i32>} : memref<16x128xf32, #tpu.memory_space<vmem>>, vector<16x128xf32>,
    %c2_i32 = arith.constant 2 : i32
    %117 = arith.cmpi eq, %arg0, %c2_i32 : i32
    %118 = arith.extui %117 : i1 to i32
    %c0_i32_56 = arith.constant 0 : i32
    %119 = arith.cmpi ne, %118, %c0_i32_56 : i32
    scf.if %119 {
      %c0_57 = arith.constant 0 : index
      %c0_58 = arith.constant 0 : index
      %120 = vector.load %arg6[%c0_57, %c0_58] : memref<16x128xf32, #tpu.memory_space<vmem>>, vector<16x128xf32>
      %c0_59 = arith.constant 0 : index
      %c0_60 = arith.constant 0 : index
      %121 = vector.load %arg7[%c0_59, %c0_60] : memref<16x128xf32, #tpu.memory_space<vmem>>, vector<16x128xf32>
      %c0_61 = arith.constant 0 : index
      %c0_62 = arith.constant 0 : index
      %122 = vector.load %arg8[%c0_61, %c0_62] : memref<16x128xf32, #tpu.memory_space<vmem>>, vector<16x128xf32>
      %c0_63 = arith.constant 0 : index
      %c0_64 = arith.constant 0 : index
      %123 = vector.load %arg10[%c0_63, %c0_64] : memref<128x256xf32, #tpu.memory_space<vmem>>, vector<128x256xf32>
      %cst_65 = arith.constant dense<0.000000e+00> : vector<16x256xf32>
      %124 = tpu.matmul %120, %123, %cst_65 {dimension_numbers = #tpu.dot_dimension_numbers<[1], [0], [0], [1], [0, 0, 1, 1], [], []>} : vector<16x128xf32>, vector<128x256xf32>, vector<16x256xf32> -> vector<16x256xf32>
      %c0_66 = arith.constant 0 : index
      %c0_67 = arith.constant 0 : index
      %125 = vector.load %arg11[%c0_66, %c0_67] : memref<1x256xf32, #tpu.memory_space<vmem>>, vector<1x256xf32>
      %126 = vector.broadcast %125 : vector<1x256xf32> to vector<16x256xf32>
      %127 = arith.addf %124, %126 : vector<16x256xf32>
      %c0_68 = arith.constant 0 : index
      %c0_69 = arith.constant 0 : index
      %128 = vector.load %arg14[%c0_68, %c0_69] : memref<128x256xf32, #tpu.memory_space<vmem>>, vector<128x256xf32>
      %cst_70 = arith.constant dense<0.000000e+00> : vector<16x256xf32>
      %129 = tpu.matmul %122, %128, %cst_70 {dimension_numbers = #tpu.dot_dimension_numbers<[1], [0], [0], [1], [0, 0, 1, 1], [], []>} : vector<16x128xf32>, vector<128x256xf32>, vector<16x256xf32> -> vector<16x256xf32>
      %c0_71 = arith.constant 0 : index
      %c0_72 = arith.constant 0 : index
      %130 = vector.load %arg15[%c0_71, %c0_72] : memref<1x256xf32, #tpu.memory_space<vmem>>, vector<1x256xf32>
      %131 = vector.broadcast %130 : vector<1x256xf32> to vector<16x256xf32>
      %132 = arith.addf %129, %131 : vector<16x256xf32>
      %c0_73 = arith.constant 0 : index
      %c256 = arith.constant 256 : index
      %133 = vector.load %arg12[%c0_73, %c256] : memref<128x384xf32, #tpu.memory_space<vmem>>, vector<128x128xf32>
      %cst_74 = arith.constant dense<0.000000e+00> : vector<16x128xf32>
      %134 = tpu.matmul %121, %133, %cst_74 {dimension_numbers = #tpu.dot_dimension_numbers<[1], [0], [0], [1], [0, 0, 1, 1], [], []>} : vector<16x128xf32>, vector<128x128xf32>, vector<16x128xf32> -> vector<16x128xf32>
      %c0_75 = arith.constant 0 : index
      %c256_76 = arith.constant 256 : index
      %135 = vector.load %arg13[%c0_75, %c256_76] : memref<1x384xf32, #tpu.memory_space<vmem>>, vector<1x128xf32>
      %136 = vector.broadcast %135 : vector<1x128xf32> to vector<16x128xf32>
      %137 = arith.addf %134, %136 : vector<16x128xf32>
      %138 = vector.extract_strided_slice %127 {offsets = [0, 0], sizes = [16, 128], strides = [1, 1]} : vector<16x256xf32> to vector<16x128xf32>
      %139 = vector.extract_strided_slice %127 {offsets = [0, 128], sizes = [16, 128], strides = [1, 1]} : vector<16x256xf32> to vector<16x128xf32>
      %140 = vector.extract_strided_slice %132 {offsets = [0, 0], sizes = [16, 128], strides = [1, 1]} : vector<16x256xf32> to vector<16x128xf32>
      %141 = vector.extract_strided_slice %132 {offsets = [0, 128], sizes = [16, 128], strides = [1, 1]} : vector<16x256xf32> to vector<16x128xf32>
      %142 = arith.subf %140, %138 : vector<16x128xf32>
      %c0_77 = arith.constant 0 : index
      %c0_78 = arith.constant 0 : index
      %143 = vector.load %arg28[%c0_77, %c0_78] : memref<16x256xf32, #tpu.memory_space<vmem>>, vector<16x256xf32>
      %144 = vector.extract_strided_slice %143 {offsets = [0, 0], sizes = [16, 128], strides = [1, 1]} : vector<16x256xf32> to vector<16x128xf32>
      %145 = vector.extract_strided_slice %143 {offsets = [0, 128], sizes = [16, 128], strides = [1, 1]} : vector<16x256xf32> to vector<16x128xf32>
      %146 = arith.mulf %142, %144 : vector<16x128xf32>
      %147 = arith.subf %146, %145 : vector<16x128xf32>
      %c0_79 = arith.constant 0 : index
      %c0_80 = arith.constant 0 : index
      %148 = vector.load %arg9[%c0_79, %c0_80] : memref<16x1xf32, #tpu.memory_space<vmem>>, vector<16x1xf32>
      %149 = vector.broadcast %148 : vector<16x1xf32> to vector<16x128xf32>
      %150 = arith.mulf %147, %149 : vector<16x128xf32>
      %151 = arith.addf %139, %150 : vector<16x128xf32>
      %152 = arith.addf %137, %150 : vector<16x128xf32>
      %cst_81 = arith.constant 5.000000e-01 : f32
      %153 = vector.broadcast %cst_81 : f32 to vector<16x128xf32>
      %154 = arith.mulf %153, %150 : vector<16x128xf32>
      %155 = vector.broadcast %148 : vector<16x1xf32> to vector<16x128xf32>
      %156 = arith.mulf %154, %155 : vector<16x128xf32>
      %157 = arith.addf %152, %156 : vector<16x128xf32>
      %158 = arith.mulf %147, %147 : vector<16x128xf32>
      %cst_82 = arith.constant dense<0.000000e+00> : vector<16xf32>
      %159 = vector.multi_reduction <add>, %158, %cst_82 [1] : vector<16x128xf32> to vector<16xf32>
      %160 = vector.shape_cast %159 : vector<16xf32> to vector<16x1xf32>
      %161 = math.sqrt %160 : vector<16x1xf32>
      %cst_83 = arith.constant 9.99999971E-10 : f32
      %162 = vector.broadcast %cst_83 : f32 to vector<16x1xf32>
      %163 = arith.addf %161, %162 : vector<16x1xf32>
      %164 = tpu.reciprocal %163 {approx = true} : vector<16x1xf32> -> vector<16x1xf32>
      %165 = vector.broadcast %164 : vector<16x1xf32> to vector<16x128xf32>
      %166 = arith.mulf %147, %165 : vector<16x128xf32>
      %167 = arith.addf %141, %166 : vector<16x128xf32>
      %cst_84 = arith.constant 0.000000e+00 : f32
      %168 = vector.broadcast %cst_84 : f32 to vector<16x128xf32>
      %169 = arith.cmpf ogt, %151, %168 : vector<16x128xf32>
      %cst_85 = arith.constant 0.00999999977 : f32
      %170 = vector.broadcast %cst_85 : f32 to vector<16x128xf32>
      %171 = arith.mulf %170, %151 : vector<16x128xf32>
      %172 = arith.select %169, %151, %171 : vector<16x128xi1>, vector<16x128xf32>
      %173 = arith.addf %120, %172 : vector<16x128xf32>
      %c0_86 = arith.constant 0 : index
      %c0_87 = arith.constant 0 : index
      %174 = vector.load %arg22[%c0_86, %c0_87] : memref<16x128xf32, #tpu.memory_space<vmem>>, vector<16x128xf32>
      tpu.vector_store %arg22[%c0_86, %c0_87], %173 {strides = array<i32>} : memref<16x128xf32, #tpu.memory_space<vmem>>, vector<16x128xf32>,
      %cst_88 = arith.constant 0.000000e+00 : f32
      %175 = vector.broadcast %cst_88 : f32 to vector<16x128xf32>
      %176 = arith.cmpf ogt, %157, %175 : vector<16x128xf32>
      %cst_89 = arith.constant 0.00999999977 : f32
      %177 = vector.broadcast %cst_89 : f32 to vector<16x128xf32>
      %178 = arith.mulf %177, %157 : vector<16x128xf32>
      %179 = arith.select %176, %157, %178 : vector<16x128xi1>, vector<16x128xf32>
      %180 = arith.addf %121, %179 : vector<16x128xf32>
      %c0_90 = arith.constant 0 : index
      %c0_91 = arith.constant 0 : index
      %181 = vector.load %arg24[%c0_90, %c0_91] : memref<16x128xf32, #tpu.memory_space<vmem>>, vector<16x128xf32>
      tpu.vector_store %arg24[%c0_90, %c0_91], %180 {strides = array<i32>} : memref<16x128xf32, #tpu.memory_space<vmem>>, vector<16x128xf32>,
      %cst_92 = arith.constant 0.000000e+00 : f32
      %182 = vector.broadcast %cst_92 : f32 to vector<16x128xf32>
      %183 = arith.cmpf ogt, %167, %182 : vector<16x128xf32>
      %cst_93 = arith.constant 0.00999999977 : f32
      %184 = vector.broadcast %cst_93 : f32 to vector<16x128xf32>
      %185 = arith.mulf %184, %167 : vector<16x128xf32>
      %186 = arith.select %183, %167, %185 : vector<16x128xi1>, vector<16x128xf32>
      %187 = arith.addf %122, %186 : vector<16x128xf32>
      %c0_94 = arith.constant 0 : index
      %c0_95 = arith.constant 0 : index
      %188 = vector.load %arg25[%c0_94, %c0_95] : memref<16x128xf32, #tpu.memory_space<vmem>>, vector<16x128xf32>
      tpu.vector_store %arg25[%c0_94, %c0_95], %187 {strides = array<i32>} : memref<16x128xf32, #tpu.memory_space<vmem>>, vector<16x128xf32>,
    } else {
    }
    return
  }
  func.func @transform_0(%arg0: i32) -> (i32, i32) {
    %c0_i32 = arith.constant 0 : i32
    %c0_i32_0 = arith.constant 0 : i32
    return %arg0, %c0_i32 : i32, i32
  }
  func.func @transform_1(%arg0: i32) -> (i32, i32) {
    %c0_i32 = arith.constant 0 : i32
    %c0_i32_0 = arith.constant 0 : i32
    return %arg0, %c0_i32 : i32, i32
  }
  func.func @transform_2(%arg0: i32) -> (i32, i32) {
    %c0_i32 = arith.constant 0 : i32
    %c0_i32_0 = arith.constant 0 : i32
    return %arg0, %c0_i32 : i32, i32
  }
  func.func @transform_3(%arg0: i32) -> (i32, i32) {
    %c0_i32 = arith.constant 0 : i32
    %c0_i32_0 = arith.constant 0 : i32
    return %arg0, %c0_i32 : i32, i32
  }
  func.func @transform_4(%arg0: i32) -> (i32, i32) {
    %c0_i32 = arith.constant 0 : i32
    %c0_i32_0 = arith.constant 0 : i32
    return %arg0, %c0_i32 : i32, i32
  }
  func.func @transform_5(%arg0: i32) -> (i32, i32) {
    %c0_i32 = arith.constant 0 : i32
    %c0_i32_0 = arith.constant 0 : i32
    %c0_i32_1 = arith.constant 0 : i32
    return %c0_i32, %c0_i32_0 : i32, i32
  }
  func.func @transform_6(%arg0: i32) -> (i32, i32) {
    %c0_i32 = arith.constant 0 : i32
    %c0_i32_0 = arith.constant 0 : i32
    %c0_i32_1 = arith.constant 0 : i32
    return %c0_i32, %c0_i32_0 : i32, i32
  }
  func.func @transform_7(%arg0: i32) -> (i32, i32) {
    %c0_i32 = arith.constant 0 : i32
    %c0_i32_0 = arith.constant 0 : i32
    %c0_i32_1 = arith.constant 0 : i32
    return %c0_i32, %c0_i32_0 : i32, i32
  }
  func.func @transform_8(%arg0: i32) -> (i32, i32) {
    %c0_i32 = arith.constant 0 : i32
    %c0_i32_0 = arith.constant 0 : i32
    %c0_i32_1 = arith.constant 0 : i32
    return %c0_i32, %c0_i32_0 : i32, i32
  }
  func.func @transform_9(%arg0: i32) -> (i32, i32) {
    %c0_i32 = arith.constant 0 : i32
    %c0_i32_0 = arith.constant 0 : i32
    %c0_i32_1 = arith.constant 0 : i32
    return %c0_i32, %c0_i32_0 : i32, i32
  }
  func.func @transform_10(%arg0: i32) -> (i32, i32) {
    %c0_i32 = arith.constant 0 : i32
    %c0_i32_0 = arith.constant 0 : i32
    %c0_i32_1 = arith.constant 0 : i32
    return %c0_i32, %c0_i32_0 : i32, i32
  }
  func.func @transform_11(%arg0: i32) -> (i32, i32) {
    %c0_i32 = arith.constant 0 : i32
    %c0_i32_0 = arith.constant 0 : i32
    %c0_i32_1 = arith.constant 0 : i32
    return %c0_i32, %c0_i32_0 : i32, i32
  }
  func.func @transform_12(%arg0: i32) -> (i32, i32) {
    %c0_i32 = arith.constant 0 : i32
    %c0_i32_0 = arith.constant 0 : i32
    %c0_i32_1 = arith.constant 0 : i32
    return %c0_i32, %c0_i32_0 : i32, i32
  }
  func.func @transform_13(%arg0: i32) -> (i32, i32) {
    %c0_i32 = arith.constant 0 : i32
    %c0_i32_0 = arith.constant 0 : i32
    %c0_i32_1 = arith.constant 0 : i32
    return %c0_i32, %c0_i32_0 : i32, i32
  }
  func.func @transform_14(%arg0: i32) -> (i32, i32) {
    %c0_i32 = arith.constant 0 : i32
    %c0_i32_0 = arith.constant 0 : i32
    %c0_i32_1 = arith.constant 0 : i32
    return %c0_i32, %c0_i32_0 : i32, i32
  }
  func.func @transform_15(%arg0: i32) -> (i32, i32) {
    %c0_i32 = arith.constant 0 : i32
    %c0_i32_0 = arith.constant 0 : i32
    %c0_i32_1 = arith.constant 0 : i32
    return %c0_i32, %c0_i32_0 : i32, i32
  }
  func.func @transform_16(%arg0: i32) -> (i32, i32) {
    %c0_i32 = arith.constant 0 : i32
    %c0_i32_0 = arith.constant 0 : i32
    %c0_i32_1 = arith.constant 0 : i32
    return %c0_i32, %c0_i32_0 : i32, i32
  }
  func.func @transform_17(%arg0: i32) -> (i32, i32) {
    %c0_i32 = arith.constant 0 : i32
    %c0_i32_0 = arith.constant 0 : i32
    %c0_i32_1 = arith.constant 0 : i32
    return %c0_i32, %c0_i32_0 : i32, i32
  }
  func.func @transform_18(%arg0: i32) -> (i32, i32) {
    %c0_i32 = arith.constant 0 : i32
    %c0_i32_0 = arith.constant 0 : i32
    %c0_i32_1 = arith.constant 0 : i32
    return %c0_i32, %c0_i32_0 : i32, i32
  }
  func.func @transform_19(%arg0: i32) -> (i32, i32) {
    %c0_i32 = arith.constant 0 : i32
    %c0_i32_0 = arith.constant 0 : i32
    %c0_i32_1 = arith.constant 0 : i32
    return %c0_i32, %c0_i32_0 : i32, i32
  }
  func.func @transform_20(%arg0: i32) -> (i32, i32) {
    %c0_i32 = arith.constant 0 : i32
    %c0_i32_0 = arith.constant 0 : i32
    %c0_i32_1 = arith.constant 0 : i32
    return %c0_i32, %c0_i32_0 : i32, i32
  }
  func.func @transform_21(%arg0: i32) -> (i32, i32) {
    %c0_i32 = arith.constant 0 : i32
    %c0_i32_0 = arith.constant 0 : i32
    %c0_i32_1 = arith.constant 0 : i32
    return %c0_i32, %c0_i32_0 : i32, i32
  }
  func.func @transform_22(%arg0: i32) -> (i32, i32) {
    %c0_i32 = arith.constant 0 : i32
    %c0_i32_0 = arith.constant 0 : i32
    return %arg0, %c0_i32 : i32, i32
  }
  func.func @transform_23(%arg0: i32) -> (i32, i32) {
    %c0_i32 = arith.constant 0 : i32
    %c0_i32_0 = arith.constant 0 : i32
    %c0_i32_1 = arith.constant 0 : i32
    return %c0_i32, %c0_i32_0 : i32, i32
  }
  func.func @transform_24(%arg0: i32) -> (i32, i32) {
    %c0_i32 = arith.constant 0 : i32
    %c0_i32_0 = arith.constant 0 : i32
    %c0_i32_1 = arith.constant 0 : i32
    return %c0_i32, %c0_i32_0 : i32, i32
  }
}

</mosaic_0001>

<llo_original>
// kernel: tpu_custom_call.1
$region0: #{tpu_custom_call.1}
  #allocation0 [shape = 'u32[]', space=smem, size = 0x4, offset = 0x4, fixed_abs, tag = 'smem constant byte address 0x4 - core index']
  #allocation1 [shape = 'u32[144,128]{1,0:T(1,128)}', space=vmem, size = 0x12000, scoped, tag = 'internal scratch']
  #allocation2 [shape = 'bf16[16,384]{1,0:T(16,128)(2,1)}', space=vmem, size = 0x3000, scoped, tag = 'scratch operand']
  #allocation3 [shape = 'bf16[16,256]{1,0:T(16,128)(2,1)}', space=vmem, size = 0x2000, scoped, tag = 'scratch operand']
  #allocation4 [shape = 'f32[16,256]{1,0:T(8,128)}', space=vmem, size = 0x4000, scoped, tag = 'scratch operand']
  %s0 = inlined_call_operand.hbm [shape: f32[48,128], index: 0, kind: input, shape index: {}]
  %s1 = inlined_call_operand.vmem [shape: s32[48,1], index: 1, kind: input, shape index: {}]
  %s2 = inlined_call_operand.vmem [shape: s32[48,1], index: 2, kind: input, shape index: {}]
  %s3 = inlined_call_operand.vmem [shape: f32[48,1], index: 3, kind: input, shape index: {}]
  %s4 = inlined_call_operand.vmem [shape: f32[48,1], index: 4, kind: input, shape index: {}]
  %s5 = inlined_call_operand.hbm [shape: f32[16,128], index: 5, kind: input, shape index: {}]
  %s6 = inlined_call_operand.hbm [shape: f32[16,128], index: 6, kind: input, shape index: {}]
  %s7 = inlined_call_operand.hbm [shape: f32[16,128], index: 7, kind: input, shape index: {}]
  %s8 = inlined_call_operand.vmem [shape: f32[16,1], index: 8, kind: input, shape index: {}]
  %s9 = inlined_call_operand.hbm [shape: f32[128,256], index: 9, kind: input, shape index: {}]
  %s10 = inlined_call_operand.vmem [shape: f32[1,256], index: 10, kind: input, shape index: {}]
  %s11 = inlined_call_operand.hbm [shape: f32[128,384], index: 11, kind: input, shape index: {}]
  %s12 = inlined_call_operand.vmem [shape: f32[1,384], index: 12, kind: input, shape index: {}]
  %s13 = inlined_call_operand.vmem [shape: f32[128,256], index: 13, kind: input, shape index: {}]
  %s14 = inlined_call_operand.vmem [shape: f32[1,256], index: 14, kind: input, shape index: {}]
  %s15 = inlined_call_operand.hbm [shape: f32[128,128], index: 15, kind: input, shape index: {}]
  %s16 = inlined_call_operand.vmem [shape: f32[1,128], index: 16, kind: input, shape index: {}]
  %s17 = inlined_call_operand.hbm [shape: f32[128,128], index: 17, kind: input, shape index: {}]
  %s18 = inlined_call_operand.vmem [shape: f32[1,128], index: 18, kind: input, shape index: {}]
  %s19 = inlined_call_operand.hbm [shape: f32[256,128], index: 19, kind: input, shape index: {}]
  %s20 = inlined_call_operand.vmem [shape: f32[1,128], index: 20, kind: input, shape index: {}]
  %s21 = inlined_call_operand.hbm [shape: f32[16,128], index: 21, kind: output, shape index: {0}]
  %s22 = inlined_call_operand.hbm [shape: f32[48,128], index: 22, kind: output, shape index: {1}]
  %s23 = inlined_call_operand.hbm [shape: f32[16,128], index: 23, kind: output, shape index: {2}]
  %s24 = inlined_call_operand.hbm [shape: f32[16,128], index: 24, kind: output, shape index: {3}]
  %25 = xla_tuple %s21, %s22, %s23, %s24
  %s26 = sld [smem:[#allocation0]]
  $region185: #{tpu_custom_call.1} parent=0
    _
  %s28 = ssub.s32 1, %s26
  %s29 = scalar_select 0, %s28, %s26
  $region1: #{tpu_custom_call.1} parent=0
    #allocation5 [shape = 'u8[16384]{0}', space=vmem, size = 0x4000, scoped, tag = 'input window, operand 0']
    #allocation6 [shape = 's32[2]{0}', space=sflag, size = 0x8, scoped, tag = 'scoped memory for tpu_custom_call.1']
    #allocation7 [shape = 's32[2]{0}', space=sflag, size = 0x8, scoped, tag = 'scoped memory for tpu_custom_call.1']
    #allocation8 [shape = 'u8[8192]{0}', space=vmem, size = 0x2000, scoped, tag = 'input window, operand 5, single buffered']
    #allocation9 [shape = 's32[1]{0}', space=sflag, size = 0x4, scoped, tag = 'scoped memory for tpu_custom_call.1']
    #allocation10 [shape = 'u8[8192]{0}', space=vmem, size = 0x2000, scoped, tag = 'input window, operand 6, single buffered']
    #allocation11 [shape = 'u8[8192]{0}', space=vmem, size = 0x2000, scoped, tag = 'input window, operand 7, single buffered']
    #allocation12 [shape = 's32[1]{0}', space=sflag, size = 0x4, scoped, tag = 'scoped memory for tpu_custom_call.1']
    #allocation13 [shape = 'u8[131072]{0}', space=vmem, size = 0x20000, scoped, tag = 'input window, operand 9, single buffered']
    #allocation14 [shape = 'u8[196608]{0}', space=vmem, size = 0x30000, scoped, tag = 'input window, operand 11, single buffered']
    #allocation15 [shape = 's32[1]{0}', space=sflag, size = 0x4, scoped, tag = 'scoped memory for tpu_custom_call.1']
    #allocation16 [shape = 'u8[65536]{0}', space=vmem, size = 0x10000, scoped, tag = 'input window, operand 15, single buffered']
    #allocation17 [shape = 'u8[65536]{0}', space=vmem, size = 0x10000, scoped, tag = 'input window, operand 17, single buffered']
    #allocation18 [shape = 's32[1]{0}', space=sflag, size = 0x4, scoped, tag = 'scoped memory for tpu_custom_call.1']
    #allocation19 [shape = 'u8[131072]{0}', space=vmem, size = 0x20000, scoped, tag = 'input window, operand 19, single buffered']
    #allocation20 [shape = 'u8[8192]{0}', space=vmem, size = 0x2000, scoped, tag = 'output window, operand 0, single buffered']
    #allocation21 [shape = 'u8[16384]{0}', space=vmem, size = 0x4000, scoped, tag = 'output window, operand 1']
    #allocation22 [shape = 's32[2]{0}', space=sflag, size = 0x8, scoped, tag = 'scoped memory for tpu_custom_call.1']
    #allocation23 [shape = 'u8[8192]{0}', space=vmem, size = 0x2000, scoped, tag = 'output window, operand 2, single buffered']
    #allocation24 [shape = 'u8[8192]{0}', space=vmem, size = 0x2000, scoped, tag = 'output window, operand 3, single buffered']
    #allocation25 [shape = 's32[1]{0}', space=sflag, size = 0x4, scoped, tag = 'scoped memory for tpu_custom_call.1']
    %30 = vsyncpa [#allocation6], 0
    %s31 = scalar_lea.sflag [#allocation6], 1
    %32 = vsyncpa %s31, 0
    %33 = vsyncpa [#allocation9], 0
    %34 = vsyncpa [#allocation12], 0
    %35 = vsyncpa [#allocation15], 0
    %36 = vsyncpa [#allocation18], 0
    %37 = vsyncpa [#allocation7], 0
    %38 = vsyncpa [#allocation22], 0
    %s39 = scalar_lea.sflag [#allocation22], 1
    %40 = vsyncpa %s39, 0
    %41 = vsyncpa [#allocation25], 0
    loop: start=0, step=1, limit=5
    $region2: #{tpu_custom_call.1} parent=1 // loop_pre_header
      _
    $region3: #{tpu_custom_call.1} parent=1 // loop_header
      %s43 = sphi 0, %s47
      %p44 = scmp.ge.s32.totalorder %s43, 5
      %s53 = sphi 0, %s55
      %s56 = sphi 0, %s53
      %s57 = sphi 0, %s56
      %s73 = sphi 0, %s57
      %s79 = sphi 0, %s81
      %s82 = sphi 0, %s79
      %s83 = sphi 0, %s82
      %s99 = sphi 0, %s83
      %s105 = sphi 0, %s107
      %s108 = sphi 0, %s105
      %s109 = sphi 0, %s108
      %s125 = sphi 0, %s109
      %s131 = sphi 0, %s133
      %s134 = sphi 0, %s131
      %s135 = sphi 0, %s134
      %s151 = sphi 0, %s135
      %s157 = sphi 0, %s159
      %s160 = sphi 0, %s157
      %s161 = sphi 0, %s160
      %s177 = sphi 0, %s161
      %s181 = sphi 0, %s181
      %s183 = sphi 0, %s181
      %s184 = sphi 0, %s183
      %s198 = sphi 0, %s184
      %s202 = sphi 0, %s202
      %s204 = sphi 0, %s202
      %s205 = sphi 0, %s204
      %s219 = sphi 0, %s205
      %s223 = sphi 0, %s223
      %s225 = sphi 0, %s223
      %s226 = sphi 0, %s225
      %s240 = sphi 0, %s226
      %s244 = sphi 0, %s244
      %s246 = sphi 0, %s244
      %s247 = sphi 0, %s246
      %s261 = sphi 0, %s247
      %s265 = sphi 0, %s265
      %s267 = sphi 0, %s265
      %s268 = sphi 0, %s267
      %s282 = sphi 0, %s268
      %s286 = sphi 0, %s286
      %s288 = sphi 0, %s286
      %s289 = sphi 0, %s288
      %s303 = sphi 0, %s289
      %s307 = sphi 0, %s307
      %s309 = sphi 0, %s307
      %s310 = sphi 0, %s309
      %s324 = sphi 0, %s310
      %s328 = sphi 0, %s328
      %s330 = sphi 0, %s328
      %s331 = sphi 0, %s330
      %s345 = sphi 0, %s331
      %s349 = sphi 0, %s349
      %s351 = sphi 0, %s349
      %s352 = sphi 0, %s351
      %s366 = sphi 0, %s352
      %s370 = sphi 0, %s370
      %s372 = sphi 0, %s370
      %s373 = sphi 0, %s372
      %s387 = sphi 0, %s373
      %s391 = sphi 0, %s391
      %s393 = sphi 0, %s391
      %s394 = sphi 0, %s393
      %s408 = sphi 0, %s394
      %s412 = sphi 0, %s412
      %s414 = sphi 0, %s412
      %s415 = sphi 0, %s414
      %s429 = sphi 0, %s415
      %s433 = sphi 0, %s433
      %s435 = sphi 0, %s433
      %s436 = sphi 0, %s435
      %s450 = sphi 0, %s436
      %s454 = sphi 0, %s454
      %s456 = sphi 0, %s454
      %s457 = sphi 0, %s456
      %s471 = sphi 0, %s457
      %s475 = sphi 0, %s475
      %s477 = sphi 0, %s475
      %s478 = sphi 0, %s477
      %s492 = sphi 0, %s478
      %s496 = sphi 0, %s496
      %s498 = sphi 0, %s496
      %s499 = sphi 0, %s498
      %s513 = sphi 0, %s499
      %s517 = sphi 0, %s517
      %s519 = sphi 0, %s517
      %s520 = sphi 0, %s519
      %s534 = sphi 0, %s520
      %s540 = sphi 0, %s542
      %s543 = sphi 0, %s540
      %s544 = sphi 0, %s543
      %s560 = sphi 0, %s544
      %s564 = sphi 0, %s564
      %s566 = sphi 0, %s564
      %s567 = sphi 0, %s566
      %s581 = sphi 0, %s567
      %s585 = sphi 0, %s585
      %s587 = sphi 0, %s585
      %s588 = sphi 0, %s587
      %s602 = sphi 0, %s588
    $region4: #{tpu_custom_call.1} parent=1 // loop_header_branch
      %46 = sbr.rel (%p44) target = $region8
    $region5: #{tpu_custom_call.1} parent=1 // loop_body
      %s48 = ssub.s32 %s43, 1
      %s49 = ssub.s32 %s43, 2
      %s50 = sadd.s32 %s43, 1
      %s51 = ssub.s32 %s43, %s50
      %p52 = scmp.eq.s32.totalorder %s51, 0
      %s54 = sadd.s32 %s53, 1
      %s55 = scalar_select %p52, %s53, %s54
      %p58 = pneg %p52
      %p59 = scmp.eq.s32.totalorder %s43, 2
      %p60 = por %p58, %p59
      %p61 = scmp.ne.s32.totalorder %s53, %s56
      %p62 = scmp.eq.s32.totalorder %s43, 0
      %p63 = por %p61, %p62
      %p64 = scmp.ne.s32.totalorder %s53, %s56
      %p65 = scmp.eq.s32.totalorder %s48, 2
      %p66 = por %p64, %p65
      %p67 = scmp.ne.s32.totalorder %s56, %s57
      %p68 = scmp.eq.s32.totalorder %s48, 0
      %p69 = por %p67, %p68
      %p70 = scmp.ne.s32.totalorder %s56, %s57
      %p71 = scmp.eq.s32.totalorder %s49, 2
      %p72 = por %p70, %p71
      %p74 = scmp.ne.s32.totalorder %s57, %s73
      %p75 = scmp.eq.s32.totalorder %s49, 0
      %p76 = por %p74, %p75
      %s77 = ssub.s32 %s43, %s50
      %p78 = scmp.eq.s32.totalorder %s77, 0
      %s80 = sadd.s32 %s79, 1
      %s81 = scalar_select %p78, %s79, %s80
      %p84 = pneg %p78
      %p85 = scmp.eq.s32.totalorder %s43, 2
      %p86 = por %p84, %p85
      %p87 = scmp.ne.s32.totalorder %s79, %s82
      %p88 = scmp.eq.s32.totalorder %s43, 0
      %p89 = por %p87, %p88
      %p90 = scmp.ne.s32.totalorder %s79, %s82
      %p91 = scmp.eq.s32.totalorder %s48, 2
      %p92 = por %p90, %p91
      %p93 = scmp.ne.s32.totalorder %s82, %s83
      %p94 = scmp.eq.s32.totalorder %s48, 0
      %p95 = por %p93, %p94
      %p96 = scmp.ne.s32.totalorder %s82, %s83
      %p97 = scmp.eq.s32.totalorder %s49, 2
      %p98 = por %p96, %p97
      %p100 = scmp.ne.s32.totalorder %s83, %s99
      %p101 = scmp.eq.s32.totalorder %s49, 0
      %p102 = por %p100, %p101
      %s103 = ssub.s32 %s43, %s50
      %p104 = scmp.eq.s32.totalorder %s103, 0
      %s106 = sadd.s32 %s105, 1
      %s107 = scalar_select %p104, %s105, %s106
      %p110 = pneg %p104
      %p111 = scmp.eq.s32.totalorder %s43, 2
      %p112 = por %p110, %p111
      %p113 = scmp.ne.s32.totalorder %s105, %s108
      %p114 = scmp.eq.s32.totalorder %s43, 0
      %p115 = por %p113, %p114
      %p116 = scmp.ne.s32.totalorder %s105, %s108
      %p117 = scmp.eq.s32.totalorder %s48, 2
      %p118 = por %p116, %p117
      %p119 = scmp.ne.s32.totalorder %s108, %s109
      %p120 = scmp.eq.s32.totalorder %s48, 0
      %p121 = por %p119, %p120
      %p122 = scmp.ne.s32.totalorder %s108, %s109
      %p123 = scmp.eq.s32.totalorder %s49, 2
      %p124 = por %p122, %p123
      %p126 = scmp.ne.s32.totalorder %s109, %s125
      %p127 = scmp.eq.s32.totalorder %s49, 0
      %p128 = por %p126, %p127
      %s129 = ssub.s32 %s43, %s50
      %p130 = scmp.eq.s32.totalorder %s129, 0
      %s132 = sadd.s32 %s131, 1
      %s133 = scalar_select %p130, %s131, %s132
      %p136 = pneg %p130
      %p137 = scmp.eq.s32.totalorder %s43, 2
      %p138 = por %p136, %p137
      %p139 = scmp.ne.s32.totalorder %s131, %s134
      %p140 = scmp.eq.s32.totalorder %s43, 0
      %p141 = por %p139, %p140
      %p142 = scmp.ne.s32.totalorder %s131, %s134
      %p143 = scmp.eq.s32.totalorder %s48, 2
      %p144 = por %p142, %p143
      %p145 = scmp.ne.s32.totalorder %s134, %s135
      %p146 = scmp.eq.s32.totalorder %s48, 0
      %p147 = por %p145, %p146
      %p148 = scmp.ne.s32.totalorder %s134, %s135
      %p149 = scmp.eq.s32.totalorder %s49, 2
      %p150 = por %p148, %p149
      %p152 = scmp.ne.s32.totalorder %s135, %s151
      %p153 = scmp.eq.s32.totalorder %s49, 0
      %p154 = por %p152, %p153
      %s155 = ssub.s32 %s43, %s50
      %p156 = scmp.eq.s32.totalorder %s155, 0
      %s158 = sadd.s32 %s157, 1
      %s159 = scalar_select %p156, %s157, %s158
      %p162 = pneg %p156
      %p163 = scmp.eq.s32.totalorder %s43, 2
      %p164 = por %p162, %p163
      %p165 = scmp.ne.s32.totalorder %s157, %s160
      %p166 = scmp.eq.s32.totalorder %s43, 0
      %p167 = por %p165, %p166
      %p168 = scmp.ne.s32.totalorder %s157, %s160
      %p169 = scmp.eq.s32.totalorder %s48, 2
      %p170 = por %p168, %p169
      %p171 = scmp.ne.s32.totalorder %s160, %s161
      %p172 = scmp.eq.s32.totalorder %s48, 0
      %p173 = por %p171, %p172
      %p174 = scmp.ne.s32.totalorder %s160, %s161
      %p175 = scmp.eq.s32.totalorder %s49, 2
      %p176 = por %p174, %p175
      %p178 = scmp.ne.s32.totalorder %s161, %s177
      %p179 = scmp.eq.s32.totalorder %s49, 0
      %p180 = por %p178, %p179
      %s182 = sadd.s32 %s181, 1
      %p185 = scmp.eq.s32.totalorder %s43, 2
      %p186 = scmp.ne.s32.totalorder %s181, %s183
      %p187 = scmp.eq.s32.totalorder %s43, 0
      %p188 = por %p186, %p187
      %p189 = scmp.ne.s32.totalorder %s181, %s183
      %p190 = scmp.eq.s32.totalorder %s48, 2
      %p191 = por %p189, %p190
      %p192 = scmp.ne.s32.totalorder %s183, %s184
      %p193 = scmp.eq.s32.totalorder %s48, 0
      %p194 = por %p192, %p193
      %p195 = scmp.ne.s32.totalorder %s183, %s184
      %p196 = scmp.eq.s32.totalorder %s49, 2
      %p197 = por %p195, %p196
      %p199 = scmp.ne.s32.totalorder %s184, %s198
      %p200 = scmp.eq.s32.totalorder %s49, 0
      %p201 = por %p199, %p200
      %s203 = sadd.s32 %s202, 1
      %p206 = scmp.eq.s32.totalorder %s43, 2
      %p207 = scmp.ne.s32.totalorder %s202, %s204
      %p208 = scmp.eq.s32.totalorder %s43, 0
      %p209 = por %p207, %p208
      %p210 = scmp.ne.s32.totalorder %s202, %s204
      %p211 = scmp.eq.s32.totalorder %s48, 2
      %p212 = por %p210, %p211
      %p213 = scmp.ne.s32.totalorder %s204, %s205
      %p214 = scmp.eq.s32.totalorder %s48, 0
      %p215 = por %p213, %p214
      %p216 = scmp.ne.s32.totalorder %s204, %s205
      %p217 = scmp.eq.s32.totalorder %s49, 2
      %p218 = por %p216, %p217
      %p220 = scmp.ne.s32.totalorder %s205, %s219
      %p221 = scmp.eq.s32.totalorder %s49, 0
      %p222 = por %p220, %p221
      %s224 = sadd.s32 %s223, 1
      %p227 = scmp.eq.s32.totalorder %s43, 2
      %p228 = scmp.ne.s32.totalorder %s223, %s225
      %p229 = scmp.eq.s32.totalorder %s43, 0
      %p230 = por %p228, %p229
      %p231 = scmp.ne.s32.totalorder %s223, %s225
      %p232 = scmp.eq.s32.totalorder %s48, 2
      %p233 = por %p231, %p232
      %p234 = scmp.ne.s32.totalorder %s225, %s226
      %p235 = scmp.eq.s32.totalorder %s48, 0
      %p236 = por %p234, %p235
      %p237 = scmp.ne.s32.totalorder %s225, %s226
      %p238 = scmp.eq.s32.totalorder %s49, 2
      %p239 = por %p237, %p238
      %p241 = scmp.ne.s32.totalorder %s226, %s240
      %p242 = scmp.eq.s32.totalorder %s49, 0
      %p243 = por %p241, %p242
      %s245 = sadd.s32 %s244, 1
      %p248 = scmp.eq.s32.totalorder %s43, 2
      %p249 = scmp.ne.s32.totalorder %s244, %s246
      %p250 = scmp.eq.s32.totalorder %s43, 0
      %p251 = por %p249, %p250
      %p252 = scmp.ne.s32.totalorder %s244, %s246
      %p253 = scmp.eq.s32.totalorder %s48, 2
      %p254 = por %p252, %p253
      %p255 = scmp.ne.s32.totalorder %s246, %s247
      %p256 = scmp.eq.s32.totalorder %s48, 0
      %p257 = por %p255, %p256
      %p258 = scmp.ne.s32.totalorder %s246, %s247
      %p259 = scmp.eq.s32.totalorder %s49, 2
      %p260 = por %p258, %p259
      %p262 = scmp.ne.s32.totalorder %s247, %s261
      %p263 = scmp.eq.s32.totalorder %s49, 0
      %p264 = por %p262, %p263
      %s266 = sadd.s32 %s265, 1
      %p269 = scmp.eq.s32.totalorder %s43, 2
      %p270 = scmp.ne.s32.totalorder %s265, %s267
      %p271 = scmp.eq.s32.totalorder %s43, 0
      %p272 = por %p270, %p271
      %p273 = scmp.ne.s32.totalorder %s265, %s267
      %p274 = scmp.eq.s32.totalorder %s48, 2
      %p275 = por %p273, %p274
      %p276 = scmp.ne.s32.totalorder %s267, %s268
      %p277 = scmp.eq.s32.totalorder %s48, 0
      %p278 = por %p276, %p277
      %p279 = scmp.ne.s32.totalorder %s267, %s268
      %p280 = scmp.eq.s32.totalorder %s49, 2
      %p281 = por %p279, %p280
      %p283 = scmp.ne.s32.totalorder %s268, %s282
      %p284 = scmp.eq.s32.totalorder %s49, 0
      %p285 = por %p283, %p284
      %s287 = sadd.s32 %s286, 1
      %p290 = scmp.eq.s32.totalorder %s43, 2
      %p291 = scmp.ne.s32.totalorder %s286, %s288
      %p292 = scmp.eq.s32.totalorder %s43, 0
      %p293 = por %p291, %p292
      %p294 = scmp.ne.s32.totalorder %s286, %s288
      %p295 = scmp.eq.s32.totalorder %s48, 2
      %p296 = por %p294, %p295
      %p297 = scmp.ne.s32.totalorder %s288, %s289
      %p298 = scmp.eq.s32.totalorder %s48, 0
      %p299 = por %p297, %p298
      %p300 = scmp.ne.s32.totalorder %s288, %s289
      %p301 = scmp.eq.s32.totalorder %s49, 2
      %p302 = por %p300, %p301
      %p304 = scmp.ne.s32.totalorder %s289, %s303
      %p305 = scmp.eq.s32.totalorder %s49, 0
      %p306 = por %p304, %p305
      %s308 = sadd.s32 %s307, 1
      %p311 = scmp.eq.s32.totalorder %s43, 2
      %p312 = scmp.ne.s32.totalorder %s307, %s309
      %p313 = scmp.eq.s32.totalorder %s43, 0
      %p314 = por %p312, %p313
      %p315 = scmp.ne.s32.totalorder %s307, %s309
      %p316 = scmp.eq.s32.totalorder %s48, 2
      %p317 = por %p315, %p316
      %p318 = scmp.ne.s32.totalorder %s309, %s310
      %p319 = scmp.eq.s32.totalorder %s48, 0
      %p320 = por %p318, %p319
      %p321 = scmp.ne.s32.totalorder %s309, %s310
      %p322 = scmp.eq.s32.totalorder %s49, 2
      %p323 = por %p321, %p322
      %p325 = scmp.ne.s32.totalorder %s310, %s324
      %p326 = scmp.eq.s32.totalorder %s49, 0
      %p327 = por %p325, %p326
      %s329 = sadd.s32 %s328, 1
      %p332 = scmp.eq.s32.totalorder %s43, 2
      %p333 = scmp.ne.s32.totalorder %s328, %s330
      %p334 = scmp.eq.s32.totalorder %s43, 0
      %p335 = por %p333, %p334
      %p336 = scmp.ne.s32.totalorder %s328, %s330
      %p337 = scmp.eq.s32.totalorder %s48, 2
      %p338 = por %p336, %p337
      %p339 = scmp.ne.s32.totalorder %s330, %s331
      %p340 = scmp.eq.s32.totalorder %s48, 0
      %p341 = por %p339, %p340
      %p342 = scmp.ne.s32.totalorder %s330, %s331
      %p343 = scmp.eq.s32.totalorder %s49, 2
      %p344 = por %p342, %p343
      %p346 = scmp.ne.s32.totalorder %s331, %s345
      %p347 = scmp.eq.s32.totalorder %s49, 0
      %p348 = por %p346, %p347
      %s350 = sadd.s32 %s349, 1
      %p353 = scmp.eq.s32.totalorder %s43, 2
      %p354 = scmp.ne.s32.totalorder %s349, %s351
      %p355 = scmp.eq.s32.totalorder %s43, 0
      %p356 = por %p354, %p355
      %p357 = scmp.ne.s32.totalorder %s349, %s351
      %p358 = scmp.eq.s32.totalorder %s48, 2
      %p359 = por %p357, %p358
      %p360 = scmp.ne.s32.totalorder %s351, %s352
      %p361 = scmp.eq.s32.totalorder %s48, 0
      %p362 = por %p360, %p361
      %p363 = scmp.ne.s32.totalorder %s351, %s352
      %p364 = scmp.eq.s32.totalorder %s49, 2
      %p365 = por %p363, %p364
      %p367 = scmp.ne.s32.totalorder %s352, %s366
      %p368 = scmp.eq.s32.totalorder %s49, 0
      %p369 = por %p367, %p368
      %s371 = sadd.s32 %s370, 1
      %p374 = scmp.eq.s32.totalorder %s43, 2
      %p375 = scmp.ne.s32.totalorder %s370, %s372
      %p376 = scmp.eq.s32.totalorder %s43, 0
      %p377 = por %p375, %p376
      %p378 = scmp.ne.s32.totalorder %s370, %s372
      %p379 = scmp.eq.s32.totalorder %s48, 2
      %p380 = por %p378, %p379
      %p381 = scmp.ne.s32.totalorder %s372, %s373
      %p382 = scmp.eq.s32.totalorder %s48, 0
      %p383 = por %p381, %p382
      %p384 = scmp.ne.s32.totalorder %s372, %s373
      %p385 = scmp.eq.s32.totalorder %s49, 2
      %p386 = por %p384, %p385
      %p388 = scmp.ne.s32.totalorder %s373, %s387
      %p389 = scmp.eq.s32.totalorder %s49, 0
      %p390 = por %p388, %p389
      %s392 = sadd.s32 %s391, 1
      %p395 = scmp.eq.s32.totalorder %s43, 2
      %p396 = scmp.ne.s32.totalorder %s391, %s393
      %p397 = scmp.eq.s32.totalorder %s43, 0
      %p398 = por %p396, %p397
      %p399 = scmp.ne.s32.totalorder %s391, %s393
      %p400 = scmp.eq.s32.totalorder %s48, 2
      %p401 = por %p399, %p400
      %p402 = scmp.ne.s32.totalorder %s393, %s394
      %p403 = scmp.eq.s32.totalorder %s48, 0
      %p404 = por %p402, %p403
      %p405 = scmp.ne.s32.totalorder %s393, %s394
      %p406 = scmp.eq.s32.totalorder %s49, 2
      %p407 = por %p405, %p406
      %p409 = scmp.ne.s32.totalorder %s394, %s408
      %p410 = scmp.eq.s32.totalorder %s49, 0
      %p411 = por %p409, %p410
      %s413 = sadd.s32 %s412, 1
      %p416 = scmp.eq.s32.totalorder %s43, 2
      %p417 = scmp.ne.s32.totalorder %s412, %s414
      %p418 = scmp.eq.s32.totalorder %s43, 0
      %p419 = por %p417, %p418
      %p420 = scmp.ne.s32.totalorder %s412, %s414
      %p421 = scmp.eq.s32.totalorder %s48, 2
      %p422 = por %p420, %p421
      %p423 = scmp.ne.s32.totalorder %s414, %s415
      %p424 = scmp.eq.s32.totalorder %s48, 0
      %p425 = por %p423, %p424
      %p426 = scmp.ne.s32.totalorder %s414, %s415
      %p427 = scmp.eq.s32.totalorder %s49, 2
      %p428 = por %p426, %p427
      %p430 = scmp.ne.s32.totalorder %s415, %s429
      %p431 = scmp.eq.s32.totalorder %s49, 0
      %p432 = por %p430, %p431
      %s434 = sadd.s32 %s433, 1
      %p437 = scmp.eq.s32.totalorder %s43, 2
      %p438 = scmp.ne.s32.totalorder %s433, %s435
      %p439 = scmp.eq.s32.totalorder %s43, 0
      %p440 = por %p438, %p439
      %p441 = scmp.ne.s32.totalorder %s433, %s435
      %p442 = scmp.eq.s32.totalorder %s48, 2
      %p443 = por %p441, %p442
      %p444 = scmp.ne.s32.totalorder %s435, %s436
      %p445 = scmp.eq.s32.totalorder %s48, 0
      %p446 = por %p444, %p445
      %p447 = scmp.ne.s32.totalorder %s435, %s436
      %p448 = scmp.eq.s32.totalorder %s49, 2
      %p449 = por %p447, %p448
      %p451 = scmp.ne.s32.totalorder %s436, %s450
      %p452 = scmp.eq.s32.totalorder %s49, 0
      %p453 = por %p451, %p452
      %s455 = sadd.s32 %s454, 1
      %p458 = scmp.eq.s32.totalorder %s43, 2
      %p459 = scmp.ne.s32.totalorder %s454, %s456
      %p460 = scmp.eq.s32.totalorder %s43, 0
      %p461 = por %p459, %p460
      %p462 = scmp.ne.s32.totalorder %s454, %s456
      %p463 = scmp.eq.s32.totalorder %s48, 2
      %p464 = por %p462, %p463
      %p465 = scmp.ne.s32.totalorder %s456, %s457
      %p466 = scmp.eq.s32.totalorder %s48, 0
      %p467 = por %p465, %p466
      %p468 = scmp.ne.s32.totalorder %s456, %s457
      %p469 = scmp.eq.s32.totalorder %s49, 2
      %p470 = por %p468, %p469
      %p472 = scmp.ne.s32.totalorder %s457, %s471
      %p473 = scmp.eq.s32.totalorder %s49, 0
      %p474 = por %p472, %p473
      %s476 = sadd.s32 %s475, 1
      %p479 = scmp.eq.s32.totalorder %s43, 2
      %p480 = scmp.ne.s32.totalorder %s475, %s477
      %p481 = scmp.eq.s32.totalorder %s43, 0
      %p482 = por %p480, %p481
      %p483 = scmp.ne.s32.totalorder %s475, %s477
      %p484 = scmp.eq.s32.totalorder %s48, 2
      %p485 = por %p483, %p484
      %p486 = scmp.ne.s32.totalorder %s477, %s478
      %p487 = scmp.eq.s32.totalorder %s48, 0
      %p488 = por %p486, %p487
      %p489 = scmp.ne.s32.totalorder %s477, %s478
      %p490 = scmp.eq.s32.totalorder %s49, 2
      %p491 = por %p489, %p490
      %p493 = scmp.ne.s32.totalorder %s478, %s492
      %p494 = scmp.eq.s32.totalorder %s49, 0
      %p495 = por %p493, %p494
      %s497 = sadd.s32 %s496, 1
      %p500 = scmp.eq.s32.totalorder %s43, 2
      %p501 = scmp.ne.s32.totalorder %s496, %s498
      %p502 = scmp.eq.s32.totalorder %s43, 0
      %p503 = por %p501, %p502
      %p504 = scmp.ne.s32.totalorder %s496, %s498
      %p505 = scmp.eq.s32.totalorder %s48, 2
      %p506 = por %p504, %p505
      %p507 = scmp.ne.s32.totalorder %s498, %s499
      %p508 = scmp.eq.s32.totalorder %s48, 0
      %p509 = por %p507, %p508
      %p510 = scmp.ne.s32.totalorder %s498, %s499
      %p511 = scmp.eq.s32.totalorder %s49, 2
      %p512 = por %p510, %p511
      %p514 = scmp.ne.s32.totalorder %s499, %s513
      %p515 = scmp.eq.s32.totalorder %s49, 0
      %p516 = por %p514, %p515
      %s518 = sadd.s32 %s517, 1
      %p521 = scmp.eq.s32.totalorder %s43, 2
      %p522 = scmp.ne.s32.totalorder %s517, %s519
      %p523 = scmp.eq.s32.totalorder %s43, 0
      %p524 = por %p522, %p523
      %p525 = scmp.ne.s32.totalorder %s517, %s519
      %p526 = scmp.eq.s32.totalorder %s48, 2
      %p527 = por %p525, %p526
      %p528 = scmp.ne.s32.totalorder %s519, %s520
      %p529 = scmp.eq.s32.totalorder %s48, 0
      %p530 = por %p528, %p529
      %p531 = scmp.ne.s32.totalorder %s519, %s520
      %p532 = scmp.eq.s32.totalorder %s49, 2
      %p533 = por %p531, %p532
      %p535 = scmp.ne.s32.totalorder %s520, %s534
      %p536 = scmp.eq.s32.totalorder %s49, 0
      %p537 = por %p535, %p536
      %s538 = ssub.s32 %s43, %s50
      %p539 = scmp.eq.s32.totalorder %s538, 0
      %s541 = sadd.s32 %s540, 1
      %s542 = scalar_select %p539, %s540, %s541
      %p545 = pneg %p539
      %p546 = scmp.eq.s32.totalorder %s43, 2
      %p547 = por %p545, %p546
      %p548 = scmp.ne.s32.totalorder %s540, %s543
      %p549 = scmp.eq.s32.totalorder %s43, 0
      %p550 = por %p548, %p549
      %p551 = scmp.ne.s32.totalorder %s540, %s543
      %p552 = scmp.eq.s32.totalorder %s48, 2
      %p553 = por %p551, %p552
      %p554 = scmp.ne.s32.totalorder %s543, %s544
      %p555 = scmp.eq.s32.totalorder %s48, 0
      %p556 = por %p554, %p555
      %p557 = scmp.ne.s32.totalorder %s543, %s544
      %p558 = scmp.eq.s32.totalorder %s49, 2
      %p559 = por %p557, %p558
      %p561 = scmp.ne.s32.totalorder %s544, %s560
      %p562 = scmp.eq.s32.totalorder %s49, 0
      %p563 = por %p561, %p562
      %s565 = sadd.s32 %s564, 1
      %p568 = scmp.eq.s32.totalorder %s43, 2
      %p569 = scmp.ne.s32.totalorder %s564, %s566
      %p570 = scmp.eq.s32.totalorder %s43, 0
      %p571 = por %p569, %p570
      %p572 = scmp.ne.s32.totalorder %s564, %s566
      %p573 = scmp.eq.s32.totalorder %s48, 2
      %p574 = por %p572, %p573
      %p575 = scmp.ne.s32.totalorder %s566, %s567
      %p576 = scmp.eq.s32.totalorder %s48, 0
      %p577 = por %p575, %p576
      %p578 = scmp.ne.s32.totalorder %s566, %s567
      %p579 = scmp.eq.s32.totalorder %s49, 2
      %p580 = por %p578, %p579
      %p582 = scmp.ne.s32.totalorder %s567, %s581
      %p583 = scmp.eq.s32.totalorder %s49, 0
      %p584 = por %p582, %p583
      %s586 = sadd.s32 %s585, 1
      %p589 = scmp.eq.s32.totalorder %s43, 2
      %p590 = scmp.ne.s32.totalorder %s585, %s587
      %p591 = scmp.eq.s32.totalorder %s43, 0
      %p592 = por %p590, %p591
      %p593 = scmp.ne.s32.totalorder %s585, %s587
      %p594 = scmp.eq.s32.totalorder %s48, 2
      %p595 = por %p593, %p594
      %p596 = scmp.ne.s32.totalorder %s587, %s588
      %p597 = scmp.eq.s32.totalorder %s48, 0
      %p598 = por %p596, %p597
      %p599 = scmp.ne.s32.totalorder %s587, %s588
      %p600 = scmp.eq.s32.totalorder %s49, 2
      %p601 = por %p599, %p600
      %p603 = scmp.ne.s32.totalorder %s588, %s602
      %p604 = scmp.eq.s32.totalorder %s49, 0
      %p605 = por %p603, %p604
      %p606 = scmp.le.s32.totalorder 1, %s43
      %p607 = scmp.lt.s32.totalorder %s43, 4
      %p608 = pnand %p606, %p607
      %p609 = pneg %p608
      // Predicated region
      $region9: #{tpu_custom_call.1} parent=5 // pred_check
        _
      $region10: #{tpu_custom_call.1} parent=5 // pred_check_branch
        %611 = sbr.rel (%p608) target = $region12
      $region11: #{tpu_custom_call.1} parent=5 // pred_region
        %s612 = ssub.s32 %s43, 1
        // Predicated region
        $region13: #{tpu_custom_call.1} parent=11 // pred_check
          %p613 = pneg %p194
        $region14: #{tpu_custom_call.1} parent=11 // pred_check_branch
          %615 = sbr.rel (%p613) target = $region16
        $region15: #{tpu_custom_call.1} parent=11 // pred_region
          %s617 = ssub.s32 256, 256
          %618 = vsyncadd [#allocation9], %s617
          %s619 = sshll.u32 [#allocation8], 4
          %s620 = int_to_ptr.vmem [resolvable:$true] %s619
          %625 = dma.hbm_to_vmem [thread:$0]  %s5, 256, %s620, [#allocation9], 128, 128, 8
        $region16: #{tpu_custom_call.1} parent=11 // pred_fallthru
          _
        // Predicated region
        $region17: #{tpu_custom_call.1} parent=11 // pred_check
          %p626 = pneg %p215
        $region18: #{tpu_custom_call.1} parent=11 // pred_check_branch
          %628 = sbr.rel (%p626) target = $region20
        $region19: #{tpu_custom_call.1} parent=11 // pred_region
          %s630 = ssub.s32 256, 256
          %631 = vsyncadd [#allocation9], %s630
          %s632 = sshll.u32 [#allocation10], 4
          %s633 = int_to_ptr.vmem [resolvable:$true] %s632
          %638 = dma.hbm_to_vmem [thread:$0]  %s6, 256, %s633, [#allocation9], 128, 128, 8
        $region20: #{tpu_custom_call.1} parent=11 // pred_fallthru
          _
        // Predicated region
        $region21: #{tpu_custom_call.1} parent=11 // pred_check
          %p639 = pneg %p236
        $region22: #{tpu_custom_call.1} parent=11 // pred_check_branch
          %641 = sbr.rel (%p639) target = $region24
        $region23: #{tpu_custom_call.1} parent=11 // pred_region
          %s643 = ssub.s32 256, 256
          %644 = vsyncadd [#allocation12], %s643
          %s645 = sshll.u32 [#allocation11], 4
          %s646 = int_to_ptr.vmem [resolvable:$true] %s645
          %651 = dma.hbm_to_vmem [thread:$0]  %s7, 256, %s646, [#allocation12], 128, 128, 8
        $region24: #{tpu_custom_call.1} parent=11 // pred_fallthru
          _
        // Predicated region
        $region25: #{tpu_custom_call.1} parent=11 // pred_check
          %p652 = pneg %p257
        $region26: #{tpu_custom_call.1} parent=11 // pred_check_branch
          %654 = sbr.rel (%p652) target = $region28
        $region27: #{tpu_custom_call.1} parent=11 // pred_region
          _
        $region28: #{tpu_custom_call.1} parent=11 // pred_fallthru
          _
        // Predicated region
        $region29: #{tpu_custom_call.1} parent=11 // pred_check
          %p655 = pneg %p278
        $region30: #{tpu_custom_call.1} parent=11 // pred_check_branch
          %657 = sbr.rel (%p655) target = $region32
        $region31: #{tpu_custom_call.1} parent=11 // pred_region
          %s659 = ssub.s32 4096, 4096
          %660 = vsyncadd [#allocation12], %s659
          %s661 = sshll.u32 [#allocation13], 4
          %s662 = int_to_ptr.vmem [resolvable:$true] %s661
          %667 = dma.hbm_to_vmem [thread:$0]  %s9, 4096, %s662, [#allocation12], 256, 256, 16
        $region32: #{tpu_custom_call.1} parent=11 // pred_fallthru
          _
        // Predicated region
        $region33: #{tpu_custom_call.1} parent=11 // pred_check
          %p668 = pneg %p299
        $region34: #{tpu_custom_call.1} parent=11 // pred_check_branch
          %670 = sbr.rel (%p668) target = $region36
        $region35: #{tpu_custom_call.1} parent=11 // pred_region
          _
        $region36: #{tpu_custom_call.1} parent=11 // pred_fallthru
          _
        // Predicated region
        $region37: #{tpu_custom_call.1} parent=11 // pred_check
          %p671 = pneg %p320
        $region38: #{tpu_custom_call.1} parent=11 // pred_check_branch
          %673 = sbr.rel (%p671) target = $region40
        $region39: #{tpu_custom_call.1} parent=11 // pred_region
          %s675 = ssub.s32 6144, 6144
          %676 = vsyncadd [#allocation15], %s675
          %s677 = sshll.u32 [#allocation14], 4
          %s678 = int_to_ptr.vmem [resolvable:$true] %s677
          %683 = dma.hbm_to_vmem [thread:$0]  %s11, 6144, %s678, [#allocation15], 384, 384, 24
        $region40: #{tpu_custom_call.1} parent=11 // pred_fallthru
          _
        // Predicated region
        $region41: #{tpu_custom_call.1} parent=11 // pred_check
          %p684 = pneg %p341
        $region42: #{tpu_custom_call.1} parent=11 // pred_check_branch
          %686 = sbr.rel (%p684) target = $region44
        $region43: #{tpu_custom_call.1} parent=11 // pred_region
          _
        $region44: #{tpu_custom_call.1} parent=11 // pred_fallthru
          _
        // Predicated region
        $region45: #{tpu_custom_call.1} parent=11 // pred_check
          %p687 = pneg %p362
        $region46: #{tpu_custom_call.1} parent=11 // pred_check_branch
          %689 = sbr.rel (%p687) target = $region48
        $region47: #{tpu_custom_call.1} parent=11 // pred_region
          _
        $region48: #{tpu_custom_call.1} parent=11 // pred_fallthru
          _
        // Predicated region
        $region49: #{tpu_custom_call.1} parent=11 // pred_check
          %p690 = pneg %p383
        $region50: #{tpu_custom_call.1} parent=11 // pred_check_branch
          %692 = sbr.rel (%p690) target = $region52
        $region51: #{tpu_custom_call.1} parent=11 // pred_region
          _
        $region52: #{tpu_custom_call.1} parent=11 // pred_fallthru
          _
        // Predicated region
        $region53: #{tpu_custom_call.1} parent=11 // pred_check
          %p693 = pneg %p404
        $region54: #{tpu_custom_call.1} parent=11 // pred_check_branch
          %695 = sbr.rel (%p693) target = $region56
        $region55: #{tpu_custom_call.1} parent=11 // pred_region
          %s697 = ssub.s32 2048, 2048
          %698 = vsyncadd [#allocation15], %s697
          %s699 = sshll.u32 [#allocation16], 4
          %s700 = int_to_ptr.vmem [resolvable:$true] %s699
          %705 = dma.hbm_to_vmem [thread:$0]  %s15, 2048, %s700, [#allocation15], 128, 128, 8
        $region56: #{tpu_custom_call.1} parent=11 // pred_fallthru
          _
        // Predicated region
        $region57: #{tpu_custom_call.1} parent=11 // pred_check
          %p706 = pneg %p425
        $region58: #{tpu_custom_call.1} parent=11 // pred_check_branch
          %708 = sbr.rel (%p706) target = $region60
        $region59: #{tpu_custom_call.1} parent=11 // pred_region
          _
        $region60: #{tpu_custom_call.1} parent=11 // pred_fallthru
          _
        // Predicated region
        $region61: #{tpu_custom_call.1} parent=11 // pred_check
          %p709 = pneg %p446
        $region62: #{tpu_custom_call.1} parent=11 // pred_check_branch
          %711 = sbr.rel (%p709) target = $region64
        $region63: #{tpu_custom_call.1} parent=11 // pred_region
          %s713 = ssub.s32 2048, 2048
          %714 = vsyncadd [#allocation18], %s713
          %s715 = sshll.u32 [#allocation17], 4
          %s716 = int_to_ptr.vmem [resolvable:$true] %s715
          %721 = dma.hbm_to_vmem [thread:$0]  %s17, 2048, %s716, [#allocation18], 128, 128, 8
        $region64: #{tpu_custom_call.1} parent=11 // pred_fallthru
          _
        // Predicated region
        $region65: #{tpu_custom_call.1} parent=11 // pred_check
          %p722 = pneg %p467
        $region66: #{tpu_custom_call.1} parent=11 // pred_check_branch
          %724 = sbr.rel (%p722) target = $region68
        $region67: #{tpu_custom_call.1} parent=11 // pred_region
          _
        $region68: #{tpu_custom_call.1} parent=11 // pred_fallthru
          _
        // Predicated region
        $region69: #{tpu_custom_call.1} parent=11 // pred_check
          %p725 = pneg %p488
        $region70: #{tpu_custom_call.1} parent=11 // pred_check_branch
          %727 = sbr.rel (%p725) target = $region72
        $region71: #{tpu_custom_call.1} parent=11 // pred_region
          %s729 = ssub.s32 4096, 4096
          %730 = vsyncadd [#allocation18], %s729
          %s731 = sshll.u32 [#allocation19], 4
          %s732 = int_to_ptr.vmem [resolvable:$true] %s731
          %737 = dma.hbm_to_vmem [thread:$0]  %s19, 4096, %s732, [#allocation18], 128, 128, 8
        $region72: #{tpu_custom_call.1} parent=11 // pred_fallthru
          _
        // Predicated region
        $region73: #{tpu_custom_call.1} parent=11 // pred_check
          %p738 = pneg %p509
        $region74: #{tpu_custom_call.1} parent=11 // pred_check_branch
          %740 = sbr.rel (%p738) target = $region76
        $region75: #{tpu_custom_call.1} parent=11 // pred_region
          _
        $region76: #{tpu_custom_call.1} parent=11 // pred_fallthru
          _
      $region12: #{tpu_custom_call.1} parent=5 // pred_fallthru
        _
      %p741 = scmp.lt.s32.totalorder %s43, 3
      // Predicated region
      $region77: #{tpu_custom_call.1} parent=5 // pred_check
        %p742 = pneg %p741
      $region78: #{tpu_custom_call.1} parent=5 // pred_check_branch
        %744 = sbr.rel (%p742) target = $region80
      $region79: #{tpu_custom_call.1} parent=5 // pred_region
        // Predicated region
        $region81: #{tpu_custom_call.1} parent=79 // pred_check
          %p745 = pneg %p63
        $region82: #{tpu_custom_call.1} parent=79 // pred_check_branch
          %747 = sbr.rel (%p745) target = $region84
        $region83: #{tpu_custom_call.1} parent=79 // pred_region
          %s748 = sand.u32 %s53, 1
          %s749 = scalar_lea.sflag [#allocation6], %s748
          %s750 = sand.u32 %s53, 1
          %s751 = smul.addr %s750, 16
          %s752 = scalar_lea.vmem [#allocation5], %s751
          %s753 = smul.u32 2, %s43
          %s755 = ssub.s32 256, 256
          %756 = vsyncadd %s749, %s755
          %s757 = smul.addr %s753, 128
          %s758 = scalar_lea.hbm %s0, %s757
          %s759 = sshll.u32 %s752, 4
          %s760 = int_to_ptr.vmem [resolvable:$true] %s759
          %765 = dma.hbm_to_vmem [thread:$0]  %s758, 256, %s760, %s749, 128, 128, 8
        $region84: #{tpu_custom_call.1} parent=79 // pred_fallthru
          _
        // Predicated region
        $region85: #{tpu_custom_call.1} parent=79 // pred_check
          %p766 = pneg %p89
        $region86: #{tpu_custom_call.1} parent=79 // pred_check_branch
          %768 = sbr.rel (%p766) target = $region88
        $region87: #{tpu_custom_call.1} parent=79 // pred_region
          %s769 = smul.u32 2, %s43
          %p770 = scmp.lt.s32.totalorder %s769, 5
          %s771 = scalar_select %p770, %s769, 5
          %s772 = smul.addr %s771, 8
          %s773 = scalar_lea.vmem %s1, %s772
          %s774 = smul.u32 2, %s43
        $region88: #{tpu_custom_call.1} parent=79 // pred_fallthru
          _
        // Predicated region
        $region89: #{tpu_custom_call.1} parent=79 // pred_check
          %p775 = pneg %p115
        $region90: #{tpu_custom_call.1} parent=79 // pred_check_branch
          %777 = sbr.rel (%p775) target = $region92
        $region91: #{tpu_custom_call.1} parent=79 // pred_region
          %s778 = smul.u32 2, %s43
          %p779 = scmp.lt.s32.totalorder %s778, 5
          %s780 = scalar_select %p779, %s778, 5
          %s781 = smul.addr %s780, 8
          %s782 = scalar_lea.vmem %s2, %s781
          %s783 = smul.u32 2, %s43
        $region92: #{tpu_custom_call.1} parent=79 // pred_fallthru
          _
        // Predicated region
        $region93: #{tpu_custom_call.1} parent=79 // pred_check
          %p784 = pneg %p141
        $region94: #{tpu_custom_call.1} parent=79 // pred_check_branch
          %786 = sbr.rel (%p784) target = $region96
        $region95: #{tpu_custom_call.1} parent=79 // pred_region
          %s787 = smul.u32 2, %s43
          %p788 = scmp.lt.s32.totalorder %s787, 5
          %s789 = scalar_select %p788, %s787, 5
          %s790 = smul.addr %s789, 8
          %s791 = scalar_lea.vmem %s3, %s790
          %s792 = smul.u32 2, %s43
        $region96: #{tpu_custom_call.1} parent=79 // pred_fallthru
          _
        // Predicated region
        $region97: #{tpu_custom_call.1} parent=79 // pred_check
          %p793 = pneg %p167
        $region98: #{tpu_custom_call.1} parent=79 // pred_check_branch
          %795 = sbr.rel (%p793) target = $region100
        $region99: #{tpu_custom_call.1} parent=79 // pred_region
          %s796 = smul.u32 2, %s43
          %p797 = scmp.lt.s32.totalorder %s796, 5
          %s798 = scalar_select %p797, %s796, 5
          %s799 = smul.addr %s798, 8
          %s800 = scalar_lea.vmem %s4, %s799
          %s801 = smul.u32 2, %s43
        $region100: #{tpu_custom_call.1} parent=79 // pred_fallthru
          _
      $region80: #{tpu_custom_call.1} parent=5 // pred_fallthru
        _
      %p802 = scmp.le.s32.totalorder 1, %s43
      %p803 = scmp.lt.s32.totalorder %s43, 4
      %p804 = pnand %p802, %p803
      %p805 = pneg %p804
      // Predicated region
      $region101: #{tpu_custom_call.1} parent=5 // pred_check
        _
      $region102: #{tpu_custom_call.1} parent=5 // pred_check_branch
        %807 = sbr.rel (%p804) target = $region104
      $region103: #{tpu_custom_call.1} parent=5 // pred_region
        %s808 = ssub.s32 %s43, 1
        %s809 = sand.u32 %s56, 1
        %s810 = scalar_lea.sflag [#allocation6], %s809
        %s811 = sand.u32 %s56, 1
        %s812 = smul.addr %s811, 16
        %s813 = scalar_lea.vmem [#allocation5], %s812
        // Predicated region
        $region105: #{tpu_custom_call.1} parent=103 // pred_check
          %p814 = pneg %p69
        $region106: #{tpu_custom_call.1} parent=103 // pred_check_branch
          %816 = sbr.rel (%p814) target = $region108
        $region107: #{tpu_custom_call.1} parent=103 // pred_region
          %817 = dma.done %s810, 256
        $region108: #{tpu_custom_call.1} parent=103 // pred_fallthru
          _
        // Predicated region
        $region109: #{tpu_custom_call.1} parent=103 // pred_check
          %p818 = pneg %p194
        $region110: #{tpu_custom_call.1} parent=103 // pred_check_branch
          %820 = sbr.rel (%p818) target = $region112
        $region111: #{tpu_custom_call.1} parent=103 // pred_region
          %821 = dma.done [#allocation9], 256
        $region112: #{tpu_custom_call.1} parent=103 // pred_fallthru
          _
        // Predicated region
        $region113: #{tpu_custom_call.1} parent=103 // pred_check
          %p822 = pneg %p215
        $region114: #{tpu_custom_call.1} parent=103 // pred_check_branch
          %824 = sbr.rel (%p822) target = $region116
        $region115: #{tpu_custom_call.1} parent=103 // pred_region
          %825 = dma.done [#allocation9], 256
        $region116: #{tpu_custom_call.1} parent=103 // pred_fallthru
          _
        // Predicated region
        $region117: #{tpu_custom_call.1} parent=103 // pred_check
          %p826 = pneg %p236
        $region118: #{tpu_custom_call.1} parent=103 // pred_check_branch
          %828 = sbr.rel (%p826) target = $region120
        $region119: #{tpu_custom_call.1} parent=103 // pred_region
          %829 = dma.done [#allocation12], 256
        $region120: #{tpu_custom_call.1} parent=103 // pred_fallthru
          _
        // Predicated region
        $region121: #{tpu_custom_call.1} parent=103 // pred_check
          %p830 = pneg %p278
        $region122: #{tpu_custom_call.1} parent=103 // pred_check_branch
          %832 = sbr.rel (%p830) target = $region124
        $region123: #{tpu_custom_call.1} parent=103 // pred_region
          %833 = dma.done [#allocation12], 4096
        $region124: #{tpu_custom_call.1} parent=103 // pred_fallthru
          _
        // Predicated region
        $region125: #{tpu_custom_call.1} parent=103 // pred_check
          %p834 = pneg %p320
        $region126: #{tpu_custom_call.1} parent=103 // pred_check_branch
          %836 = sbr.rel (%p834) target = $region128
        $region127: #{tpu_custom_call.1} parent=103 // pred_region
          %837 = dma.done [#allocation15], 6144
        $region128: #{tpu_custom_call.1} parent=103 // pred_fallthru
          _
        // Predicated region
        $region129: #{tpu_custom_call.1} parent=103 // pred_check
          %p838 = pneg %p404
        $region130: #{tpu_custom_call.1} parent=103 // pred_check_branch
          %840 = sbr.rel (%p838) target = $region132
        $region131: #{tpu_custom_call.1} parent=103 // pred_region
          %841 = dma.done [#allocation15], 2048
        $region132: #{tpu_custom_call.1} parent=103 // pred_fallthru
          _
        // Predicated region
        $region133: #{tpu_custom_call.1} parent=103 // pred_check
          %p842 = pneg %p446
        $region134: #{tpu_custom_call.1} parent=103 // pred_check_branch
          %844 = sbr.rel (%p842) target = $region136
        $region135: #{tpu_custom_call.1} parent=103 // pred_region
          %845 = dma.done [#allocation18], 2048
        $region136: #{tpu_custom_call.1} parent=103 // pred_fallthru
          _
        // Predicated region
        $region137: #{tpu_custom_call.1} parent=103 // pred_check
          %p846 = pneg %p488
        $region138: #{tpu_custom_call.1} parent=103 // pred_check_branch
          %848 = sbr.rel (%p846) target = $region140
        $region139: #{tpu_custom_call.1} parent=103 // pred_region
          %849 = dma.done [#allocation18], 4096
        $region140: #{tpu_custom_call.1} parent=103 // pred_fallthru
          _
        %s850 = sand.u32 %s56, 1
        %s851 = scalar_lea.sflag [#allocation6], %s850
        %s852 = sand.u32 %s56, 1
        %s853 = smul.addr %s852, 16
        %s854 = scalar_lea.vmem [#allocation5], %s853
        %p855 = pneg %p69
        %p856 = pneg %p66
        %s857 = smul.u32 2, %s48
        %p858 = scmp.lt.s32.totalorder %s857, 5
        %s859 = scalar_select %p858, %s857, 5
        %s860 = smul.addr %s859, 8
        %s861 = scalar_lea.vmem %s1, %s860
        %p862 = pneg %p95
        %p863 = pneg %p92
        %s864 = smul.u32 2, %s48
        %p865 = scmp.lt.s32.totalorder %s864, 5
        %s866 = scalar_select %p865, %s864, 5
        %s867 = smul.addr %s866, 8
        %s868 = scalar_lea.vmem %s2, %s867
        %p869 = pneg %p121
        %p870 = pneg %p118
        %s871 = smul.u32 2, %s48
        %p872 = scmp.lt.s32.totalorder %s871, 5
        %s873 = scalar_select %p872, %s871, 5
        %s874 = smul.addr %s873, 8
        %s875 = scalar_lea.vmem %s3, %s874
        %p876 = pneg %p147
        %p877 = pneg %p144
        %s878 = smul.u32 2, %s48
        %p879 = scmp.lt.s32.totalorder %s878, 5
        %s880 = scalar_select %p879, %s878, 5
        %s881 = smul.addr %s880, 8
        %s882 = scalar_lea.vmem %s4, %s881
        %p883 = pneg %p173
        %p884 = pneg %p170
        %p885 = pneg %p194
        %p886 = pneg %p191
        %p887 = pneg %p215
        %p888 = pneg %p212
        %p889 = pneg %p236
        %p890 = pneg %p233
        %p891 = pneg %p257
        %p892 = pneg %p254
        %p893 = pneg %p278
        %p894 = pneg %p275
        %p895 = pneg %p299
        %p896 = pneg %p296
        %p897 = pneg %p320
        %p898 = pneg %p317
        %p899 = pneg %p341
        %p900 = pneg %p338
        %p901 = pneg %p362
        %p902 = pneg %p359
        %p903 = pneg %p383
        %p904 = pneg %p380
        %p905 = pneg %p404
        %p906 = pneg %p401
        %p907 = pneg %p425
        %p908 = pneg %p422
        %p909 = pneg %p446
        %p910 = pneg %p443
        %p911 = pneg %p467
        %p912 = pneg %p464
        %p913 = pneg %p488
        %p914 = pneg %p485
        %p915 = pneg %p509
        %p916 = pneg %p506
        %p917 = pneg %p530
        %p918 = pneg %p527
        %p919 = pneg %p556
        %p920 = pneg %p553
        %s921 = sand.u32 %s48, 1
        %s922 = scalar_lea.sflag [#allocation22], %s921
        %s923 = sand.u32 %s543, 1
        %s924 = smul.addr %s923, 16
        %s925 = scalar_lea.vmem [#allocation21], %s924
        %p926 = pneg %p577
        %p927 = pneg %p574
        %p928 = pneg %p598
        %p929 = pneg %p595
        %s930 = smul.u32 2, %s48
        %s931 = smul.u32 2, %s48
        %p932 = scmp.lt.s32.totalorder %s931, 5
        %s933 = scalar_select %p932, %s931, 5
        %s934 = smul.addr %s933, 8
        %s935 = scalar_lea.vmem %s1, %s934
        %s936 = smul.u32 2, %s48
        %s937 = smul.u32 2, %s48
        %p938 = scmp.lt.s32.totalorder %s937, 5
        %s939 = scalar_select %p938, %s937, 5
        %s940 = smul.addr %s939, 8
        %s941 = scalar_lea.vmem %s2, %s940
        %s942 = smul.u32 2, %s48
        %s943 = smul.u32 2, %s48
        %p944 = scmp.lt.s32.totalorder %s943, 5
        %s945 = scalar_select %p944, %s943, 5
        %s946 = smul.addr %s945, 8
        %s947 = scalar_lea.vmem %s3, %s946
        %s948 = smul.u32 2, %s48
        %s949 = smul.u32 2, %s48
        %p950 = scmp.lt.s32.totalorder %s949, 5
        %s951 = scalar_select %p950, %s949, 5
        %s952 = smul.addr %s951, 8
        %s953 = scalar_lea.vmem %s4, %s952
        %s954 = smul.u32 2, %s48
        %s955 = smul.u32 2, %s48
        %p957 = scmp.eq.s32.totalorder %s48, 0
        // Predicated region
        $region141: #{tpu_custom_call.1} parent=103 // pred_check
          %p958 = pneg %p957
        $region142: #{tpu_custom_call.1} parent=103 // pred_check_branch
          %960 = sbr.rel (%p958) target = $region144
        $region143: #{tpu_custom_call.1} parent=103 // pred_region
          %v961 = vld [vmem:[#allocation8] sm:$0xff]
          %v962 = vld [vmem:[#allocation8 + $0x8] sm:$0xff]
          %v963 = vld [vmem:[#allocation11] sm:$0xff]
          %v964 = vld [vmem:[#allocation11 + $0x8] sm:$0xff]
          %v965 = vld [vmem:[#allocation10] sm:$0xff]
          %v966 = vld [vmem:[#allocation10 + $0x8] sm:$0xff]
          %v967 = vld [vmem:[#allocation14] sm:$0xff]
          %v968 = vld [vmem:[#allocation14 + $0x8] sm:$0xff]
          %v969 = vld [vmem:[#allocation14 + $0x18] sm:$0xff]
          %v970 = vld [vmem:[#allocation14 + $0x20] sm:$0xff]
          %v971 = vld [vmem:[#allocation14 + $0x30] sm:$0xff]
          %v972 = vld [vmem:[#allocation14 + $0x38] sm:$0xff]
          %v973 = vld [vmem:[#allocation14 + $0x48] sm:$0xff]
          %v974 = vld [vmem:[#allocation14 + $0x50] sm:$0xff]
          %v975 = vld [vmem:[#allocation14 + $0x60] sm:$0xff]
          %v976 = vld [vmem:[#allocation14 + $0x68] sm:$0xff]
          %v977 = vld [vmem:[#allocation14 + $0x78] sm:$0xff]
          %v978 = vld [vmem:[#allocation14 + $0x80] sm:$0xff]
          %v979 = vld [vmem:[#allocation14 + $0x90] sm:$0xff]
          %v980 = vld [vmem:[#allocation14 + $0x98] sm:$0xff]
          %v981 = vld [vmem:[#allocation14 + $0xa8] sm:$0xff]
          %v982 = vld [vmem:[#allocation14 + $0xb0] sm:$0xff]
          %v983 = vld [vmem:[#allocation14 + $0xc0] sm:$0xff]
          %v984 = vld [vmem:[#allocation14 + $0xc8] sm:$0xff]
          %v985 = vld [vmem:[#allocation14 + $0xd8] sm:$0xff]
          %v986 = vld [vmem:[#allocation14 + $0xe0] sm:$0xff]
          %v987 = vld [vmem:[#allocation14 + $0xf0] sm:$0xff]
          %v988 = vld [vmem:[#allocation14 + $0xf8] sm:$0xff]
          %v989 = vld [vmem:[#allocation14 + $0x108] sm:$0xff]
          %v990 = vld [vmem:[#allocation14 + $0x110] sm:$0xff]
          %v991 = vld [vmem:[#allocation14 + $0x120] sm:$0xff]
          %v992 = vld [vmem:[#allocation14 + $0x128] sm:$0xff]
          %v993 = vld [vmem:[#allocation14 + $0x138] sm:$0xff]
          %v994 = vld [vmem:[#allocation14 + $0x140] sm:$0xff]
          %v995 = vld [vmem:[#allocation14 + $0x150] sm:$0xff]
          %v996 = vld [vmem:[#allocation14 + $0x158] sm:$0xff]
          %v997 = vld [vmem:[#allocation14 + $0x168] sm:$0xff]
          %v998 = vld [vmem:[#allocation14 + $0x170] sm:$0xff]
          %v999 = vld [vmem:[%s12] sm:$0x3]
          %v1001 = vlaneseq
          %v1002 = vshrl.u32 %v1001, 7
          %v1003 = vsub.s32 0, %v1002
          %v1004 = vrot.slane %v999, %v1003
          %v1005 = vlaneseq
          %v1006 = vshrl.u32 %v1005, 7
          %v1007 = vsub.s32 1, %v1006
          %v1008 = vrot.slane %v999, %v1007
          %1011 = vmatprep.subr.mxu0 %v968
          %1012 = vmatpush1.msra.mxu0 %v967
          %1013 = vmatprep.subr.mxu0 %v970
          %1014 = vmatpush1.msra.mxu0 %v969
          %1015 = vmatprep.subr.mxu0 %v972
          %1016 = vmatpush1.msra.mxu0 %v971
          %1017 = vmatprep.subr.mxu0 %v974
          %1018 = vmatpush1.msra.mxu0 %v973
          %1019 = vmatprep.subr.mxu0 %v976
          %1020 = vmatpush1.msra.mxu0 %v975
          %1021 = vmatprep.subr.mxu0 %v978
          %1022 = vmatpush1.msra.mxu0 %v977
          %1023 = vmatprep.subr.mxu0 %v980
          %1024 = vmatpush1.msra.mxu0 %v979
          %1025 = vmatprep.subr.mxu0 %v982
          %1026 = vmatpush1.msra.mxu0 %v981
          %1027 = vmatprep.subr.mxu0 %v984
          %1028 = vmatpush1.msra.mxu0 %v983
          %1029 = vmatprep.subr.mxu0 %v986
          %1030 = vmatpush1.msra.mxu0 %v985
          %1031 = vmatprep.subr.mxu0 %v988
          %1032 = vmatpush1.msra.mxu0 %v987
          %1033 = vmatprep.subr.mxu0 %v990
          %1034 = vmatpush1.msra.mxu0 %v989
          %1035 = vmatprep.subr.mxu0 %v992
          %1036 = vmatpush1.msra.mxu0 %v991
          %1037 = vmatprep.subr.mxu0 %v994
          %1038 = vmatpush1.msra.mxu0 %v993
          %1039 = vmatprep.subr.mxu0 %v996
          %1040 = vmatpush1.msra.mxu0 %v995
          %1041 = vmatprep.subr.mxu0 %v998
          %1042 = vmatpush1.msra.mxu0 %v997
          %1043 = vmatprep.subr.mxu0 0.0
          %1044 = vmatpush1.msra.mxu0 0.0
          %1045 = vmatprep.subr.mxu0 0.0
          %1046 = vmatpush1.msra.mxu0 0.0
          %1047 = vmatprep.subr.mxu0 0.0
          %1048 = vmatpush1.msra.mxu0 0.0
          %1049 = vmatprep.subr.mxu0 0.0
          %1050 = vmatpush1.msra.mxu0 0.0
          %1051 = vmatprep.subr.mxu0 0.0
          %1052 = vmatpush1.msra.mxu0 0.0
          %1053 = vmatprep.subr.mxu0 0.0
          %1054 = vmatpush1.msra.mxu0 0.0
          %1055 = vmatprep.subr.mxu0 0.0
          %1056 = vmatpush1.msra.mxu0 0.0
          %1057 = vmatprep.subr.mxu0 0.0
          %1058 = vmatpush1.msra.mxu0 0.0
          %1059 = vmatprep.subr.mxu0 0.0
          %1060 = vmatpush1.msra.mxu0 0.0
          %1061 = vmatprep.subr.mxu0 0.0
          %1062 = vmatpush1.msra.mxu0 0.0
          %1063 = vmatprep.subr.mxu0 0.0
          %1064 = vmatpush1.msra.mxu0 0.0
          %1065 = vmatprep.subr.mxu0 0.0
          %1066 = vmatpush1.msra.mxu0 0.0
          %1067 = vmatprep.subr.mxu0 0.0
          %1068 = vmatpush1.msra.mxu0 0.0
          %1069 = vmatprep.subr.mxu0 0.0
          %1070 = vmatpush1.msra.mxu0 0.0
          %1071 = vmatprep.subr.mxu0 0.0
          %1072 = vmatpush1.msra.mxu0 0.0
          %1073 = vmatprep.subr.mxu0 0.0
          %1074 = vmatpush1.msra.mxu0 0.0
          %1075 = vmatprep.mubr.f32.mxu0 0.0
          %1076 = vmatmul.mubr.f32.gmra.mrb[0].mxu0 %v965
          %v1077 = vpop.f32.mrb[0].mxu0
          %v1078 = vadd.f32 %v1004, %v1077
          %v1079 = vpop.f32.mrb[0].mxu0
          %v1080 = vadd.f32 %v1008, %v1079
          %1081 = vmatprep.mubr.f32.mxu0 0.0
          %1082 = vmatmul.mubr.f32.gmra.mrb[0].mxu0 %v966
          %v1083 = vpop.f32.mrb[0].mxu0
          %v1084 = vadd.f32 %v1004, %v1083
          %v1085 = vpop.f32.mrb[0].mxu0
          %v1086 = vadd.f32 %v1008, %v1085
          %1087 = vdwg.mxu0
          %v1088 = vpack.c.bf16 %v1084, %v1078
          %1089 = vst [vmem:[#allocation2] sm:$0xff] %v1088
          %v1090 = vpack.c.bf16 %v962, %v961
          %1091 = vst [vmem:[#allocation2 + $0x8] sm:$0xff] %v1090
          %v1092 = vpack.c.bf16 %v964, %v963
          %1093 = vst [vmem:[#allocation2 + $0x10] sm:$0xff] %v1092
          %v1094 = vpack.c.bf16 %v1086, %v1080
          %1095 = vst [vmem:[#allocation3] sm:$0xff] %v1094
          %1096 = vst [vmem:[#allocation3 + $0x8] sm:$0xff] %v1090
          %1097 = vst [vmem:[#allocation4] sm:$0xff] 0.0
          %1098 = vst [vmem:[#allocation4 + $0x8] sm:$0xff] 0.0
          %1099 = vst [vmem:[#allocation4 + $0x10] sm:$0xff] 0.0
          %1100 = vst [vmem:[#allocation4 + $0x18] sm:$0xff] 0.0
        $region144: #{tpu_custom_call.1} parent=103 // pred_fallthru
          _
        %v1101 = vld [vmem:[%s813] sm:$0xff]
        %v1102 = vld [vmem:[%s813 + $0x8] sm:$0xff]
        %v1103 = vld [vmem:[%s935] sm:$0xff]
        %v1104 = vld [vmem:[%s935 + $0x8] sm:$0xff]
        %v1105 = vld [vmem:[%s941] sm:$0xff]
        %v1106 = vld [vmem:[%s941 + $0x8] sm:$0xff]
        %v1107 = vld [vmem:[%s947] sm:$0xff]
        %v1108 = vld [vmem:[%s947 + $0x8] sm:$0xff]
        %v1109 = vld [vmem:[%s953] sm:$0xff]
        %v1110 = vld [vmem:[%s953 + $0x8] sm:$0xff]
        %v1111 = vlaneseq
        %v1112 = vand.u32 %v1111, 127
        %1113 = vset.pattern.permute.xlu0 0
        %1114 = vperm.xlu0 %1113, %v1103
        %v1115 = vpop.permute.xlu0 %1114
        %1116 = vset.pattern.permute.xlu0 0
        %1117 = vperm.xlu0 %1116, %v1104
        %v1118 = vpop.permute.xlu0 %1117
        %vm1119 = vcmp.eq.s32.totalorder %v1112, %v1115
        %vm1120 = vcmp.eq.s32.totalorder %v1112, %v1118
        %v1121 = vsel %vm1119, 1, 0
        %v1122 = vsel %vm1120, 1, 0
        %v1123 = vcvt.s32.f32 %v1121
        %v1124 = vcvt.s32.f32 %v1122
        %v1125 = vpack.c.bf16 %v1124, %v1123
        %1126 = vset.pattern.permute.xlu0 0
        %1127 = vperm.xlu0 %1126, %v1105
        %v1128 = vpop.permute.xlu0 %1127
        %1129 = vset.pattern.permute.xlu0 0
        %1130 = vperm.xlu0 %1129, %v1106
        %v1131 = vpop.permute.xlu0 %1130
        %vm1132 = vcmp.eq.s32.totalorder %v1112, %v1128
        %vm1133 = vcmp.eq.s32.totalorder %v1112, %v1131
        %v1134 = vsel %vm1132, 1, 0
        %v1135 = vsel %vm1133, 1, 0
        %v1136 = vcvt.s32.f32 %v1134
        %v1137 = vcvt.s32.f32 %v1135
        %v1138 = vpack.c.bf16 %v1137, %v1136
        %v1139 = vld [vmem:[#allocation2] sm:$0xff]
        %v1140 = vld [vmem:[#allocation2 + $0x8] sm:$0xff]
        %v1141 = vld [vmem:[#allocation2 + $0x10] sm:$0xff]
        %vm1142 = vcmask 130048
        %v1144 = vsel %vm1142, %v1138, 0
        %1146 = vmatprep.subr.bf16.mxu0 %v1140
        %1147 = vmatpush1.bf16.msra.mxu0 %v1139
        %1148 = vmatprep.subr.bf16.mxu0 0
        %1149 = vmatpush1.bf16.msra.mxu0 0
        %1150 = vmatprep.subr.bf16.mxu0 0
        %1151 = vmatpush1.bf16.msra.mxu0 0
        %1152 = vmatprep.subr.bf16.mxu0 0
        %1153 = vmatpush1.bf16.msra.mxu0 0
        %1154 = vmatprep.subr.bf16.mxu0 0
        %1155 = vmatpush1.bf16.msra.mxu0 0
        %1156 = vmatprep.subr.bf16.mxu0 0
        %1157 = vmatpush1.bf16.msra.mxu0 0
        %1158 = vmatprep.subr.bf16.mxu0 0
        %1159 = vmatpush1.bf16.msra.mxu0 0
        %1160 = vmatprep.subr.bf16.mxu0 0
        %1161 = vmatpush1.bf16.msra.mxu0 0
        %1162 = vmatprep.subr.bf16.mxu0 0
        %1163 = vmatpush1.bf16.msra.mxu0 0
        %1164 = vmatprep.subr.bf16.mxu0 0
        %1165 = vmatpush1.bf16.msra.mxu0 0
        %1166 = vmatprep.subr.bf16.mxu0 0
        %1167 = vmatpush1.bf16.msra.mxu0 0
        %1168 = vmatprep.subr.bf16.mxu0 0
        %1169 = vmatpush1.bf16.msra.mxu0 0
        %1170 = vmatprep.subr.bf16.mxu0 0
        %1171 = vmatpush1.bf16.msra.mxu0 0
        %1172 = vmatprep.subr.bf16.mxu0 0
        %1173 = vmatpush1.bf16.msra.mxu0 0
        %1174 = vmatprep.subr.bf16.mxu0 0
        %1175 = vmatpush1.bf16.msra.mxu0 0
        %1176 = vmatprep.subr.bf16.mxu0 0
        %1177 = vmatpush1.bf16.msra.mxu0 0
        %1178 = vmatprep.mubr.bf16.mxu0 0
        %1179 = vmatmul.mubr.bf16.gmra.mrb[0].mxu0 %v1144
        %v1180 = vpop.f32.mrb[0].mxu0
        %v1181 = vadd.f32 0.0, %v1180
        %v1182 = vpop.f32.mrb[0].mxu0
        %v1183 = vadd.f32 0.0, %v1182
        %v1184 = vpop.f32.mrb[0].mxu0
        %v1185 = vadd.f32 0.0, %v1184
        %v1186 = vpop.f32.mrb[0].mxu0
        %v1187 = vadd.f32 0.0, %v1186
        %1188 = vdwg.mxu0
        %1189 = vmatprep.subr.bf16.mxu0 0
        %1190 = vmatpush1.bf16.msra.mxu0 %v1141
        %1191 = vmatprep.subr.bf16.mxu0 0
        %1192 = vmatpush1.bf16.msra.mxu0 0
        %1193 = vmatprep.subr.bf16.mxu0 0
        %1194 = vmatpush1.bf16.msra.mxu0 0
        %1195 = vmatprep.subr.bf16.mxu0 0
        %1196 = vmatpush1.bf16.msra.mxu0 0
        %1197 = vmatprep.subr.bf16.mxu0 0
        %1198 = vmatpush1.bf16.msra.mxu0 0
        %1199 = vmatprep.subr.bf16.mxu0 0
        %1200 = vmatpush1.bf16.msra.mxu0 0
        %1201 = vmatprep.subr.bf16.mxu0 0
        %1202 = vmatpush1.bf16.msra.mxu0 0
        %1203 = vmatprep.subr.bf16.mxu0 0
        %1204 = vmatpush1.bf16.msra.mxu0 0
        %1205 = vmatprep.subr.bf16.mxu0 0
        %1206 = vmatpush1.bf16.msra.mxu0 0
        %1207 = vmatprep.subr.bf16.mxu0 0
        %1208 = vmatpush1.bf16.msra.mxu0 0
        %1209 = vmatprep.subr.bf16.mxu0 0
        %1210 = vmatpush1.bf16.msra.mxu0 0
        %1211 = vmatprep.subr.bf16.mxu0 0
        %1212 = vmatpush1.bf16.msra.mxu0 0
        %1213 = vmatprep.subr.bf16.mxu0 0
        %1214 = vmatpush1.bf16.msra.mxu0 0
        %1215 = vmatprep.subr.bf16.mxu0 0
        %1216 = vmatpush1.bf16.msra.mxu0 0
        %1217 = vmatprep.subr.bf16.mxu0 0
        %1218 = vmatpush1.bf16.msra.mxu0 0
        %1219 = vmatprep.subr.bf16.mxu0 0
        %1220 = vmatpush1.bf16.msra.mxu0 0
        %1221 = vmatprep.mubr.bf16.mxu0 0
        %1222 = vmatmul.mubr.bf16.gmra.mrb[0].mxu0 %v1144
        %v1223 = vpop.f32.mrb[0].mxu0
        %v1224 = vadd.f32 0.0, %v1223
        %v1225 = vpop.f32.mrb[0].mxu0
        %v1226 = vpop.f32.mrb[0].mxu0
        %v1227 = vadd.f32 0.0, %v1226
        %v1228 = vpop.f32.mrb[0].mxu0
        %1229 = vdwg.mxu0
        %v1230 = vld [vmem:[#allocation3] sm:$0xff]
        %v1231 = vld [vmem:[#allocation3 + $0x8] sm:$0xff]
        %v1233 = vsel %vm1142, %v1125, 0
        %1235 = vmatprep.subr.bf16.mxu0 %v1231
        %1236 = vmatpush1.bf16.msra.mxu0 %v1230
        %1237 = vmatprep.subr.bf16.mxu0 0
        %1238 = vmatpush1.bf16.msra.mxu0 0
        %1239 = vmatprep.subr.bf16.mxu0 0
        %1240 = vmatpush1.bf16.msra.mxu0 0
        %1241 = vmatprep.subr.bf16.mxu0 0
        %1242 = vmatpush1.bf16.msra.mxu0 0
        %1243 = vmatprep.subr.bf16.mxu0 0
        %1244 = vmatpush1.bf16.msra.mxu0 0
        %1245 = vmatprep.subr.bf16.mxu0 0
        %1246 = vmatpush1.bf16.msra.mxu0 0
        %1247 = vmatprep.subr.bf16.mxu0 0
        %1248 = vmatpush1.bf16.msra.mxu0 0
        %1249 = vmatprep.subr.bf16.mxu0 0
        %1250 = vmatpush1.bf16.msra.mxu0 0
        %1251 = vmatprep.subr.bf16.mxu0 0
        %1252 = vmatpush1.bf16.msra.mxu0 0
        %1253 = vmatprep.subr.bf16.mxu0 0
        %1254 = vmatpush1.bf16.msra.mxu0 0
        %1255 = vmatprep.subr.bf16.mxu0 0
        %1256 = vmatpush1.bf16.msra.mxu0 0
        %1257 = vmatprep.subr.bf16.mxu0 0
        %1258 = vmatpush1.bf16.msra.mxu0 0
        %1259 = vmatprep.subr.bf16.mxu0 0
        %1260 = vmatpush1.bf16.msra.mxu0 0
        %1261 = vmatprep.subr.bf16.mxu0 0
        %1262 = vmatpush1.bf16.msra.mxu0 0
        %1263 = vmatprep.subr.bf16.mxu0 0
        %1264 = vmatpush1.bf16.msra.mxu0 0
        %1265 = vmatprep.subr.bf16.mxu0 0
        %1266 = vmatpush1.bf16.msra.mxu0 0
        %1267 = vmatprep.mubr.bf16.mxu0 0
        %1268 = vmatmul.mubr.bf16.gmra.mrb[0].mxu0 %v1233
        %v1269 = vpop.f32.mrb[0].mxu0
        %v1270 = vadd.f32 0.0, %v1269
        %v1271 = vpop.f32.mrb[0].mxu0
        %v1272 = vadd.f32 0.0, %v1271
        %v1273 = vpop.f32.mrb[0].mxu0
        %v1274 = vadd.f32 0.0, %v1273
        %v1275 = vpop.f32.mrb[0].mxu0
        %v1276 = vadd.f32 0.0, %v1275
        %1277 = vdwg.mxu0
        %v1278 = vld [vmem:[#allocation16] sm:$0xff]
        %v1279 = vld [vmem:[#allocation16 + $0x8] sm:$0xff]
        %v1280 = vld [vmem:[#allocation16 + $0x10] sm:$0xff]
        %v1281 = vld [vmem:[#allocation16 + $0x18] sm:$0xff]
        %v1282 = vld [vmem:[#allocation16 + $0x20] sm:$0xff]
        %v1283 = vld [vmem:[#allocation16 + $0x28] sm:$0xff]
        %v1284 = vld [vmem:[#allocation16 + $0x30] sm:$0xff]
        %v1285 = vld [vmem:[#allocation16 + $0x38] sm:$0xff]
        %v1286 = vld [vmem:[#allocation16 + $0x40] sm:$0xff]
        %v1287 = vld [vmem:[#allocation16 + $0x48] sm:$0xff]
        %v1288 = vld [vmem:[#allocation16 + $0x50] sm:$0xff]
        %v1289 = vld [vmem:[#allocation16 + $0x58] sm:$0xff]
        %v1290 = vld [vmem:[#allocation16 + $0x60] sm:$0xff]
        %v1291 = vld [vmem:[#allocation16 + $0x68] sm:$0xff]
        %v1292 = vld [vmem:[#allocation16 + $0x70] sm:$0xff]
        %v1293 = vld [vmem:[#allocation16 + $0x78] sm:$0xff]
        %v1294 = vld [vmem:[%s16] sm:$0x1]
        %v1296 = vlaneseq
        %v1297 = vshrl.u32 %v1296, 7
        %v1298 = vsub.s32 0, %v1297
        %v1299 = vrot.slane %v1294, %v1298
        %1301 = vmatprep.subr.mxu0 0.0
        %1302 = vmatpush1.msra.mxu0 %v1278
        %1303 = vmatprep.subr.mxu0 0.0
        %1304 = vmatpush1.msra.mxu0 %v1279
        %1305 = vmatprep.subr.mxu0 0.0
        %1306 = vmatpush1.msra.mxu0 %v1280
        %1307 = vmatprep.subr.mxu0 0.0
        %1308 = vmatpush1.msra.mxu0 %v1281
        %1309 = vmatprep.subr.mxu0 0.0
        %1310 = vmatpush1.msra.mxu0 %v1282
        %1311 = vmatprep.subr.mxu0 0.0
        %1312 = vmatpush1.msra.mxu0 %v1283
        %1313 = vmatprep.subr.mxu0 0.0
        %1314 = vmatpush1.msra.mxu0 %v1284
        %1315 = vmatprep.subr.mxu0 0.0
        %1316 = vmatpush1.msra.mxu0 %v1285
        %1317 = vmatprep.subr.mxu0 0.0
        %1318 = vmatpush1.msra.mxu0 %v1286
        %1319 = vmatprep.subr.mxu0 0.0
        %1320 = vmatpush1.msra.mxu0 %v1287
        %1321 = vmatprep.subr.mxu0 0.0
        %1322 = vmatpush1.msra.mxu0 %v1288
        %1323 = vmatprep.subr.mxu0 0.0
        %1324 = vmatpush1.msra.mxu0 %v1289
        %1325 = vmatprep.subr.mxu0 0.0
        %1326 = vmatpush1.msra.mxu0 %v1290
        %1327 = vmatprep.subr.mxu0 0.0
        %1328 = vmatpush1.msra.mxu0 %v1291
        %1329 = vmatprep.subr.mxu0 0.0
        %1330 = vmatpush1.msra.mxu0 %v1292
        %1331 = vmatprep.subr.mxu0 0.0
        %1332 = vmatpush1.msra.mxu0 %v1293
        %1333 = vmatprep.subr.mxu0 0.0
        %1334 = vmatpush1.msra.mxu0 0.0
        %1335 = vmatprep.subr.mxu0 0.0
        %1336 = vmatpush1.msra.mxu0 0.0
        %1337 = vmatprep.subr.mxu0 0.0
        %1338 = vmatpush1.msra.mxu0 0.0
        %1339 = vmatprep.subr.mxu0 0.0
        %1340 = vmatpush1.msra.mxu0 0.0
        %1341 = vmatprep.subr.mxu0 0.0
        %1342 = vmatpush1.msra.mxu0 0.0
        %1343 = vmatprep.subr.mxu0 0.0
        %1344 = vmatpush1.msra.mxu0 0.0
        %1345 = vmatprep.subr.mxu0 0.0
        %1346 = vmatpush1.msra.mxu0 0.0
        %1347 = vmatprep.subr.mxu0 0.0
        %1348 = vmatpush1.msra.mxu0 0.0
        %1349 = vmatprep.subr.mxu0 0.0
        %1350 = vmatpush1.msra.mxu0 0.0
        %1351 = vmatprep.subr.mxu0 0.0
        %1352 = vmatpush1.msra.mxu0 0.0
        %1353 = vmatprep.subr.mxu0 0.0
        %1354 = vmatpush1.msra.mxu0 0.0
        %1355 = vmatprep.subr.mxu0 0.0
        %1356 = vmatpush1.msra.mxu0 0.0
        %1357 = vmatprep.subr.mxu0 0.0
        %1358 = vmatpush1.msra.mxu0 0.0
        %1359 = vmatprep.subr.mxu0 0.0
        %1360 = vmatpush1.msra.mxu0 0.0
        %1361 = vmatprep.subr.mxu0 0.0
        %1362 = vmatpush1.msra.mxu0 0.0
        %1363 = vmatprep.subr.mxu0 0.0
        %1364 = vmatpush1.msra.mxu0 0.0
        %1365 = vmatprep.mubr.f32.mxu0 0.0
        %1366 = vmatmul.mubr.f32.gmra.mrb[0].mxu0 %v1101
        %v1367 = vpop.f32.mrb[0].mxu0
        %v1368 = vadd.f32 %v1299, %v1367
        %v1369 = vpop.f32.mrb[0].mxu0
        %1370 = vmatprep.mubr.f32.mxu0 0.0
        %1371 = vmatmul.mubr.f32.gmra.mrb[0].mxu0 %v1102
        %v1372 = vpop.f32.mrb[0].mxu0
        %v1373 = vadd.f32 %v1299, %v1372
        %v1374 = vpop.f32.mrb[0].mxu0
        %1375 = vdwg.mxu0
        %v1376 = vsub.f32 %v1181, %v1270
        %v1377 = vsub.f32 %v1185, %v1274
        %v1378 = vadd.f32 %v1376, %v1368
        %v1379 = vadd.f32 %v1377, %v1373
        %v1380 = vmul.f32 %v1378, 0.5
        %v1381 = vmul.f32 %v1379, 0.5
        %v1382 = vld [vmem:[#allocation19] sm:$0xff]
        %v1383 = vld [vmem:[#allocation19 + $0x8] sm:$0xff]
        %v1384 = vld [vmem:[#allocation19 + $0x10] sm:$0xff]
        %v1385 = vld [vmem:[#allocation19 + $0x18] sm:$0xff]
        %v1386 = vld [vmem:[#allocation19 + $0x20] sm:$0xff]
        %v1387 = vld [vmem:[#allocation19 + $0x28] sm:$0xff]
        %v1388 = vld [vmem:[#allocation19 + $0x30] sm:$0xff]
        %v1389 = vld [vmem:[#allocation19 + $0x38] sm:$0xff]
        %v1390 = vld [vmem:[#allocation19 + $0x40] sm:$0xff]
        %v1391 = vld [vmem:[#allocation19 + $0x48] sm:$0xff]
        %v1392 = vld [vmem:[#allocation19 + $0x50] sm:$0xff]
        %v1393 = vld [vmem:[#allocation19 + $0x58] sm:$0xff]
        %v1394 = vld [vmem:[#allocation19 + $0x60] sm:$0xff]
        %v1395 = vld [vmem:[#allocation19 + $0x68] sm:$0xff]
        %v1396 = vld [vmem:[#allocation19 + $0x70] sm:$0xff]
        %v1397 = vld [vmem:[#allocation19 + $0x78] sm:$0xff]
        %v1398 = vld [vmem:[#allocation19 + $0x80] sm:$0xff]
        %v1399 = vld [vmem:[#allocation19 + $0x88] sm:$0xff]
        %v1400 = vld [vmem:[#allocation19 + $0x90] sm:$0xff]
        %v1401 = vld [vmem:[#allocation19 + $0x98] sm:$0xff]
        %v1402 = vld [vmem:[#allocation19 + $0xa0] sm:$0xff]
        %v1403 = vld [vmem:[#allocation19 + $0xa8] sm:$0xff]
        %v1404 = vld [vmem:[#allocation19 + $0xb0] sm:$0xff]
        %v1405 = vld [vmem:[#allocation19 + $0xb8] sm:$0xff]
        %v1406 = vld [vmem:[#allocation19 + $0xc0] sm:$0xff]
        %v1407 = vld [vmem:[#allocation19 + $0xc8] sm:$0xff]
        %v1408 = vld [vmem:[#allocation19 + $0xd0] sm:$0xff]
        %v1409 = vld [vmem:[#allocation19 + $0xd8] sm:$0xff]
        %v1410 = vld [vmem:[#allocation19 + $0xe0] sm:$0xff]
        %v1411 = vld [vmem:[#allocation19 + $0xe8] sm:$0xff]
        %v1412 = vld [vmem:[#allocation19 + $0xf0] sm:$0xff]
        %v1413 = vld [vmem:[#allocation19 + $0xf8] sm:$0xff]
        %v1414 = vld [vmem:[%s20] sm:$0x1]
        %v1416 = vlaneseq
        %v1417 = vshrl.u32 %v1416, 7
        %v1418 = vsub.s32 0, %v1417
        %v1419 = vrot.slane %v1414, %v1418
        %1421 = vmatprep.subr.mxu0 0.0
        %1422 = vmatpush1.msra.mxu0 %v1382
        %1423 = vmatprep.subr.mxu0 0.0
        %1424 = vmatpush1.msra.mxu0 %v1383
        %1425 = vmatprep.subr.mxu0 0.0
        %1426 = vmatpush1.msra.mxu0 %v1384
        %1427 = vmatprep.subr.mxu0 0.0
        %1428 = vmatpush1.msra.mxu0 %v1385
        %1429 = vmatprep.subr.mxu0 0.0
        %1430 = vmatpush1.msra.mxu0 %v1386
        %1431 = vmatprep.subr.mxu0 0.0
        %1432 = vmatpush1.msra.mxu0 %v1387
        %1433 = vmatprep.subr.mxu0 0.0
        %1434 = vmatpush1.msra.mxu0 %v1388
        %1435 = vmatprep.subr.mxu0 0.0
        %1436 = vmatpush1.msra.mxu0 %v1389
        %1437 = vmatprep.subr.mxu0 0.0
        %1438 = vmatpush1.msra.mxu0 %v1390
        %1439 = vmatprep.subr.mxu0 0.0
        %1440 = vmatpush1.msra.mxu0 %v1391
        %1441 = vmatprep.subr.mxu0 0.0
        %1442 = vmatpush1.msra.mxu0 %v1392
        %1443 = vmatprep.subr.mxu0 0.0
        %1444 = vmatpush1.msra.mxu0 %v1393
        %1445 = vmatprep.subr.mxu0 0.0
        %1446 = vmatpush1.msra.mxu0 %v1394
        %1447 = vmatprep.subr.mxu0 0.0
        %1448 = vmatpush1.msra.mxu0 %v1395
        %1449 = vmatprep.subr.mxu0 0.0
        %1450 = vmatpush1.msra.mxu0 %v1396
        %1451 = vmatprep.subr.mxu0 0.0
        %1452 = vmatpush1.msra.mxu0 %v1397
        %1453 = vmatprep.subr.mxu0 0.0
        %1454 = vmatpush1.msra.mxu0 %v1398
        %1455 = vmatprep.subr.mxu0 0.0
        %1456 = vmatpush1.msra.mxu0 %v1399
        %1457 = vmatprep.subr.mxu0 0.0
        %1458 = vmatpush1.msra.mxu0 %v1400
        %1459 = vmatprep.subr.mxu0 0.0
        %1460 = vmatpush1.msra.mxu0 %v1401
        %1461 = vmatprep.subr.mxu0 0.0
        %1462 = vmatpush1.msra.mxu0 %v1402
        %1463 = vmatprep.subr.mxu0 0.0
        %1464 = vmatpush1.msra.mxu0 %v1403
        %1465 = vmatprep.subr.mxu0 0.0
        %1466 = vmatpush1.msra.mxu0 %v1404
        %1467 = vmatprep.subr.mxu0 0.0
        %1468 = vmatpush1.msra.mxu0 %v1405
        %1469 = vmatprep.subr.mxu0 0.0
        %1470 = vmatpush1.msra.mxu0 %v1406
        %1471 = vmatprep.subr.mxu0 0.0
        %1472 = vmatpush1.msra.mxu0 %v1407
        %1473 = vmatprep.subr.mxu0 0.0
        %1474 = vmatpush1.msra.mxu0 %v1408
        %1475 = vmatprep.subr.mxu0 0.0
        %1476 = vmatpush1.msra.mxu0 %v1409
        %1477 = vmatprep.subr.mxu0 0.0
        %1478 = vmatpush1.msra.mxu0 %v1410
        %1479 = vmatprep.subr.mxu0 0.0
        %1480 = vmatpush1.msra.mxu0 %v1411
        %1481 = vmatprep.subr.mxu0 0.0
        %1482 = vmatpush1.msra.mxu0 %v1412
        %1483 = vmatprep.subr.mxu0 0.0
        %1484 = vmatpush1.msra.mxu0 %v1413
        %1485 = vmatprep.mubr.f32.mxu0 %v1224
        %1486 = vmatmul.mubr.f32.gmra.mrb[0].mxu0 %v1183
        %v1487 = vpop.f32.mrb[0].mxu0
        %v1488 = vadd.f32 %v1419, %v1487
        %v1489 = vpop.f32.mrb[0].mxu0
        %1490 = vmatprep.mubr.f32.mxu0 %v1227
        %1491 = vmatmul.mubr.f32.gmra.mrb[0].mxu0 %v1187
        %v1492 = vpop.f32.mrb[0].mxu0
        %v1493 = vadd.f32 %v1419, %v1492
        %v1494 = vpop.f32.mrb[0].mxu0
        %1495 = vdwg.mxu0
        %v1496 = vmax.f32 %v1488, 0.0
        %v1497 = vmax.f32 %v1493, 0.0
        %1499 = vset.pattern.permute.xlu0 0
        %1500 = vperm.xlu0 %1499, %v1109
        %v1501 = vpop.permute.xlu0 %1500
        %1504 = vset.pattern.permute.xlu0 0
        %1505 = vperm.xlu0 %1504, %v1110
        %v1506 = vpop.permute.xlu0 %1505
        %v1508 = vmul.f32 %v1496, %v1501
        %v1509 = vmul.f32 %v1497, %v1506
        %v1510 = vmul.f32 %v1272, %v1183
        %v1511 = vmul.f32 %v1276, %v1187
        %v1512 = vld [vmem:[#allocation17] sm:$0xff]
        %v1513 = vld [vmem:[#allocation17 + $0x8] sm:$0xff]
        %v1514 = vld [vmem:[#allocation17 + $0x10] sm:$0xff]
        %v1515 = vld [vmem:[#allocation17 + $0x18] sm:$0xff]
        %v1516 = vld [vmem:[#allocation17 + $0x20] sm:$0xff]
        %v1517 = vld [vmem:[#allocation17 + $0x28] sm:$0xff]
        %v1518 = vld [vmem:[#allocation17 + $0x30] sm:$0xff]
        %v1519 = vld [vmem:[#allocation17 + $0x38] sm:$0xff]
        %v1520 = vld [vmem:[#allocation17 + $0x40] sm:$0xff]
        %v1521 = vld [vmem:[#allocation17 + $0x48] sm:$0xff]
        %v1522 = vld [vmem:[#allocation17 + $0x50] sm:$0xff]
        %v1523 = vld [vmem:[#allocation17 + $0x58] sm:$0xff]
        %v1524 = vld [vmem:[#allocation17 + $0x60] sm:$0xff]
        %v1525 = vld [vmem:[#allocation17 + $0x68] sm:$0xff]
        %v1526 = vld [vmem:[#allocation17 + $0x70] sm:$0xff]
        %v1527 = vld [vmem:[#allocation17 + $0x78] sm:$0xff]
        %v1528 = vld [vmem:[%s18] sm:$0x1]
        %v1530 = vlaneseq
        %v1531 = vshrl.u32 %v1530, 7
        %v1532 = vsub.s32 0, %v1531
        %v1533 = vrot.slane %v1528, %v1532
        %1535 = vmatprep.subr.mxu0 0.0
        %1536 = vmatpush1.msra.mxu0 %v1512
        %1537 = vmatprep.subr.mxu0 0.0
        %1538 = vmatpush1.msra.mxu0 %v1513
        %1539 = vmatprep.subr.mxu0 0.0
        %1540 = vmatpush1.msra.mxu0 %v1514
        %1541 = vmatprep.subr.mxu0 0.0
        %1542 = vmatpush1.msra.mxu0 %v1515
        %1543 = vmatprep.subr.mxu0 0.0
        %1544 = vmatpush1.msra.mxu0 %v1516
        %1545 = vmatprep.subr.mxu0 0.0
        %1546 = vmatpush1.msra.mxu0 %v1517
        %1547 = vmatprep.subr.mxu0 0.0
        %1548 = vmatpush1.msra.mxu0 %v1518
        %1549 = vmatprep.subr.mxu0 0.0
        %1550 = vmatpush1.msra.mxu0 %v1519
        %1551 = vmatprep.subr.mxu0 0.0
        %1552 = vmatpush1.msra.mxu0 %v1520
        %1553 = vmatprep.subr.mxu0 0.0
        %1554 = vmatpush1.msra.mxu0 %v1521
        %1555 = vmatprep.subr.mxu0 0.0
        %1556 = vmatpush1.msra.mxu0 %v1522
        %1557 = vmatprep.subr.mxu0 0.0
        %1558 = vmatpush1.msra.mxu0 %v1523
        %1559 = vmatprep.subr.mxu0 0.0
        %1560 = vmatpush1.msra.mxu0 %v1524
        %1561 = vmatprep.subr.mxu0 0.0
        %1562 = vmatpush1.msra.mxu0 %v1525
        %1563 = vmatprep.subr.mxu0 0.0
        %1564 = vmatpush1.msra.mxu0 %v1526
        %1565 = vmatprep.subr.mxu0 0.0
        %1566 = vmatpush1.msra.mxu0 %v1527
        %1567 = vmatprep.subr.mxu0 0.0
        %1568 = vmatpush1.msra.mxu0 0.0
        %1569 = vmatprep.subr.mxu0 0.0
        %1570 = vmatpush1.msra.mxu0 0.0
        %1571 = vmatprep.subr.mxu0 0.0
        %1572 = vmatpush1.msra.mxu0 0.0
        %1573 = vmatprep.subr.mxu0 0.0
        %1574 = vmatpush1.msra.mxu0 0.0
        %1575 = vmatprep.subr.mxu0 0.0
        %1576 = vmatpush1.msra.mxu0 0.0
        %1577 = vmatprep.subr.mxu0 0.0
        %1578 = vmatpush1.msra.mxu0 0.0
        %1579 = vmatprep.subr.mxu0 0.0
        %1580 = vmatpush1.msra.mxu0 0.0
        %1581 = vmatprep.subr.mxu0 0.0
        %1582 = vmatpush1.msra.mxu0 0.0
        %1583 = vmatprep.subr.mxu0 0.0
        %1584 = vmatpush1.msra.mxu0 0.0
        %1585 = vmatprep.subr.mxu0 0.0
        %1586 = vmatpush1.msra.mxu0 0.0
        %1587 = vmatprep.subr.mxu0 0.0
        %1588 = vmatpush1.msra.mxu0 0.0
        %1589 = vmatprep.subr.mxu0 0.0
        %1590 = vmatpush1.msra.mxu0 0.0
        %1591 = vmatprep.subr.mxu0 0.0
        %1592 = vmatpush1.msra.mxu0 0.0
        %1593 = vmatprep.subr.mxu0 0.0
        %1594 = vmatpush1.msra.mxu0 0.0
        %1595 = vmatprep.subr.mxu0 0.0
        %1596 = vmatpush1.msra.mxu0 0.0
        %1597 = vmatprep.subr.mxu0 0.0
        %1598 = vmatpush1.msra.mxu0 0.0
        %1599 = vmatprep.mubr.f32.mxu0 0.0
        %1600 = vmatmul.mubr.f32.gmra.mrb[0].mxu0 %v1510
        %v1601 = vpop.f32.mrb[0].mxu0
        %v1602 = vadd.f32 %v1533, %v1601
        %v1603 = vpop.f32.mrb[0].mxu0
        %1604 = vmatprep.mubr.f32.mxu0 0.0
        %1605 = vmatmul.mubr.f32.gmra.mrb[0].mxu0 %v1511
        %v1606 = vpop.f32.mrb[0].mxu0
        %v1607 = vadd.f32 %v1533, %v1606
        %v1608 = vpop.f32.mrb[0].mxu0
        %1609 = vdwg.mxu0
        %v1610 = vmax.f32 %v1602, 0.0
        %v1611 = vmax.f32 %v1607, 0.0
        %1613 = vset.pattern.permute.xlu0 0
        %1614 = vperm.xlu0 %1613, %v1107
        %v1615 = vpop.permute.xlu0 %1614
        %1618 = vset.pattern.permute.xlu0 0
        %1619 = vperm.xlu0 %1618, %v1108
        %v1620 = vpop.permute.xlu0 %1619
        %v1622 = vmul.f32 %v1610, %v1615
        %v1623 = vmul.f32 %v1611, %v1620
        %1624 = vadd.xlane.f32.xlu0 %v1622
        %v1625 = vpop.xlane.xlu0 %1624
        %1626 = vadd.xlane.f32.xlu0 %v1623
        %v1627 = vpop.xlane.xlu0 %1626
        %v1628 = vmul.f32 %v1380, %v1380
        %v1629 = vmul.f32 %v1381, %v1381
        %1630 = vadd.xlane.f32.xlu0 %v1628
        %v1631 = vpop.xlane.xlu0 %1630
        %1632 = vadd.xlane.f32.xlu0 %v1629
        %v1633 = vpop.xlane.xlu0 %1632
        %v1634 = vrsqrt.pop %v1631
        %v1635 = vmul.f32 %v1631, %v1634
        %vm1636 = vcmp.eq.f32.partialorder %v1631, inf
        %v1637 = vsel %vm1636, %v1631, %v1635
        %vm1638 = vcmp.eq.f32.partialorder %v1631, 0.0
        %v1639 = vand.u32 %v1631, 2147483648
        %v1640 = vsel %vm1638, %v1639, %v1637
        %v1641 = vrsqrt.pop %v1633
        %v1642 = vmul.f32 %v1633, %v1641
        %vm1643 = vcmp.eq.f32.partialorder %v1633, inf
        %v1644 = vsel %vm1643, %v1633, %v1642
        %vm1645 = vcmp.eq.f32.partialorder %v1633, 0.0
        %v1646 = vand.u32 %v1633, 2147483648
        %v1647 = vsel %vm1645, %v1646, %v1644
        %v1648 = vmax.f32 %v1640, 1e-09
        %v1649 = vmax.f32 %v1647, 1e-09
        %v1650 = vrsqrt.pop %v1648
        %v1651 = vmul.f32 %v1648, %v1650
        %vm1652 = vcmp.eq.f32.partialorder %v1648, inf
        %v1653 = vsel %vm1652, %v1648, %v1651
        %vm1654 = vcmp.eq.f32.partialorder %v1648, 0.0
        %v1655 = vand.u32 %v1648, 2147483648
        %v1656 = vsel %vm1654, %v1655, %v1653
        %v1657 = vrsqrt.pop %v1649
        %v1658 = vmul.f32 %v1649, %v1657
        %vm1659 = vcmp.eq.f32.partialorder %v1649, inf
        %v1660 = vsel %vm1659, %v1649, %v1658
        %vm1661 = vcmp.eq.f32.partialorder %v1649, 0.0
        %v1662 = vand.u32 %v1649, 2147483648
        %v1663 = vsel %vm1661, %v1662, %v1660
        %v1664 = vmul.f32 %v1656, 0.5
        %v1665 = vmul.f32 %v1663, 0.5
        %v1666 = vsub.f32 0.0, %v1664
        %v1667 = vsub.f32 0.0, %v1665
        %v1668 = vrcp.pop 0.3
        %v1669 = vmul.f32 %v1666, %v1668
        %v1670 = vmul.f32 %v1667, %v1668
        %v1671 = vmul.f32 %v1669, 1.442695
        %v1672 = vpow.pop %v1671
        %v1673 = vmul.f32 %v1670, 1.442695
        %v1674 = vpow.pop %v1673
        %vm1675 = vcmp.gt.f32.partialorder %v1640, 0.0
        %vm1676 = vcmp.gt.f32.partialorder %v1647, 0.0
        %v1677 = vmax.f32 %v1640, 1e-30
        %v1678 = vmax.f32 %v1647, 1e-30
        %v1679 = vrcp.pop %v1677
        %v1680 = vrcp.pop %v1678
        %v1681 = vsel %vm1675, %v1679, 0.0
        %v1682 = vsel %vm1676, %v1680, 0.0
        %v1683 = vmul.f32 %v1380, %v1681
        %v1684 = vmul.f32 %v1381, %v1682
        %vm1685 = vcmp.ge.f32.partialorder %v1640, 1e-09
        %vm1686 = vcmp.ge.f32.partialorder %v1647, 1e-09
        %v1687 = vsel %vm1685, 1, 0
        %v1688 = vsel %vm1686, 1, 0
        %v1689 = vcvt.s32.f32 %v1687
        %v1690 = vcvt.s32.f32 %v1688
        %v1691 = vsub.f32 0.0, %v1672
        %v1692 = vsub.f32 0.0, %v1674
        %v1693 = vmul.f32 %v1691, %v1668
        %v1694 = vmul.f32 %v1692, %v1668
        %v1695 = vmul.f32 %v1625, %v1693
        %v1696 = vmul.f32 %v1627, %v1694
        %v1697 = vrsqrt.pop %v1648
        %v1698 = vrsqrt.pop %v1649
        %v1699 = vmul.f32 %v1697, 0.25
        %v1700 = vmul.f32 %v1698, 0.25
        %v1701 = vmul.f32 %v1695, %v1699
        %v1702 = vmul.f32 %v1696, %v1700
        %v1703 = vmul.f32 %v1701, %v1689
        %v1704 = vmul.f32 %v1702, %v1690
        %v1705 = vmul.f32 %v1703, %v1683
        %v1706 = vmul.f32 %v1704, %v1684
        %v1707 = vpack.c.bf16 %v1509, %v1508
        %v1708 = vpack.c.bf16 %v1706, %v1705
        %v1709 = vunpack.c.l.bf16 %v1707
        %v1710 = vunpack.c.l.bf16 %v1708
        %v1711 = vunpack.c.h.bf16 %v1707
        %v1712 = vunpack.c.h.bf16 %v1708
        %v1713 = vsub.f32 %v1508, %v1709
        %v1714 = vsub.f32 %v1705, %v1710
        %v1715 = vsub.f32 %v1509, %v1711
        %v1716 = vsub.f32 %v1706, %v1712
        %v1717 = vpack.c.bf16 %v1715, %v1713
        %v1718 = vpack.c.bf16 %v1716, %v1714
        %v1719 = vld [vmem:[#allocation4] sm:$0xff]
        %v1720 = vld [vmem:[#allocation4 + $0x8] sm:$0xff]
        %v1721 = vld [vmem:[#allocation4 + $0x10] sm:$0xff]
        %v1722 = vld [vmem:[#allocation4 + $0x18] sm:$0xff]
        %1723 = vxpose.xlu0.c.b16.start [1/8] %v1138, 128
        %1724 = vxpose.xlu0.c.b16.cont [2/8] 0, 128
        %1725 = vxpose.xlu0.c.b16.cont [3/8] 0, 128
        %1726 = vxpose.xlu0.c.b16.cont [4/8] 0, 128
        %1727 = vxpose.xlu0.c.b16.cont [5/8] 0, 128
        %1728 = vxpose.xlu0.c.b16.cont [6/8] 0, 128
        %1729 = vxpose.xlu0.c.b16.cont [7/8] 0, 128
        %1730 = vxpose.xlu0.c.b16.end [8/8] 0, 128
        %v1731 = vpop.trf.xlu0
        %v1732 = vpop.trf.xlu0
        %v1733 = vpop.trf.xlu0
        %v1734 = vpop.trf.xlu0
        %v1735 = vpop.trf.xlu0
        %v1736 = vpop.trf.xlu0
        %v1737 = vpop.trf.xlu0
        %v1738 = vpop.trf.xlu0
        %v1740 = vsel %vm1142, %v1731, 0
        %1742 = vmatprep.subr.bf16.mxu0 %v1718
        %1743 = vmatpush1.bf16.msra.mxu0 %v1717
        %1744 = vmatprep.subr.bf16.mxu0 0
        %1745 = vmatpush1.bf16.msra.mxu0 0
        %1746 = vmatprep.subr.bf16.mxu0 0
        %1747 = vmatpush1.bf16.msra.mxu0 0
        %1748 = vmatprep.subr.bf16.mxu0 0
        %1749 = vmatpush1.bf16.msra.mxu0 0
        %1750 = vmatprep.subr.bf16.mxu0 0
        %1751 = vmatpush1.bf16.msra.mxu0 0
        %1752 = vmatprep.subr.bf16.mxu0 0
        %1753 = vmatpush1.bf16.msra.mxu0 0
        %1754 = vmatprep.subr.bf16.mxu0 0
        %1755 = vmatpush1.bf16.msra.mxu0 0
        %1756 = vmatprep.subr.bf16.mxu0 0
        %1757 = vmatpush1.bf16.msra.mxu0 0
        %1758 = vmatprep.subr.bf16.mxu0 0
        %1759 = vmatpush1.bf16.msra.mxu0 0
        %1760 = vmatprep.subr.bf16.mxu0 0
        %1761 = vmatpush1.bf16.msra.mxu0 0
        %1762 = vmatprep.subr.bf16.mxu0 0
        %1763 = vmatpush1.bf16.msra.mxu0 0
        %1764 = vmatprep.subr.bf16.mxu0 0
        %1765 = vmatpush1.bf16.msra.mxu0 0
        %1766 = vmatprep.subr.bf16.mxu0 0
        %1767 = vmatpush1.bf16.msra.mxu0 0
        %1768 = vmatprep.subr.bf16.mxu0 0
        %1769 = vmatpush1.bf16.msra.mxu0 0
        %1770 = vmatprep.subr.bf16.mxu0 0
        %1771 = vmatpush1.bf16.msra.mxu0 0
        %1772 = vmatprep.subr.bf16.mxu0 0
        %1773 = vmatpush1.bf16.msra.mxu0 0
        %1774 = vmatprep.mubr.bf16.mxu0 0
        %1775 = vmatmul.mubr.bf16.gmra.mrb[0].mxu0 %v1740
        %v1776 = vpop.f32.mrb[0].mxu0
        %v1777 = vadd.f32 0.0, %v1776
        %v1778 = vpop.f32.mrb[0].mxu0
        %v1779 = vadd.f32 0.0, %v1778
        %v1780 = vpop.f32.mrb[0].mxu0
        %v1781 = vadd.f32 0.0, %v1780
        %v1782 = vpop.f32.mrb[0].mxu0
        %v1783 = vadd.f32 0.0, %v1782
        %1784 = vdwg.mxu0
        %1785 = vmatprep.subr.bf16.mxu0 %v1708
        %1786 = vmatpush1.bf16.msra.mxu0 %v1707
        %1787 = vmatprep.subr.bf16.mxu0 0
        %1788 = vmatpush1.bf16.msra.mxu0 0
        %1789 = vmatprep.subr.bf16.mxu0 0
        %1790 = vmatpush1.bf16.msra.mxu0 0
        %1791 = vmatprep.subr.bf16.mxu0 0
        %1792 = vmatpush1.bf16.msra.mxu0 0
        %1793 = vmatprep.subr.bf16.mxu0 0
        %1794 = vmatpush1.bf16.msra.mxu0 0
        %1795 = vmatprep.subr.bf16.mxu0 0
        %1796 = vmatpush1.bf16.msra.mxu0 0
        %1797 = vmatprep.subr.bf16.mxu0 0
        %1798 = vmatpush1.bf16.msra.mxu0 0
        %1799 = vmatprep.subr.bf16.mxu0 0
        %1800 = vmatpush1.bf16.msra.mxu0 0
        %1801 = vmatprep.subr.bf16.mxu0 0
        %1802 = vmatpush1.bf16.msra.mxu0 0
        %1803 = vmatprep.subr.bf16.mxu0 0
        %1804 = vmatpush1.bf16.msra.mxu0 0
        %1805 = vmatprep.subr.bf16.mxu0 0
        %1806 = vmatpush1.bf16.msra.mxu0 0
        %1807 = vmatprep.subr.bf16.mxu0 0
        %1808 = vmatpush1.bf16.msra.mxu0 0
        %1809 = vmatprep.subr.bf16.mxu0 0
        %1810 = vmatpush1.bf16.msra.mxu0 0
        %1811 = vmatprep.subr.bf16.mxu0 0
        %1812 = vmatpush1.bf16.msra.mxu0 0
        %1813 = vmatprep.subr.bf16.mxu0 0
        %1814 = vmatpush1.bf16.msra.mxu0 0
        %1815 = vmatprep.subr.bf16.mxu0 0
        %1816 = vmatpush1.bf16.msra.mxu0 0
        %1817 = vmatprep.mubr.bf16.mxu0 0
        %1818 = vmatmul.mubr.bf16.gmra.mrb[0].mxu0 %v1740
        %v1819 = vpop.f32.mrb[0].mxu0
        %v1820 = vadd.f32 %v1777, %v1819
        %v1821 = vpop.f32.mrb[0].mxu0
        %v1822 = vadd.f32 %v1779, %v1821
        %v1823 = vpop.f32.mrb[0].mxu0
        %v1824 = vadd.f32 %v1781, %v1823
        %v1825 = vpop.f32.mrb[0].mxu0
        %v1826 = vadd.f32 %v1783, %v1825
        %1827 = vdwg.mxu0
        %v1828 = vadd.f32 %v1719, %v1820
        %v1829 = vadd.f32 %v1720, %v1822
        %v1830 = vadd.f32 %v1721, %v1824
        %v1831 = vadd.f32 %v1722, %v1826
        %1832 = vst [vmem:[#allocation4] sm:$0xff] %v1828
        %1833 = vst [vmem:[#allocation4 + $0x8] sm:$0xff] %v1829
        %1834 = vst [vmem:[#allocation4 + $0x10] sm:$0xff] %v1830
        %1835 = vst [vmem:[#allocation4 + $0x18] sm:$0xff] %v1831
        %vm1836 = vcmp.gt.f32.partialorder %v1380, 0.0
        %vm1837 = vcmp.gt.f32.partialorder %v1381, 0.0
        %v1838 = vmul.f32 %v1380, 0.01
        %v1839 = vmul.f32 %v1381, 0.01
        %v1840 = vsel %vm1836, %v1380, %v1838
        %v1841 = vsel %vm1837, %v1381, %v1839
        %v1842 = vadd.f32 %v1101, %v1840
        %v1843 = vadd.f32 %v1102, %v1841
        %1844 = vst [vmem:[%s925] sm:$0xff] %v1842
        %1845 = vst [vmem:[%s925 + $0x8] sm:$0xff] %v1843
        %p1846 = scmp.eq.s32.totalorder %s48, 2
        // Predicated region
        $region145: #{tpu_custom_call.1} parent=103 // pred_check
          %p1847 = pneg %p1846
        $region146: #{tpu_custom_call.1} parent=103 // pred_check_branch
          %1849 = sbr.rel (%p1847) target = $region148
        $region147: #{tpu_custom_call.1} parent=103 // pred_region
          %v1850 = vld [vmem:[#allocation8] sm:$0xff]
          %v1851 = vld [vmem:[#allocation8 + $0x8] sm:$0xff]
          %v1852 = vld [vmem:[#allocation10] sm:$0xff]
          %v1853 = vld [vmem:[#allocation10 + $0x8] sm:$0xff]
          %v1854 = vld [vmem:[#allocation11] sm:$0xff]
          %v1855 = vld [vmem:[#allocation11 + $0x8] sm:$0xff]
          %v1856 = vld [vmem:[#allocation13] sm:$0xff]
          %v1857 = vld [vmem:[#allocation13 + $0x8] sm:$0xff]
          %v1858 = vld [vmem:[#allocation13 + $0x10] sm:$0xff]
          %v1859 = vld [vmem:[#allocation13 + $0x18] sm:$0xff]
          %v1860 = vld [vmem:[#allocation13 + $0x20] sm:$0xff]
          %v1861 = vld [vmem:[#allocation13 + $0x28] sm:$0xff]
          %v1862 = vld [vmem:[#allocation13 + $0x30] sm:$0xff]
          %v1863 = vld [vmem:[#allocation13 + $0x38] sm:$0xff]
          %v1864 = vld [vmem:[#allocation13 + $0x40] sm:$0xff]
          %v1865 = vld [vmem:[#allocation13 + $0x48] sm:$0xff]
          %v1866 = vld [vmem:[#allocation13 + $0x50] sm:$0xff]
          %v1867 = vld [vmem:[#allocation13 + $0x58] sm:$0xff]
          %v1868 = vld [vmem:[#allocation13 + $0x60] sm:$0xff]
          %v1869 = vld [vmem:[#allocation13 + $0x68] sm:$0xff]
          %v1870 = vld [vmem:[#allocation13 + $0x70] sm:$0xff]
          %v1871 = vld [vmem:[#allocation13 + $0x78] sm:$0xff]
          %v1872 = vld [vmem:[#allocation13 + $0x80] sm:$0xff]
          %v1873 = vld [vmem:[#allocation13 + $0x88] sm:$0xff]
          %v1874 = vld [vmem:[#allocation13 + $0x90] sm:$0xff]
          %v1875 = vld [vmem:[#allocation13 + $0x98] sm:$0xff]
          %v1876 = vld [vmem:[#allocation13 + $0xa0] sm:$0xff]
          %v1877 = vld [vmem:[#allocation13 + $0xa8] sm:$0xff]
          %v1878 = vld [vmem:[#allocation13 + $0xb0] sm:$0xff]
          %v1879 = vld [vmem:[#allocation13 + $0xb8] sm:$0xff]
          %v1880 = vld [vmem:[#allocation13 + $0xc0] sm:$0xff]
          %v1881 = vld [vmem:[#allocation13 + $0xc8] sm:$0xff]
          %v1882 = vld [vmem:[#allocation13 + $0xd0] sm:$0xff]
          %v1883 = vld [vmem:[#allocation13 + $0xd8] sm:$0xff]
          %v1884 = vld [vmem:[#allocation13 + $0xe0] sm:$0xff]
          %v1885 = vld [vmem:[#allocation13 + $0xe8] sm:$0xff]
          %v1886 = vld [vmem:[#allocation13 + $0xf0] sm:$0xff]
          %v1887 = vld [vmem:[#allocation13 + $0xf8] sm:$0xff]
          %v1888 = vld [vmem:[%s10] sm:$0x3]
          %v1890 = vlaneseq
          %v1891 = vshrl.u32 %v1890, 7
          %v1892 = vsub.s32 0, %v1891
          %v1893 = vrot.slane %v1888, %v1892
          %v1894 = vlaneseq
          %v1895 = vshrl.u32 %v1894, 7
          %v1896 = vsub.s32 1, %v1895
          %v1897 = vrot.slane %v1888, %v1896
          %1900 = vmatprep.subr.mxu0 %v1857
          %1901 = vmatpush1.msra.mxu0 %v1856
          %1902 = vmatprep.subr.mxu0 %v1859
          %1903 = vmatpush1.msra.mxu0 %v1858
          %1904 = vmatprep.subr.mxu0 %v1861
          %1905 = vmatpush1.msra.mxu0 %v1860
          %1906 = vmatprep.subr.mxu0 %v1863
          %1907 = vmatpush1.msra.mxu0 %v1862
          %1908 = vmatprep.subr.mxu0 %v1865
          %1909 = vmatpush1.msra.mxu0 %v1864
          %1910 = vmatprep.subr.mxu0 %v1867
          %1911 = vmatpush1.msra.mxu0 %v1866
          %1912 = vmatprep.subr.mxu0 %v1869
          %1913 = vmatpush1.msra.mxu0 %v1868
          %1914 = vmatprep.subr.mxu0 %v1871
          %1915 = vmatpush1.msra.mxu0 %v1870
          %1916 = vmatprep.subr.mxu0 %v1873
          %1917 = vmatpush1.msra.mxu0 %v1872
          %1918 = vmatprep.subr.mxu0 %v1875
          %1919 = vmatpush1.msra.mxu0 %v1874
          %1920 = vmatprep.subr.mxu0 %v1877
          %1921 = vmatpush1.msra.mxu0 %v1876
          %1922 = vmatprep.subr.mxu0 %v1879
          %1923 = vmatpush1.msra.mxu0 %v1878
          %1924 = vmatprep.subr.mxu0 %v1881
          %1925 = vmatpush1.msra.mxu0 %v1880
          %1926 = vmatprep.subr.mxu0 %v1883
          %1927 = vmatpush1.msra.mxu0 %v1882
          %1928 = vmatprep.subr.mxu0 %v1885
          %1929 = vmatpush1.msra.mxu0 %v1884
          %1930 = vmatprep.subr.mxu0 %v1887
          %1931 = vmatpush1.msra.mxu0 %v1886
          %1932 = vmatprep.subr.mxu0 0.0
          %1933 = vmatpush1.msra.mxu0 0.0
          %1934 = vmatprep.subr.mxu0 0.0
          %1935 = vmatpush1.msra.mxu0 0.0
          %1936 = vmatprep.subr.mxu0 0.0
          %1937 = vmatpush1.msra.mxu0 0.0
          %1938 = vmatprep.subr.mxu0 0.0
          %1939 = vmatpush1.msra.mxu0 0.0
          %1940 = vmatprep.subr.mxu0 0.0
          %1941 = vmatpush1.msra.mxu0 0.0
          %1942 = vmatprep.subr.mxu0 0.0
          %1943 = vmatpush1.msra.mxu0 0.0
          %1944 = vmatprep.subr.mxu0 0.0
          %1945 = vmatpush1.msra.mxu0 0.0
          %1946 = vmatprep.subr.mxu0 0.0
          %1947 = vmatpush1.msra.mxu0 0.0
          %1948 = vmatprep.subr.mxu0 0.0
          %1949 = vmatpush1.msra.mxu0 0.0
          %1950 = vmatprep.subr.mxu0 0.0
          %1951 = vmatpush1.msra.mxu0 0.0
          %1952 = vmatprep.subr.mxu0 0.0
          %1953 = vmatpush1.msra.mxu0 0.0
          %1954 = vmatprep.subr.mxu0 0.0
          %1955 = vmatpush1.msra.mxu0 0.0
          %1956 = vmatprep.subr.mxu0 0.0
          %1957 = vmatpush1.msra.mxu0 0.0
          %1958 = vmatprep.subr.mxu0 0.0
          %1959 = vmatpush1.msra.mxu0 0.0
          %1960 = vmatprep.subr.mxu0 0.0
          %1961 = vmatpush1.msra.mxu0 0.0
          %1962 = vmatprep.subr.mxu0 0.0
          %1963 = vmatpush1.msra.mxu0 0.0
          %1964 = vmatprep.mubr.f32.mxu0 0.0
          %1965 = vmatmul.mubr.f32.gmra.mrb[0].mxu0 %v1850
          %v1966 = vpop.f32.mrb[0].mxu0
          %v1967 = vadd.f32 %v1893, %v1966
          %v1968 = vpop.f32.mrb[0].mxu0
          %v1969 = vadd.f32 %v1897, %v1968
          %1970 = vmatprep.mubr.f32.mxu0 0.0
          %1971 = vmatmul.mubr.f32.gmra.mrb[0].mxu0 %v1851
          %v1972 = vpop.f32.mrb[0].mxu0
          %v1973 = vadd.f32 %v1893, %v1972
          %v1974 = vpop.f32.mrb[0].mxu0
          %v1975 = vadd.f32 %v1897, %v1974
          %1976 = vdwg.mxu0
          %v1977 = vld [vmem:[%s13] sm:$0xff]
          %v1978 = vld [vmem:[%s13 + $0x8] sm:$0xff]
          %v1979 = vld [vmem:[%s13 + $0x10] sm:$0xff]
          %v1980 = vld [vmem:[%s13 + $0x18] sm:$0xff]
          %v1981 = vld [vmem:[%s13 + $0x20] sm:$0xff]
          %v1982 = vld [vmem:[%s13 + $0x28] sm:$0xff]
          %v1983 = vld [vmem:[%s13 + $0x30] sm:$0xff]
          %v1984 = vld [vmem:[%s13 + $0x38] sm:$0xff]
          %v1985 = vld [vmem:[%s13 + $0x40] sm:$0xff]
          %v1986 = vld [vmem:[%s13 + $0x48] sm:$0xff]
          %v1987 = vld [vmem:[%s13 + $0x50] sm:$0xff]
          %v1988 = vld [vmem:[%s13 + $0x58] sm:$0xff]
          %v1989 = vld [vmem:[%s13 + $0x60] sm:$0xff]
          %v1990 = vld [vmem:[%s13 + $0x68] sm:$0xff]
          %v1991 = vld [vmem:[%s13 + $0x70] sm:$0xff]
          %v1992 = vld [vmem:[%s13 + $0x78] sm:$0xff]
          %v1993 = vld [vmem:[%s13 + $0x80] sm:$0xff]
          %v1994 = vld [vmem:[%s13 + $0x88] sm:$0xff]
          %v1995 = vld [vmem:[%s13 + $0x90] sm:$0xff]
          %v1996 = vld [vmem:[%s13 + $0x98] sm:$0xff]
          %v1997 = vld [vmem:[%s13 + $0xa0] sm:$0xff]
          %v1998 = vld [vmem:[%s13 + $0xa8] sm:$0xff]
          %v1999 = vld [vmem:[%s13 + $0xb0] sm:$0xff]
          %v2000 = vld [vmem:[%s13 + $0xb8] sm:$0xff]
          %v2001 = vld [vmem:[%s13 + $0xc0] sm:$0xff]
          %v2002 = vld [vmem:[%s13 + $0xc8] sm:$0xff]
          %v2003 = vld [vmem:[%s13 + $0xd0] sm:$0xff]
          %v2004 = vld [vmem:[%s13 + $0xd8] sm:$0xff]
          %v2005 = vld [vmem:[%s13 + $0xe0] sm:$0xff]
          %v2006 = vld [vmem:[%s13 + $0xe8] sm:$0xff]
          %v2007 = vld [vmem:[%s13 + $0xf0] sm:$0xff]
          %v2008 = vld [vmem:[%s13 + $0xf8] sm:$0xff]
          %v2009 = vld [vmem:[%s14] sm:$0x3]
          %v2011 = vlaneseq
          %v2012 = vshrl.u32 %v2011, 7
          %v2013 = vsub.s32 0, %v2012
          %v2014 = vrot.slane %v2009, %v2013
          %v2015 = vlaneseq
          %v2016 = vshrl.u32 %v2015, 7
          %v2017 = vsub.s32 1, %v2016
          %v2018 = vrot.slane %v2009, %v2017
          %2021 = vmatprep.subr.mxu0 %v1978
          %2022 = vmatpush1.msra.mxu0 %v1977
          %2023 = vmatprep.subr.mxu0 %v1980
          %2024 = vmatpush1.msra.mxu0 %v1979
          %2025 = vmatprep.subr.mxu0 %v1982
          %2026 = vmatpush1.msra.mxu0 %v1981
          %2027 = vmatprep.subr.mxu0 %v1984
          %2028 = vmatpush1.msra.mxu0 %v1983
          %2029 = vmatprep.subr.mxu0 %v1986
          %2030 = vmatpush1.msra.mxu0 %v1985
          %2031 = vmatprep.subr.mxu0 %v1988
          %2032 = vmatpush1.msra.mxu0 %v1987
          %2033 = vmatprep.subr.mxu0 %v1990
          %2034 = vmatpush1.msra.mxu0 %v1989
          %2035 = vmatprep.subr.mxu0 %v1992
          %2036 = vmatpush1.msra.mxu0 %v1991
          %2037 = vmatprep.subr.mxu0 %v1994
          %2038 = vmatpush1.msra.mxu0 %v1993
          %2039 = vmatprep.subr.mxu0 %v1996
          %2040 = vmatpush1.msra.mxu0 %v1995
          %2041 = vmatprep.subr.mxu0 %v1998
          %2042 = vmatpush1.msra.mxu0 %v1997
          %2043 = vmatprep.subr.mxu0 %v2000
          %2044 = vmatpush1.msra.mxu0 %v1999
          %2045 = vmatprep.subr.mxu0 %v2002
          %2046 = vmatpush1.msra.mxu0 %v2001
          %2047 = vmatprep.subr.mxu0 %v2004
          %2048 = vmatpush1.msra.mxu0 %v2003
          %2049 = vmatprep.subr.mxu0 %v2006
          %2050 = vmatpush1.msra.mxu0 %v2005
          %2051 = vmatprep.subr.mxu0 %v2008
          %2052 = vmatpush1.msra.mxu0 %v2007
          %2053 = vmatprep.subr.mxu0 0.0
          %2054 = vmatpush1.msra.mxu0 0.0
          %2055 = vmatprep.subr.mxu0 0.0
          %2056 = vmatpush1.msra.mxu0 0.0
          %2057 = vmatprep.subr.mxu0 0.0
          %2058 = vmatpush1.msra.mxu0 0.0
          %2059 = vmatprep.subr.mxu0 0.0
          %2060 = vmatpush1.msra.mxu0 0.0
          %2061 = vmatprep.subr.mxu0 0.0
          %2062 = vmatpush1.msra.mxu0 0.0
          %2063 = vmatprep.subr.mxu0 0.0
          %2064 = vmatpush1.msra.mxu0 0.0
          %2065 = vmatprep.subr.mxu0 0.0
          %2066 = vmatpush1.msra.mxu0 0.0
          %2067 = vmatprep.subr.mxu0 0.0
          %2068 = vmatpush1.msra.mxu0 0.0
          %2069 = vmatprep.subr.mxu0 0.0
          %2070 = vmatpush1.msra.mxu0 0.0
          %2071 = vmatprep.subr.mxu0 0.0
          %2072 = vmatpush1.msra.mxu0 0.0
          %2073 = vmatprep.subr.mxu0 0.0
          %2074 = vmatpush1.msra.mxu0 0.0
          %2075 = vmatprep.subr.mxu0 0.0
          %2076 = vmatpush1.msra.mxu0 0.0
          %2077 = vmatprep.subr.mxu0 0.0
          %2078 = vmatpush1.msra.mxu0 0.0
          %2079 = vmatprep.subr.mxu0 0.0
          %2080 = vmatpush1.msra.mxu0 0.0
          %2081 = vmatprep.subr.mxu0 0.0
          %2082 = vmatpush1.msra.mxu0 0.0
          %2083 = vmatprep.subr.mxu0 0.0
          %2084 = vmatpush1.msra.mxu0 0.0
          %2085 = vmatprep.mubr.f32.mxu0 0.0
          %2086 = vmatmul.mubr.f32.gmra.mrb[0].mxu0 %v1854
          %v2087 = vpop.f32.mrb[0].mxu0
          %v2088 = vadd.f32 %v2014, %v2087
          %v2089 = vpop.f32.mrb[0].mxu0
          %v2090 = vadd.f32 %v2018, %v2089
          %2091 = vmatprep.mubr.f32.mxu0 0.0
          %2092 = vmatmul.mubr.f32.gmra.mrb[0].mxu0 %v1855
          %v2093 = vpop.f32.mrb[0].mxu0
          %v2094 = vadd.f32 %v2014, %v2093
          %v2095 = vpop.f32.mrb[0].mxu0
          %v2096 = vadd.f32 %v2018, %v2095
          %2097 = vdwg.mxu0
          %v2098 = vld [vmem:[#allocation14 + $0x10] sm:$0xff]
          %v2099 = vld [vmem:[#allocation14 + $0x28] sm:$0xff]
          %v2100 = vld [vmem:[#allocation14 + $0x40] sm:$0xff]
          %v2101 = vld [vmem:[#allocation14 + $0x58] sm:$0xff]
          %v2102 = vld [vmem:[#allocation14 + $0x70] sm:$0xff]
          %v2103 = vld [vmem:[#allocation14 + $0x88] sm:$0xff]
          %v2104 = vld [vmem:[#allocation14 + $0xa0] sm:$0xff]
          %v2105 = vld [vmem:[#allocation14 + $0xb8] sm:$0xff]
          %v2106 = vld [vmem:[#allocation14 + $0xd0] sm:$0xff]
          %v2107 = vld [vmem:[#allocation14 + $0xe8] sm:$0xff]
          %v2108 = vld [vmem:[#allocation14 + $0x100] sm:$0xff]
          %v2109 = vld [vmem:[#allocation14 + $0x118] sm:$0xff]
          %v2110 = vld [vmem:[#allocation14 + $0x130] sm:$0xff]
          %v2111 = vld [vmem:[#allocation14 + $0x148] sm:$0xff]
          %v2112 = vld [vmem:[#allocation14 + $0x160] sm:$0xff]
          %v2113 = vld [vmem:[#allocation14 + $0x178] sm:$0xff]
          %v2114 = vld [vmem:[%s12 + $0x2] sm:$0x1]
          %v2116 = vlaneseq
          %v2117 = vshrl.u32 %v2116, 7
          %v2118 = vsub.s32 0, %v2117
          %v2119 = vrot.slane %v2114, %v2118
          %2121 = vmatprep.subr.mxu0 0.0
          %2122 = vmatpush1.msra.mxu0 %v2098
          %2123 = vmatprep.subr.mxu0 0.0
          %2124 = vmatpush1.msra.mxu0 %v2099
          %2125 = vmatprep.subr.mxu0 0.0
          %2126 = vmatpush1.msra.mxu0 %v2100
          %2127 = vmatprep.subr.mxu0 0.0
          %2128 = vmatpush1.msra.mxu0 %v2101
          %2129 = vmatprep.subr.mxu0 0.0
          %2130 = vmatpush1.msra.mxu0 %v2102
          %2131 = vmatprep.subr.mxu0 0.0
          %2132 = vmatpush1.msra.mxu0 %v2103
          %2133 = vmatprep.subr.mxu0 0.0
          %2134 = vmatpush1.msra.mxu0 %v2104
          %2135 = vmatprep.subr.mxu0 0.0
          %2136 = vmatpush1.msra.mxu0 %v2105
          %2137 = vmatprep.subr.mxu0 0.0
          %2138 = vmatpush1.msra.mxu0 %v2106
          %2139 = vmatprep.subr.mxu0 0.0
          %2140 = vmatpush1.msra.mxu0 %v2107
          %2141 = vmatprep.subr.mxu0 0.0
          %2142 = vmatpush1.msra.mxu0 %v2108
          %2143 = vmatprep.subr.mxu0 0.0
          %2144 = vmatpush1.msra.mxu0 %v2109
          %2145 = vmatprep.subr.mxu0 0.0
          %2146 = vmatpush1.msra.mxu0 %v2110
          %2147 = vmatprep.subr.mxu0 0.0
          %2148 = vmatpush1.msra.mxu0 %v2111
          %2149 = vmatprep.subr.mxu0 0.0
          %2150 = vmatpush1.msra.mxu0 %v2112
          %2151 = vmatprep.subr.mxu0 0.0
          %2152 = vmatpush1.msra.mxu0 %v2113
          %2153 = vmatprep.subr.mxu0 0.0
          %2154 = vmatpush1.msra.mxu0 0.0
          %2155 = vmatprep.subr.mxu0 0.0
          %2156 = vmatpush1.msra.mxu0 0.0
          %2157 = vmatprep.subr.mxu0 0.0
          %2158 = vmatpush1.msra.mxu0 0.0
          %2159 = vmatprep.subr.mxu0 0.0
          %2160 = vmatpush1.msra.mxu0 0.0
          %2161 = vmatprep.subr.mxu0 0.0
          %2162 = vmatpush1.msra.mxu0 0.0
          %2163 = vmatprep.subr.mxu0 0.0
          %2164 = vmatpush1.msra.mxu0 0.0
          %2165 = vmatprep.subr.mxu0 0.0
          %2166 = vmatpush1.msra.mxu0 0.0
          %2167 = vmatprep.subr.mxu0 0.0
          %2168 = vmatpush1.msra.mxu0 0.0
          %2169 = vmatprep.subr.mxu0 0.0
          %2170 = vmatpush1.msra.mxu0 0.0
          %2171 = vmatprep.subr.mxu0 0.0
          %2172 = vmatpush1.msra.mxu0 0.0
          %2173 = vmatprep.subr.mxu0 0.0
          %2174 = vmatpush1.msra.mxu0 0.0
          %2175 = vmatprep.subr.mxu0 0.0
          %2176 = vmatpush1.msra.mxu0 0.0
          %2177 = vmatprep.subr.mxu0 0.0
          %2178 = vmatpush1.msra.mxu0 0.0
          %2179 = vmatprep.subr.mxu0 0.0
          %2180 = vmatpush1.msra.mxu0 0.0
          %2181 = vmatprep.subr.mxu0 0.0
          %2182 = vmatpush1.msra.mxu0 0.0
          %2183 = vmatprep.subr.mxu0 0.0
          %2184 = vmatpush1.msra.mxu0 0.0
          %2185 = vmatprep.mubr.f32.mxu0 0.0
          %2186 = vmatmul.mubr.f32.gmra.mrb[0].mxu0 %v1852
          %v2187 = vpop.f32.mrb[0].mxu0
          %v2188 = vadd.f32 %v2119, %v2187
          %v2189 = vpop.f32.mrb[0].mxu0
          %2190 = vmatprep.mubr.f32.mxu0 0.0
          %2191 = vmatmul.mubr.f32.gmra.mrb[0].mxu0 %v1853
          %v2192 = vpop.f32.mrb[0].mxu0
          %v2193 = vadd.f32 %v2119, %v2192
          %v2194 = vpop.f32.mrb[0].mxu0
          %2195 = vdwg.mxu0
          %v2196 = vsub.f32 %v2088, %v1967
          %v2197 = vsub.f32 %v2094, %v1973
          %v2198 = vld [vmem:[#allocation4] sm:$0xff]
          %v2199 = vld [vmem:[#allocation4 + $0x8] sm:$0xff]
          %v2200 = vld [vmem:[#allocation4 + $0x10] sm:$0xff]
          %v2201 = vld [vmem:[#allocation4 + $0x18] sm:$0xff]
          %v2202 = vmul.f32 %v2196, %v2198
          %v2203 = vmul.f32 %v2197, %v2200
          %v2204 = vsub.f32 %v2202, %v2199
          %v2205 = vsub.f32 %v2203, %v2201
          %v2206 = vld [vmem:[%s8] sm:$0xff]
          %v2207 = vld [vmem:[%s8 + $0x8] sm:$0xff]
          %2209 = vset.pattern.permute.xlu0 0
          %2210 = vperm.xlu0 %2209, %v2206
          %v2211 = vpop.permute.xlu0 %2210
          %2214 = vset.pattern.permute.xlu0 0
          %2215 = vperm.xlu0 %2214, %v2207
          %v2216 = vpop.permute.xlu0 %2215
          %v2218 = vmul.f32 %v2204, %v2211
          %v2219 = vmul.f32 %v2205, %v2216
          %v2220 = vadd.f32 %v1969, %v2218
          %v2221 = vadd.f32 %v1975, %v2219
          %v2222 = vadd.f32 %v2188, %v2218
          %v2223 = vadd.f32 %v2193, %v2219
          %v2224 = vmul.f32 %v2218, 0.5
          %v2225 = vmul.f32 %v2219, 0.5
          %v2226 = vmul.f32 %v2224, %v2211
          %v2227 = vmul.f32 %v2225, %v2216
          %v2228 = vadd.f32 %v2222, %v2226
          %v2229 = vadd.f32 %v2223, %v2227
          %v2230 = vmul.f32 %v2204, %v2204
          %v2231 = vmul.f32 %v2205, %v2205
          %2232 = vadd.xlane.f32.xlu0 %v2230
          %v2233 = vpop.xlane.xlu0 %2232
          %2234 = vadd.xlane.f32.xlu0 %v2231
          %v2235 = vpop.xlane.xlu0 %2234
          %v2236 = vrsqrt.pop %v2233
          %v2237 = vmul.f32 %v2233, %v2236
          %vm2238 = vcmp.eq.f32.partialorder %v2233, inf
          %v2239 = vsel %vm2238, %v2233, %v2237
          %vm2240 = vcmp.eq.f32.partialorder %v2233, 0.0
          %v2241 = vand.u32 %v2233, 2147483648
          %v2242 = vsel %vm2240, %v2241, %v2239
          %v2243 = vrsqrt.pop %v2235
          %v2244 = vmul.f32 %v2235, %v2243
          %vm2245 = vcmp.eq.f32.partialorder %v2235, inf
          %v2246 = vsel %vm2245, %v2235, %v2244
          %vm2247 = vcmp.eq.f32.partialorder %v2235, 0.0
          %v2248 = vand.u32 %v2235, 2147483648
          %v2249 = vsel %vm2247, %v2248, %v2246
          %v2250 = vadd.f32 %v2242, 1e-09
          %v2251 = vadd.f32 %v2249, 1e-09
          %v2252 = vrcp.pop %v2250
          %v2253 = vrcp.pop %v2251
          %v2254 = vmul.f32 %v2204, %v2252
          %v2255 = vmul.f32 %v2205, %v2253
          %v2256 = vadd.f32 %v2090, %v2254
          %v2257 = vadd.f32 %v2096, %v2255
          %vm2258 = vcmp.gt.f32.partialorder %v2220, 0.0
          %vm2259 = vcmp.gt.f32.partialorder %v2221, 0.0
          %v2260 = vmul.f32 %v2220, 0.01
          %v2261 = vmul.f32 %v2221, 0.01
          %v2262 = vsel %vm2258, %v2220, %v2260
          %v2263 = vsel %vm2259, %v2221, %v2261
          %v2264 = vadd.f32 %v1850, %v2262
          %v2265 = vadd.f32 %v1851, %v2263
          %2266 = vst [vmem:[#allocation20] sm:$0xff] %v2264
          %2267 = vst [vmem:[#allocation20 + $0x8] sm:$0xff] %v2265
          %vm2268 = vcmp.gt.f32.partialorder %v2228, 0.0
          %vm2269 = vcmp.gt.f32.partialorder %v2229, 0.0
          %v2270 = vmul.f32 %v2228, 0.01
          %v2271 = vmul.f32 %v2229, 0.01
          %v2272 = vsel %vm2268, %v2228, %v2270
          %v2273 = vsel %vm2269, %v2229, %v2271
          %v2274 = vadd.f32 %v1852, %v2272
          %v2275 = vadd.f32 %v1853, %v2273
          %2276 = vst [vmem:[#allocation23] sm:$0xff] %v2274
          %2277 = vst [vmem:[#allocation23 + $0x8] sm:$0xff] %v2275
          %vm2278 = vcmp.gt.f32.partialorder %v2256, 0.0
          %vm2279 = vcmp.gt.f32.partialorder %v2257, 0.0
          %v2280 = vmul.f32 %v2256, 0.01
          %v2281 = vmul.f32 %v2257, 0.01
          %v2282 = vsel %vm2278, %v2256, %v2280
          %v2283 = vsel %vm2279, %v2257, %v2281
          %v2284 = vadd.f32 %v1854, %v2282
          %v2285 = vadd.f32 %v1855, %v2283
          %2286 = vst [vmem:[#allocation24] sm:$0xff] %v2284
          %2287 = vst [vmem:[#allocation24 + $0x8] sm:$0xff] %v2285
        $region148: #{tpu_custom_call.1} parent=103 // pred_fallthru
          _
        %s2288 = sand.u32 %s48, 1
        %s2289 = scalar_lea.sflag [#allocation22], %s2288
        %s2290 = sand.u32 %s543, 1
        %s2291 = smul.addr %s2290, 16
        %s2292 = scalar_lea.vmem [#allocation21], %s2291
        // Predicated region
        $region149: #{tpu_custom_call.1} parent=103 // pred_check
          %p2293 = pneg %p527
        $region150: #{tpu_custom_call.1} parent=103 // pred_check_branch
          %2295 = sbr.rel (%p2293) target = $region152
        $region151: #{tpu_custom_call.1} parent=103 // pred_region
          %s2297 = ssub.s32 256, 256
          %2298 = vsyncadd [#allocation7], %s2297
          %s2299 = sshll.u32 [#allocation20], 4
          %s2300 = int_to_ptr.vmem [resolvable:$true] %s2299
          %2305 = dma.vmem_to_hbm [thread:$0]  %s2300, 256, %s21, [#allocation7], 128, 128, 8
        $region152: #{tpu_custom_call.1} parent=103 // pred_fallthru
          _
        // Predicated region
        $region153: #{tpu_custom_call.1} parent=103 // pred_check
          %p2306 = pneg %p553
        $region154: #{tpu_custom_call.1} parent=103 // pred_check_branch
          %2308 = sbr.rel (%p2306) target = $region156
        $region155: #{tpu_custom_call.1} parent=103 // pred_region
          %s2309 = smul.u32 2, %s48
          %s2311 = ssub.s32 256, 256
          %2312 = vsyncadd %s2289, %s2311
          %s2313 = smul.addr %s2309, 128
          %s2314 = scalar_lea.hbm %s22, %s2313
          %s2315 = sshll.u32 %s2292, 4
          %s2316 = int_to_ptr.vmem [resolvable:$true] %s2315
          %2321 = dma.vmem_to_hbm [thread:$0]  %s2316, 256, %s2314, %s2289, 128, 128, 8
        $region156: #{tpu_custom_call.1} parent=103 // pred_fallthru
          _
        // Predicated region
        $region157: #{tpu_custom_call.1} parent=103 // pred_check
          %p2322 = pneg %p574
        $region158: #{tpu_custom_call.1} parent=103 // pred_check_branch
          %2324 = sbr.rel (%p2322) target = $region160
        $region159: #{tpu_custom_call.1} parent=103 // pred_region
          %s2326 = ssub.s32 256, 256
          %2327 = vsyncadd [#allocation22], %s2326
          %s2328 = sshll.u32 [#allocation23], 4
          %s2329 = int_to_ptr.vmem [resolvable:$true] %s2328
          %2334 = dma.vmem_to_hbm [thread:$0]  %s2329, 256, %s23, [#allocation22], 128, 128, 8
        $region160: #{tpu_custom_call.1} parent=103 // pred_fallthru
          _
        // Predicated region
        $region161: #{tpu_custom_call.1} parent=103 // pred_check
          %p2335 = pneg %p595
        $region162: #{tpu_custom_call.1} parent=103 // pred_check_branch
          %2337 = sbr.rel (%p2335) target = $region164
        $region163: #{tpu_custom_call.1} parent=103 // pred_region
          %s2339 = ssub.s32 256, 256
          %2340 = vsyncadd [#allocation25], %s2339
          %s2341 = sshll.u32 [#allocation24], 4
          %s2342 = int_to_ptr.vmem [resolvable:$true] %s2341
          %2347 = dma.vmem_to_hbm [thread:$0]  %s2342, 256, %s24, [#allocation25], 128, 128, 8
        $region164: #{tpu_custom_call.1} parent=103 // pred_fallthru
          _
        // Predicated region
        $region165: #{tpu_custom_call.1} parent=103 // pred_check
          %p2348 = pneg %p527
        $region166: #{tpu_custom_call.1} parent=103 // pred_check_branch
          %2350 = sbr.rel (%p2348) target = $region168
        $region167: #{tpu_custom_call.1} parent=103 // pred_region
          %2351 = dma.done [#allocation7], 256
        $region168: #{tpu_custom_call.1} parent=103 // pred_fallthru
          _
        // Predicated region
        $region169: #{tpu_custom_call.1} parent=103 // pred_check
          %p2352 = pneg %p574
        $region170: #{tpu_custom_call.1} parent=103 // pred_check_branch
          %2354 = sbr.rel (%p2352) target = $region172
        $region171: #{tpu_custom_call.1} parent=103 // pred_region
          %2355 = dma.done [#allocation22], 256
        $region172: #{tpu_custom_call.1} parent=103 // pred_fallthru
          _
        // Predicated region
        $region173: #{tpu_custom_call.1} parent=103 // pred_check
          %p2356 = pneg %p595
        $region174: #{tpu_custom_call.1} parent=103 // pred_check_branch
          %2358 = sbr.rel (%p2356) target = $region176
        $region175: #{tpu_custom_call.1} parent=103 // pred_region
          %2359 = dma.done [#allocation25], 256
        $region176: #{tpu_custom_call.1} parent=103 // pred_fallthru
          _
      $region104: #{tpu_custom_call.1} parent=5 // pred_fallthru
        _
      %p2360 = scmp.le.s32.totalorder 2, %s43
      // Predicated region
      $region177: #{tpu_custom_call.1} parent=5 // pred_check
        %p2361 = pneg %p2360
      $region178: #{tpu_custom_call.1} parent=5 // pred_check_branch
        %2363 = sbr.rel (%p2361) target = $region180
      $region179: #{tpu_custom_call.1} parent=5 // pred_region
        %s2364 = ssub.s32 %s43, 2
        // Predicated region
        $region181: #{tpu_custom_call.1} parent=179 // pred_check
          %p2365 = pneg %p559
        $region182: #{tpu_custom_call.1} parent=179 // pred_check_branch
          %2367 = sbr.rel (%p2365) target = $region184
        $region183: #{tpu_custom_call.1} parent=179 // pred_region
          %s2368 = sand.u32 %s49, 1
          %s2369 = scalar_lea.sflag [#allocation22], %s2368
          %s2370 = sand.u32 %s544, 1
          %s2371 = smul.addr %s2370, 16
          %s2372 = scalar_lea.vmem [#allocation21], %s2371
          %2373 = dma.done %s2369, 256
        $region184: #{tpu_custom_call.1} parent=179 // pred_fallthru
          _
      $region180: #{tpu_custom_call.1} parent=5 // pred_fallthru
        _
    $region6: #{tpu_custom_call.1} parent=1 // loop_footer
      %s47 = sadd.s32 1, %s43
    $region7: #{tpu_custom_call.1} parent=1 // loop_footer_branch
      %42 = sbr.rel target = $region3
    $region8: #{tpu_custom_call.1} parent=1 // loop_exit
      _
    %2374 = vsyncpa [#allocation6], 1
    %s2375 = scalar_lea.sflag [#allocation6], 1
    %2376 = vsyncpa %s2375, 1
    %2377 = vsyncpa [#allocation9], 1
    %2378 = vsyncpa [#allocation12], 1
    %2379 = vsyncpa [#allocation15], 1
    %2380 = vsyncpa [#allocation18], 1
    %2381 = vsyncpa [#allocation7], 1
    %s2382 = scalar_lea.sflag [#allocation7], 1
    %2383 = vsyncpa %s2382, 1
    %2384 = vsyncpa [#allocation22], 1
    %s2385 = scalar_lea.sflag [#allocation22], 1
    %2386 = vsyncpa %s2385, 1
    %2387 = vsyncpa [#allocation25], 1

</llo_original>
